<compile_context>
chip_gen: v5e
topology: v5e:2x2
jax: 0.10.0
libtpu: 0.0.40
codegen_flags: <defaults>
</compile_context>

<pallas_src>
import numpy as np
import jax
import jax.numpy as jnp
from jax.experimental import pallas as pl
from jax.experimental.pallas import tpu as pltpu

TB = 8  # images per grid step (= one f32 sublane tile)


# ------------------------------- fused kernel -------------------------------
def _net_kernel(x_ref, w1_ref, b1_ref, w2_ref, b2_ref, wfc_ref, bfc_ref, o_ref):
    f32, bf16 = jnp.float32, jnp.bfloat16

    x = x_ref[0]                                            # (28, TB, 28) bf16

    # ---- conv1 as ONE MXU GEMM: K = 5(di)*28(w), lanes-out = c*24 + wo ------
    p1 = jnp.concatenate([x[di:di + 24] for di in range(5)], axis=-1)  # (24,TB,140)
    p1 = p1.reshape(24 * TB, 140)                           # rows = ho*TB + t
    y1 = jnp.dot(p1, w1_ref[...], preferred_element_type=f32) + b1_ref[...]  # (192,240)

    # ---- maxpool 2x2 + ReLU (H pairs via row split, W pairs via lane shift) -
    t1 = y1.reshape(12, 2, TB, 240)
    h1 = jnp.maximum(t1[:, 0], t1[:, 1])                    # (12, TB, 240)
    h1s = jnp.concatenate([h1[..., 1:], h1[..., -1:]], axis=-1)
    h1 = jnp.maximum(jnp.maximum(h1, h1s), 0.0)             # valid at even wo lanes

    # ---- conv2 as ONE MXU GEMM: K = 5(di)*10(ci)*24(u), lanes-out = co*8+wo2
    #      (pool1 W-compaction is folded into the banded w2 weight) -----------
    p2 = jnp.concatenate([h1[di:di + 8] for di in range(5)], axis=-1)  # (8,TB,1200)
    p2 = p2.reshape(8 * TB, 1200).astype(bf16)
    y2 = jnp.dot(p2, w2_ref[...], preferred_element_type=f32) + b2_ref[...]  # (64,160)

    # ---- maxpool 2x2 + ReLU ---------------------------------------------------
    t2 = y2.reshape(4, 2, TB, 160)
    h2 = jnp.maximum(t2[:, 0], t2[:, 1])                    # (4, TB, 160)
    h2s = jnp.concatenate([h2[..., 1:], h2[..., -1:]], axis=-1)
    h2 = jnp.maximum(jnp.maximum(h2, h2s), 0.0)             # valid at even wo2 lanes

    # ---- NCHW flatten + fc (both folded into wfc) + stable log_softmax -------
    f = jnp.concatenate([h2[i] for i in range(4)], axis=-1)  # (TB, 640)
    logits = jnp.dot(f.astype(bf16), wfc_ref[...],
                     preferred_element_type=f32) + bfc_ref[...]          # (TB, 128)
    z = logits - jnp.max(logits, axis=-1, keepdims=True)
    lse = jnp.log(jnp.sum(jnp.exp(z), axis=-1, keepdims=True))
    o_ref[...] = (z - lse).astype(o_ref.dtype)


# --------------------- host-side weight re-layout (tiny) --------------------
def _prep_params(params):
    w1, b1, w2, b2, wfc, bfc = params
    f32, bf16 = jnp.float32, jnp.bfloat16

    # conv1 banded weight: row r = di*28 + w, col q = c*24 + wo,
    # value = w1[c,0,di,w-wo] when 0 <= w-wo < 5.
    sel1 = np.zeros((28, 24, 5), np.float32)
    for wo in range(24):
        for dj in range(5):
            sel1[wo + dj, wo, dj] = 1.0
    w1big = jnp.einsum("wod,ckd->kwco", jnp.asarray(sel1),
                       w1[:, 0].astype(f32)).reshape(140, 240).astype(bf16)
    b1big = jnp.repeat(b1.astype(f32), 24).reshape(1, 240)

    # conv2 banded weight (also folds the pool1 W-compaction):
    # row r = di*240 + ci*24 + u with u = 2*(wo2+dj), col q = co*8 + wo2.
    sel2 = np.zeros((24, 8, 5), np.float32)
    for wo in range(8):
        for dj in range(5):
            sel2[2 * (wo + dj), wo, dj] = 1.0
    w2big = jnp.einsum("uoj,CIkj->kIuCo", jnp.asarray(sel2),
                       w2.astype(f32)).reshape(1200, 160).astype(bf16)
    b2big = jnp.repeat(b2.astype(f32), 8).reshape(1, 160)

    # fc weight: folds the pool2 W-compaction and the NCHW flatten; the output
    # is lane-padded to 128 columns (padding bias = -1e9 so softmax ignores it).
    wr = jnp.transpose(wfc.astype(f32).reshape(10, 20, 4, 4), (2, 1, 3, 0))
    wfcbig = jnp.zeros((4, 20, 8, 10), f32).at[:, :, 0::2, :].set(wr)
    wfcbig = wfcbig.reshape(640, 10)
    wfcbig = jnp.concatenate([wfcbig, jnp.zeros((640, 118), f32)], axis=1).astype(bf16)
    bfcbig = jnp.concatenate([bfc.astype(f32),
                              jnp.full((118,), -1e9, f32)]).reshape(1, 128)

    return w1big, b1big, w2big, b2big, wfcbig, bfcbig


# -------------------------------- wrapper ------------------------------------
def net_forward(x_nchw, params):
    N = x_nchw.shape[0]
    nblk = (N + TB - 1) // TB
    npad = nblk * TB

    xp = x_nchw[:, 0].astype(jnp.float32)
    if npad != N:  # guard the tail block with zero padding
        xp = jnp.concatenate(
            [xp, jnp.zeros((npad - N, 28, 28), jnp.float32)], axis=0)
    # (nblk, 28, TB, 28): H leading, batch tile in sublanes, W in lanes.
    xt = xp.reshape(nblk, TB, 28, 28).transpose(0, 2, 1, 3).astype(jnp.bfloat16)

    w1big, b1big, w2big, b2big, wfcbig, bfcbig = _prep_params(params)

    flops = 2 * nblk * (24 * TB * 140 * 240 + 8 * TB * 1200 * 160 + TB * 640 * 128)
    cost = pl.CostEstimate(
        flops=flops,
        transcendentals=nblk * TB * 129,
        bytes_accessed=xt.size * 2 + npad * 128 * 4
        + 2 * (w1big.size + w2big.size + wfcbig.size)
        + 4 * (b1big.size + b2big.size + bfcbig.size))

    out = pl.pallas_call(
        _net_kernel,
        out_shape=jax.ShapeDtypeStruct((npad, 128), jnp.float32),
        grid=(nblk,),
        in_specs=[
            pl.BlockSpec((1, 28, TB, 28), lambda k: (k, 0, 0, 0)),
            pl.BlockSpec((140, 240), lambda k: (0, 0)),
            pl.BlockSpec((1, 240), lambda k: (0, 0)),
            pl.BlockSpec((1200, 160), lambda k: (0, 0)),
            pl.BlockSpec((1, 160), lambda k: (0, 0)),
            pl.BlockSpec((640, 128), lambda k: (0, 0)),
            pl.BlockSpec((1, 128), lambda k: (0, 0)),
        ],
        out_specs=pl.BlockSpec((TB, 128), lambda k: (k, 0)),
        compiler_params=pltpu.CompilerParams(
            dimension_semantics=("parallel",),
            vmem_limit_bytes=32 * 1024 * 1024),
        cost_estimate=cost,
    )(xt, w1big, b1big, w2big, b2big, wfcbig, bfcbig)

    return out[:N, :10]


# ------------------------------ pure-JAX reference ---------------------------
def _reference_forward(x, params):
    w1, b1, w2, b2, wfc, bfc = params

    def conv(inp, w, b):
        out = jax.lax.conv_general_dilated(
            inp, w, window_strides=(1, 1), padding="VALID",
            dimension_numbers=("NCHW", "OIHW", "NCHW"))
        return out + b[None, :, None, None]

    def pool_relu(inp):
        y = jax.lax.reduce_window(inp, -jnp.inf, jax.lax.max,
                                  (1, 1, 2, 2), (1, 1, 2, 2), "VALID")
        return jnp.maximum(y, 0.0)

    h1 = pool_relu(conv(x, w1, b1))
    h2 = pool_relu(conv(h1, w2, b2))
    flat = h2.reshape(x.shape[0], -1)
    logits = flat @ wfc.T + bfc
    return jax.nn.log_softmax(logits, axis=-1)


# ---------------------------------- main -------------------------------------
if __name__ == "__main__":
    key = jax.random.PRNGKey(0)
    kx, k1, k2, k3, k4, k5, k6 = jax.random.split(key, 7)

    # deterministic synthetic parameters (module __init__ shapes)
    w1 = 0.1 * jax.random.normal(k1, (10, 1, 5, 5), jnp.float32)
    b1 = 0.1 * jax.random.normal(k2, (10,), jnp.float32)
    w2 = 0.1 * jax.random.normal(k3, (20, 10, 5, 5), jnp.float32)
    b2 = 0.1 * jax.random.normal(k4, (20,), jnp.float32)
    wfc = 0.1 * jax.random.normal(k5, (10, 320), jnp.float32)
    bfc = 0.1 * jax.random.normal(k6, (10,), jnp.float32)
    params = (w1, b1, w2, b2, wfc, bfc)

    # batch 30: 28x28 forced by fc=Linear(320,10); exercises TB=8 batch tiling
    # including the zero-padded tail block (grid = 4 steps).
    x = jax.random.normal(kx, (30, 1, 28, 28), jnp.float32)

    out = jax.block_until_ready(jax.jit(net_forward)(x, params))
    assert out.shape == (30, 10)

    ref = jax.block_until_ready(_reference_forward(x, params))
    np.testing.assert_allclose(np.asarray(out), np.asarray(ref),
                               rtol=5e-2, atol=5e-2)
    print("KERNEL_OK")
</pallas_src>

<mosaic_0001>
module attributes {stable_mosaic.version = 11 : i64} {
  func.func @_net_kernel(%arg0: i32, %arg1: memref<1x28x8x28xbf16, #tpu.memory_space<vmem>>, %arg2: memref<140x240xbf16, #tpu.memory_space<vmem>>, %arg3: memref<1x240xf32, #tpu.memory_space<vmem>>, %arg4: memref<1200x160xbf16, #tpu.memory_space<vmem>>, %arg5: memref<1x160xf32, #tpu.memory_space<vmem>>, %arg6: memref<640x128xbf16, #tpu.memory_space<vmem>>, %arg7: memref<1x128xf32, #tpu.memory_space<vmem>>, %arg8: memref<8x128xf32, #tpu.memory_space<vmem>>) attributes {dimension_semantics = [#tpu.dimension_semantics<parallel>], iteration_bounds = array<i64: 4>, scalar_prefetch = 0 : i64, scratch_operands = 0 : i64, tpu.core_type = #tpu.core_type<tc>, window_params = [{transform_indices = @transform_0, window_bounds = array<i64: 1, 28, 8, 28>}, {pipeline_mode = #tpu.pipeline_mode<synchronous>, transform_indices = @transform_1, window_bounds = array<i64: 140, 240>}, {pipeline_mode = #tpu.pipeline_mode<synchronous>, transform_indices = @transform_2, window_bounds = array<i64: 1, 240>}, {pipeline_mode = #tpu.pipeline_mode<synchronous>, transform_indices = @transform_3, window_bounds = array<i64: 1200, 160>}, {pipeline_mode = #tpu.pipeline_mode<synchronous>, transform_indices = @transform_4, window_bounds = array<i64: 1, 160>}, {pipeline_mode = #tpu.pipeline_mode<synchronous>, transform_indices = @transform_5, window_bounds = array<i64: 640, 128>}, {pipeline_mode = #tpu.pipeline_mode<synchronous>, transform_indices = @transform_6, window_bounds = array<i64: 1, 128>}, {transform_indices = @transform_7, window_bounds = array<i64: 8, 128>}]} {
    %c0 = arith.constant 0 : index
    %c0_0 = arith.constant 0 : index
    %c0_1 = arith.constant 0 : index
    %c0_2 = arith.constant 0 : index
    %0 = vector.load %arg1[%c0, %c0_0, %c0_1, %c0_2] : memref<1x28x8x28xbf16, #tpu.memory_space<vmem>>, vector<1x28x8x28xbf16>
    %1 = vector.shape_cast %0 : vector<1x28x8x28xbf16> to vector<28x8x28xbf16>
    %2 = vector.extract_strided_slice %1 {offsets = [0, 0, 0], sizes = [24, 8, 28], strides = [1, 1, 1]} : vector<28x8x28xbf16> to vector<24x8x28xbf16>
    %3 = vector.extract_strided_slice %1 {offsets = [1, 0, 0], sizes = [24, 8, 28], strides = [1, 1, 1]} : vector<28x8x28xbf16> to vector<24x8x28xbf16>
    %4 = vector.extract_strided_slice %1 {offsets = [2, 0, 0], sizes = [24, 8, 28], strides = [1, 1, 1]} : vector<28x8x28xbf16> to vector<24x8x28xbf16>
    %5 = vector.extract_strided_slice %1 {offsets = [3, 0, 0], sizes = [24, 8, 28], strides = [1, 1, 1]} : vector<28x8x28xbf16> to vector<24x8x28xbf16>
    %6 = vector.extract_strided_slice %1 {offsets = [4, 0, 0], sizes = [24, 8, 28], strides = [1, 1, 1]} : vector<28x8x28xbf16> to vector<24x8x28xbf16>
    %7 = tpu.concatenate %2, %3, %4, %5, %6 in 2 : vector<24x8x28xbf16>, vector<24x8x28xbf16>, vector<24x8x28xbf16>, vector<24x8x28xbf16>, vector<24x8x28xbf16> -> vector<24x8x140xbf16>
    %8 = vector.shape_cast %7 : vector<24x8x140xbf16> to vector<192x140xbf16>
    %c0_3 = arith.constant 0 : index
    %c0_4 = arith.constant 0 : index
    %9 = vector.load %arg2[%c0_3, %c0_4] : memref<140x240xbf16, #tpu.memory_space<vmem>>, vector<140x240xbf16>
    %cst = arith.constant dense<0.000000e+00> : vector<192x240xf32>
    %10 = tpu.matmul %8, %9, %cst {dimension_numbers = #tpu.dot_dimension_numbers<[1], [0], [0], [1], [0, 0, 1, 1], [], []>} : vector<192x140xbf16>, vector<140x240xbf16>, vector<192x240xf32> -> vector<192x240xf32>
    %c0_5 = arith.constant 0 : index
    %c0_6 = arith.constant 0 : index
    %11 = vector.load %arg3[%c0_5, %c0_6] : memref<1x240xf32, #tpu.memory_space<vmem>>, vector<1x240xf32>
    %12 = vector.broadcast %11 : vector<1x240xf32> to vector<192x240xf32>
    %13 = arith.addf %10, %12 : vector<192x240xf32>
    %14 = vector.shape_cast %13 : vector<192x240xf32> to vector<12x2x8x240xf32>
    %15 = vector.extract_strided_slice %14 {offsets = [0, 0, 0, 0], sizes = [12, 1, 8, 240], strides = [1, 1, 1, 1]} : vector<12x2x8x240xf32> to vector<12x1x8x240xf32>
    %16 = vector.shape_cast %15 : vector<12x1x8x240xf32> to vector<12x8x240xf32>
    %17 = vector.extract_strided_slice %14 {offsets = [0, 1, 0, 0], sizes = [12, 1, 8, 240], strides = [1, 1, 1, 1]} : vector<12x2x8x240xf32> to vector<12x1x8x240xf32>
    %18 = vector.shape_cast %17 : vector<12x1x8x240xf32> to vector<12x8x240xf32>
    %19 = arith.maximumf %16, %18 : vector<12x8x240xf32>
    %20 = vector.extract_strided_slice %19 {offsets = [0, 0, 1], sizes = [12, 8, 239], strides = [1, 1, 1]} : vector<12x8x240xf32> to vector<12x8x239xf32>
    %21 = vector.extract_strided_slice %19 {offsets = [0, 0, 239], sizes = [12, 8, 1], strides = [1, 1, 1]} : vector<12x8x240xf32> to vector<12x8x1xf32>
    %22 = tpu.concatenate %20, %21 in 2 : vector<12x8x239xf32>, vector<12x8x1xf32> -> vector<12x8x240xf32>
    %23 = arith.maximumf %19, %22 : vector<12x8x240xf32>
    %cst_7 = arith.constant 0.000000e+00 : f32
    %24 = vector.broadcast %cst_7 : f32 to vector<12x8x240xf32>
    %25 = arith.maximumf %23, %24 : vector<12x8x240xf32>
    %26 = vector.extract_strided_slice %25 {offsets = [0, 0, 0], sizes = [8, 8, 240], strides = [1, 1, 1]} : vector<12x8x240xf32> to vector<8x8x240xf32>
    %27 = vector.extract_strided_slice %25 {offsets = [1, 0, 0], sizes = [8, 8, 240], strides = [1, 1, 1]} : vector<12x8x240xf32> to vector<8x8x240xf32>
    %28 = vector.extract_strided_slice %25 {offsets = [2, 0, 0], sizes = [8, 8, 240], strides = [1, 1, 1]} : vector<12x8x240xf32> to vector<8x8x240xf32>
    %29 = vector.extract_strided_slice %25 {offsets = [3, 0, 0], sizes = [8, 8, 240], strides = [1, 1, 1]} : vector<12x8x240xf32> to vector<8x8x240xf32>
    %30 = vector.extract_strided_slice %25 {offsets = [4, 0, 0], sizes = [8, 8, 240], strides = [1, 1, 1]} : vector<12x8x240xf32> to vector<8x8x240xf32>
    %31 = tpu.concatenate %26, %27, %28, %29, %30 in 2 : vector<8x8x240xf32>, vector<8x8x240xf32>, vector<8x8x240xf32>, vector<8x8x240xf32>, vector<8x8x240xf32> -> vector<8x8x1200xf32>
    %32 = vector.shape_cast %31 : vector<8x8x1200xf32> to vector<64x1200xf32>
    %33 = arith.truncf %32 : vector<64x1200xf32> to vector<64x1200xbf16>
    %c0_8 = arith.constant 0 : index
    %c0_9 = arith.constant 0 : index
    %34 = vector.load %arg4[%c0_8, %c0_9] : memref<1200x160xbf16, #tpu.memory_space<vmem>>, vector<1200x160xbf16>
    %cst_10 = arith.constant dense<0.000000e+00> : vector<64x160xf32>
    %35 = tpu.matmul %33, %34, %cst_10 {dimension_numbers = #tpu.dot_dimension_numbers<[1], [0], [0], [1], [0, 0, 1, 1], [], []>} : vector<64x1200xbf16>, vector<1200x160xbf16>, vector<64x160xf32> -> vector<64x160xf32>
    %c0_11 = arith.constant 0 : index
    %c0_12 = arith.constant 0 : index
    %36 = vector.load %arg5[%c0_11, %c0_12] : memref<1x160xf32, #tpu.memory_space<vmem>>, vector<1x160xf32>
    %37 = vector.broadcast %36 : vector<1x160xf32> to vector<64x160xf32>
    %38 = arith.addf %35, %37 : vector<64x160xf32>
    %39 = vector.shape_cast %38 : vector<64x160xf32> to vector<4x2x8x160xf32>
    %40 = vector.extract_strided_slice %39 {offsets = [0, 0, 0, 0], sizes = [4, 1, 8, 160], strides = [1, 1, 1, 1]} : vector<4x2x8x160xf32> to vector<4x1x8x160xf32>
    %41 = vector.shape_cast %40 : vector<4x1x8x160xf32> to vector<4x8x160xf32>
    %42 = vector.extract_strided_slice %39 {offsets = [0, 1, 0, 0], sizes = [4, 1, 8, 160], strides = [1, 1, 1, 1]} : vector<4x2x8x160xf32> to vector<4x1x8x160xf32>
    %43 = vector.shape_cast %42 : vector<4x1x8x160xf32> to vector<4x8x160xf32>
    %44 = arith.maximumf %41, %43 : vector<4x8x160xf32>
    %45 = vector.extract_strided_slice %44 {offsets = [0, 0, 1], sizes = [4, 8, 159], strides = [1, 1, 1]} : vector<4x8x160xf32> to vector<4x8x159xf32>
    %46 = vector.extract_strided_slice %44 {offsets = [0, 0, 159], sizes = [4, 8, 1], strides = [1, 1, 1]} : vector<4x8x160xf32> to vector<4x8x1xf32>
    %47 = tpu.concatenate %45, %46 in 2 : vector<4x8x159xf32>, vector<4x8x1xf32> -> vector<4x8x160xf32>
    %48 = arith.maximumf %44, %47 : vector<4x8x160xf32>
    %cst_13 = arith.constant 0.000000e+00 : f32
    %49 = vector.broadcast %cst_13 : f32 to vector<4x8x160xf32>
    %50 = arith.maximumf %48, %49 : vector<4x8x160xf32>
    %51 = vector.extract_strided_slice %50 {offsets = [0, 0, 0], sizes = [1, 8, 160], strides = [1, 1, 1]} : vector<4x8x160xf32> to vector<1x8x160xf32>
    %52 = vector.shape_cast %51 : vector<1x8x160xf32> to vector<8x160xf32>
    %53 = vector.extract_strided_slice %50 {offsets = [1, 0, 0], sizes = [1, 8, 160], strides = [1, 1, 1]} : vector<4x8x160xf32> to vector<1x8x160xf32>
    %54 = vector.shape_cast %53 : vector<1x8x160xf32> to vector<8x160xf32>
    %55 = vector.extract_strided_slice %50 {offsets = [2, 0, 0], sizes = [1, 8, 160], strides = [1, 1, 1]} : vector<4x8x160xf32> to vector<1x8x160xf32>
    %56 = vector.shape_cast %55 : vector<1x8x160xf32> to vector<8x160xf32>
    %57 = vector.extract_strided_slice %50 {offsets = [3, 0, 0], sizes = [1, 8, 160], strides = [1, 1, 1]} : vector<4x8x160xf32> to vector<1x8x160xf32>
    %58 = vector.shape_cast %57 : vector<1x8x160xf32> to vector<8x160xf32>
    %59 = tpu.concatenate %52, %54, %56, %58 in 1 : vector<8x160xf32>, vector<8x160xf32>, vector<8x160xf32>, vector<8x160xf32> -> vector<8x640xf32>
    %60 = arith.truncf %59 : vector<8x640xf32> to vector<8x640xbf16>
    %c0_14 = arith.constant 0 : index
    %c0_15 = arith.constant 0 : index
    %61 = vector.load %arg6[%c0_14, %c0_15] : memref<640x128xbf16, #tpu.memory_space<vmem>>, vector<640x128xbf16>
    %cst_16 = arith.constant dense<0.000000e+00> : vector<8x128xf32>
    %62 = tpu.matmul %60, %61, %cst_16 {dimension_numbers = #tpu.dot_dimension_numbers<[1], [0], [0], [1], [0, 0, 1, 1], [], []>} : vector<8x640xbf16>, vector<640x128xbf16>, vector<8x128xf32> -> vector<8x128xf32>
    %c0_17 = arith.constant 0 : index
    %c0_18 = arith.constant 0 : index
    %63 = vector.load %arg7[%c0_17, %c0_18] : memref<1x128xf32, #tpu.memory_space<vmem>>, vector<1x128xf32>
    %64 = vector.broadcast %63 : vector<1x128xf32> to vector<8x128xf32>
    %65 = arith.addf %62, %64 : vector<8x128xf32>
    %cst_19 = arith.constant dense<0xFF800000> : vector<8xf32>
    %66 = vector.multi_reduction <maximumf>, %65, %cst_19 [1] : vector<8x128xf32> to vector<8xf32>
    %67 = vector.shape_cast %66 : vector<8xf32> to vector<8x1xf32>
    %68 = vector.broadcast %67 : vector<8x1xf32> to vector<8x128xf32>
    %69 = arith.subf %65, %68 : vector<8x128xf32>
    %70 = math.exp %69 : vector<8x128xf32>
    %cst_20 = arith.constant dense<0.000000e+00> : vector<8xf32>
    %71 = vector.multi_reduction <add>, %70, %cst_20 [1] : vector<8x128xf32> to vector<8xf32>
    %72 = vector.shape_cast %71 : vector<8xf32> to vector<8x1xf32>
    %73 = math.log %72 : vector<8x1xf32>
    %74 = vector.broadcast %73 : vector<8x1xf32> to vector<8x128xf32>
    %75 = arith.subf %69, %74 : vector<8x128xf32>
    %c0_21 = arith.constant 0 : index
    %c0_22 = arith.constant 0 : index
    %76 = vector.load %arg8[%c0_21, %c0_22] : memref<8x128xf32, #tpu.memory_space<vmem>>, vector<8x128xf32>
    tpu.vector_store %arg8[%c0_21, %c0_22], %75 {strides = array<i32>} : memref<8x128xf32, #tpu.memory_space<vmem>>, vector<8x128xf32>,
    return
  }
  func.func @transform_0(%arg0: i32) -> (i32, i32, i32, i32) {
    %c0_i32 = arith.constant 0 : i32
    %c0_i32_0 = arith.constant 0 : i32
    %c0_i32_1 = arith.constant 0 : i32
    %c0_i32_2 = arith.constant 0 : i32
    return %arg0, %c0_i32, %c0_i32_0, %c0_i32_1 : i32, i32, i32, i32
  }
  func.func @transform_1(%arg0: i32) -> (i32, i32) {
    %c0_i32 = arith.constant 0 : i32
    %c0_i32_0 = arith.constant 0 : i32
    %c0_i32_1 = arith.constant 0 : i32
    return %c0_i32, %c0_i32_0 : i32, i32
  }
  func.func @transform_2(%arg0: i32) -> (i32, i32) {
    %c0_i32 = arith.constant 0 : i32
    %c0_i32_0 = arith.constant 0 : i32
    %c0_i32_1 = arith.constant 0 : i32
    return %c0_i32, %c0_i32_0 : i32, i32
  }
  func.func @transform_3(%arg0: i32) -> (i32, i32) {
    %c0_i32 = arith.constant 0 : i32
    %c0_i32_0 = arith.constant 0 : i32
    %c0_i32_1 = arith.constant 0 : i32
    return %c0_i32, %c0_i32_0 : i32, i32
  }
  func.func @transform_4(%arg0: i32) -> (i32, i32) {
    %c0_i32 = arith.constant 0 : i32
    %c0_i32_0 = arith.constant 0 : i32
    %c0_i32_1 = arith.constant 0 : i32
    return %c0_i32, %c0_i32_0 : i32, i32
  }
  func.func @transform_5(%arg0: i32) -> (i32, i32) {
    %c0_i32 = arith.constant 0 : i32
    %c0_i32_0 = arith.constant 0 : i32
    %c0_i32_1 = arith.constant 0 : i32
    return %c0_i32, %c0_i32_0 : i32, i32
  }
  func.func @transform_6(%arg0: i32) -> (i32, i32) {
    %c0_i32 = arith.constant 0 : i32
    %c0_i32_0 = arith.constant 0 : i32
    %c0_i32_1 = arith.constant 0 : i32
    return %c0_i32, %c0_i32_0 : i32, i32
  }
  func.func @transform_7(%arg0: i32) -> (i32, i32) {
    %c0_i32 = arith.constant 0 : i32
    %c0_i32_0 = arith.constant 0 : i32
    return %arg0, %c0_i32 : i32, i32
  }
}

</mosaic_0001>

<llo_original>
// kernel: net_forward.1
$region0: #{net_forward.1}
  #allocation0 [shape = 'u32[]', space=smem, size = 0x4, offset = 0x4, fixed_abs, tag = 'smem constant byte address 0x4 - core index']
  #allocation1 [shape = 'u32[72,128]{1,0:T(1,128)}', space=vmem, size = 0x9000, scoped, tag = 'internal scratch']
  %s0 = inlined_call_operand.vmem [shape: bf16[4,28,8,28], index: 0, kind: input, shape index: {}]
  %s1 = inlined_call_operand.vmem [shape: bf16[140,240], index: 1, kind: input, shape index: {}]
  %s2 = inlined_call_operand.vmem [shape: f32[1,240], index: 2, kind: input, shape index: {}]
  %s3 = inlined_call_operand.vmem [shape: bf16[1200,160], index: 3, kind: input, shape index: {}]
  %s4 = inlined_call_operand.vmem [shape: f32[1,160], index: 4, kind: input, shape index: {}]
  %s5 = inlined_call_operand.vmem [shape: bf16[640,128], index: 5, kind: input, shape index: {}]
  %s6 = inlined_call_operand.vmem [shape: f32[1,128], index: 6, kind: input, shape index: {}]
  %s7 = inlined_call_operand.vmem [shape: f32[32,128], index: 7, kind: output, shape index: {}]
  %s8 = sld [smem:[#allocation0]]
  $region61: #{net_forward.1} parent=0
    _
  %s10 = ssub.s32 1, %s8
  %s11 = scalar_select 0, %s10, %s8
  loop: start=0, step=1, limit=6
  $region2: #{net_forward.1} parent=0 // loop_pre_header
    _
  $region3: #{net_forward.1} parent=0 // loop_header
    %s13 = sphi 0, %s17
    %p14 = scmp.ge.s32.totalorder %s13, 6
    %s23 = sphi 0, %s25
    %s26 = sphi 0, %s23
    %s27 = sphi 0, %s26
    %s43 = sphi 0, %s27
    %s47 = sphi 0, %s47
    %s49 = sphi 0, %s47
    %s50 = sphi 0, %s49
    %s64 = sphi 0, %s50
    %s68 = sphi 0, %s68
    %s70 = sphi 0, %s68
    %s71 = sphi 0, %s70
    %s85 = sphi 0, %s71
    %s89 = sphi 0, %s89
    %s91 = sphi 0, %s89
    %s92 = sphi 0, %s91
    %s106 = sphi 0, %s92
    %s110 = sphi 0, %s110
    %s112 = sphi 0, %s110
    %s113 = sphi 0, %s112
    %s127 = sphi 0, %s113
    %s131 = sphi 0, %s131
    %s133 = sphi 0, %s131
    %s134 = sphi 0, %s133
    %s148 = sphi 0, %s134
    %s152 = sphi 0, %s152
    %s154 = sphi 0, %s152
    %s155 = sphi 0, %s154
    %s169 = sphi 0, %s155
    %s175 = sphi 0, %s177
    %s178 = sphi 0, %s175
    %s179 = sphi 0, %s178
    %s195 = sphi 0, %s179
  $region4: #{net_forward.1} parent=0 // loop_header_branch
    %16 = sbr.rel (%p14) target = $region8
  $region5: #{net_forward.1} parent=0 // loop_body
    %s18 = ssub.s32 %s13, 1
    %s19 = ssub.s32 %s13, 2
    %s20 = sadd.s32 %s13, 1
    %s21 = ssub.s32 %s13, %s20
    %p22 = scmp.eq.s32.totalorder %s21, 0
    %s24 = sadd.s32 %s23, 1
    %s25 = scalar_select %p22, %s23, %s24
    %p28 = pneg %p22
    %p29 = scmp.eq.s32.totalorder %s13, 3
    %p30 = por %p28, %p29
    %p31 = scmp.ne.s32.totalorder %s23, %s26
    %p32 = scmp.eq.s32.totalorder %s13, 0
    %p33 = por %p31, %p32
    %p34 = scmp.ne.s32.totalorder %s23, %s26
    %p35 = scmp.eq.s32.totalorder %s18, 3
    %p36 = por %p34, %p35
    %p37 = scmp.ne.s32.totalorder %s26, %s27
    %p38 = scmp.eq.s32.totalorder %s18, 0
    %p39 = por %p37, %p38
    %p40 = scmp.ne.s32.totalorder %s26, %s27
    %p41 = scmp.eq.s32.totalorder %s19, 3
    %p42 = por %p40, %p41
    %p44 = scmp.ne.s32.totalorder %s27, %s43
    %p45 = scmp.eq.s32.totalorder %s19, 0
    %p46 = por %p44, %p45
    %s48 = sadd.s32 %s47, 1
    %p51 = scmp.eq.s32.totalorder %s13, 3
    %p52 = scmp.ne.s32.totalorder %s47, %s49
    %p53 = scmp.eq.s32.totalorder %s13, 0
    %p54 = por %p52, %p53
    %p55 = scmp.ne.s32.totalorder %s47, %s49
    %p56 = scmp.eq.s32.totalorder %s18, 3
    %p57 = por %p55, %p56
    %p58 = scmp.ne.s32.totalorder %s49, %s50
    %p59 = scmp.eq.s32.totalorder %s18, 0
    %p60 = por %p58, %p59
    %p61 = scmp.ne.s32.totalorder %s49, %s50
    %p62 = scmp.eq.s32.totalorder %s19, 3
    %p63 = por %p61, %p62
    %p65 = scmp.ne.s32.totalorder %s50, %s64
    %p66 = scmp.eq.s32.totalorder %s19, 0
    %p67 = por %p65, %p66
    %s69 = sadd.s32 %s68, 1
    %p72 = scmp.eq.s32.totalorder %s13, 3
    %p73 = scmp.ne.s32.totalorder %s68, %s70
    %p74 = scmp.eq.s32.totalorder %s13, 0
    %p75 = por %p73, %p74
    %p76 = scmp.ne.s32.totalorder %s68, %s70
    %p77 = scmp.eq.s32.totalorder %s18, 3
    %p78 = por %p76, %p77
    %p79 = scmp.ne.s32.totalorder %s70, %s71
    %p80 = scmp.eq.s32.totalorder %s18, 0
    %p81 = por %p79, %p80
    %p82 = scmp.ne.s32.totalorder %s70, %s71
    %p83 = scmp.eq.s32.totalorder %s19, 3
    %p84 = por %p82, %p83
    %p86 = scmp.ne.s32.totalorder %s71, %s85
    %p87 = scmp.eq.s32.totalorder %s19, 0
    %p88 = por %p86, %p87
    %s90 = sadd.s32 %s89, 1
    %p93 = scmp.eq.s32.totalorder %s13, 3
    %p94 = scmp.ne.s32.totalorder %s89, %s91
    %p95 = scmp.eq.s32.totalorder %s13, 0
    %p96 = por %p94, %p95
    %p97 = scmp.ne.s32.totalorder %s89, %s91
    %p98 = scmp.eq.s32.totalorder %s18, 3
    %p99 = por %p97, %p98
    %p100 = scmp.ne.s32.totalorder %s91, %s92
    %p101 = scmp.eq.s32.totalorder %s18, 0
    %p102 = por %p100, %p101
    %p103 = scmp.ne.s32.totalorder %s91, %s92
    %p104 = scmp.eq.s32.totalorder %s19, 3
    %p105 = por %p103, %p104
    %p107 = scmp.ne.s32.totalorder %s92, %s106
    %p108 = scmp.eq.s32.totalorder %s19, 0
    %p109 = por %p107, %p108
    %s111 = sadd.s32 %s110, 1
    %p114 = scmp.eq.s32.totalorder %s13, 3
    %p115 = scmp.ne.s32.totalorder %s110, %s112
    %p116 = scmp.eq.s32.totalorder %s13, 0
    %p117 = por %p115, %p116
    %p118 = scmp.ne.s32.totalorder %s110, %s112
    %p119 = scmp.eq.s32.totalorder %s18, 3
    %p120 = por %p118, %p119
    %p121 = scmp.ne.s32.totalorder %s112, %s113
    %p122 = scmp.eq.s32.totalorder %s18, 0
    %p123 = por %p121, %p122
    %p124 = scmp.ne.s32.totalorder %s112, %s113
    %p125 = scmp.eq.s32.totalorder %s19, 3
    %p126 = por %p124, %p125
    %p128 = scmp.ne.s32.totalorder %s113, %s127
    %p129 = scmp.eq.s32.totalorder %s19, 0
    %p130 = por %p128, %p129
    %s132 = sadd.s32 %s131, 1
    %p135 = scmp.eq.s32.totalorder %s13, 3
    %p136 = scmp.ne.s32.totalorder %s131, %s133
    %p137 = scmp.eq.s32.totalorder %s13, 0
    %p138 = por %p136, %p137
    %p139 = scmp.ne.s32.totalorder %s131, %s133
    %p140 = scmp.eq.s32.totalorder %s18, 3
    %p141 = por %p139, %p140
    %p142 = scmp.ne.s32.totalorder %s133, %s134
    %p143 = scmp.eq.s32.totalorder %s18, 0
    %p144 = por %p142, %p143
    %p145 = scmp.ne.s32.totalorder %s133, %s134
    %p146 = scmp.eq.s32.totalorder %s19, 3
    %p147 = por %p145, %p146
    %p149 = scmp.ne.s32.totalorder %s134, %s148
    %p150 = scmp.eq.s32.totalorder %s19, 0
    %p151 = por %p149, %p150
    %s153 = sadd.s32 %s152, 1
    %p156 = scmp.eq.s32.totalorder %s13, 3
    %p157 = scmp.ne.s32.totalorder %s152, %s154
    %p158 = scmp.eq.s32.totalorder %s13, 0
    %p159 = por %p157, %p158
    %p160 = scmp.ne.s32.totalorder %s152, %s154
    %p161 = scmp.eq.s32.totalorder %s18, 3
    %p162 = por %p160, %p161
    %p163 = scmp.ne.s32.totalorder %s154, %s155
    %p164 = scmp.eq.s32.totalorder %s18, 0
    %p165 = por %p163, %p164
    %p166 = scmp.ne.s32.totalorder %s154, %s155
    %p167 = scmp.eq.s32.totalorder %s19, 3
    %p168 = por %p166, %p167
    %p170 = scmp.ne.s32.totalorder %s155, %s169
    %p171 = scmp.eq.s32.totalorder %s19, 0
    %p172 = por %p170, %p171
    %s173 = ssub.s32 %s13, %s20
    %p174 = scmp.eq.s32.totalorder %s173, 0
    %s176 = sadd.s32 %s175, 1
    %s177 = scalar_select %p174, %s175, %s176
    %p180 = pneg %p174
    %p181 = scmp.eq.s32.totalorder %s13, 3
    %p182 = por %p180, %p181
    %p183 = scmp.ne.s32.totalorder %s175, %s178
    %p184 = scmp.eq.s32.totalorder %s13, 0
    %p185 = por %p183, %p184
    %p186 = scmp.ne.s32.totalorder %s175, %s178
    %p187 = scmp.eq.s32.totalorder %s18, 3
    %p188 = por %p186, %p187
    %p189 = scmp.ne.s32.totalorder %s178, %s179
    %p190 = scmp.eq.s32.totalorder %s18, 0
    %p191 = por %p189, %p190
    %p192 = scmp.ne.s32.totalorder %s178, %s179
    %p193 = scmp.eq.s32.totalorder %s19, 3
    %p194 = por %p192, %p193
    %p196 = scmp.ne.s32.totalorder %s179, %s195
    %p197 = scmp.eq.s32.totalorder %s19, 0
    %p198 = por %p196, %p197
    %p199 = scmp.le.s32.totalorder 1, %s13
    %p200 = scmp.lt.s32.totalorder %s13, 5
    %p201 = pnand %p199, %p200
    %p202 = pneg %p201
    // Predicated region
    $region9: #{net_forward.1} parent=5 // pred_check
      _
    $region10: #{net_forward.1} parent=5 // pred_check_branch
      %204 = sbr.rel (%p201) target = $region12
    $region11: #{net_forward.1} parent=5 // pred_region
      %s205 = ssub.s32 %s13, 1
      // Predicated region
      $region13: #{net_forward.1} parent=11 // pred_check
        %p206 = pneg %p60
      $region14: #{net_forward.1} parent=11 // pred_check_branch
        %208 = sbr.rel (%p206) target = $region16
      $region15: #{net_forward.1} parent=11 // pred_region
        _
      $region16: #{net_forward.1} parent=11 // pred_fallthru
        _
      // Predicated region
      $region17: #{net_forward.1} parent=11 // pred_check
        %p209 = pneg %p81
      $region18: #{net_forward.1} parent=11 // pred_check_branch
        %211 = sbr.rel (%p209) target = $region20
      $region19: #{net_forward.1} parent=11 // pred_region
        _
      $region20: #{net_forward.1} parent=11 // pred_fallthru
        _
      // Predicated region
      $region21: #{net_forward.1} parent=11 // pred_check
        %p212 = pneg %p102
      $region22: #{net_forward.1} parent=11 // pred_check_branch
        %214 = sbr.rel (%p212) target = $region24
      $region23: #{net_forward.1} parent=11 // pred_region
        _
      $region24: #{net_forward.1} parent=11 // pred_fallthru
        _
      // Predicated region
      $region25: #{net_forward.1} parent=11 // pred_check
        %p215 = pneg %p123
      $region26: #{net_forward.1} parent=11 // pred_check_branch
        %217 = sbr.rel (%p215) target = $region28
      $region27: #{net_forward.1} parent=11 // pred_region
        _
      $region28: #{net_forward.1} parent=11 // pred_fallthru
        _
      // Predicated region
      $region29: #{net_forward.1} parent=11 // pred_check
        %p218 = pneg %p144
      $region30: #{net_forward.1} parent=11 // pred_check_branch
        %220 = sbr.rel (%p218) target = $region32
      $region31: #{net_forward.1} parent=11 // pred_region
        _
      $region32: #{net_forward.1} parent=11 // pred_fallthru
        _
      // Predicated region
      $region33: #{net_forward.1} parent=11 // pred_check
        %p221 = pneg %p165
      $region34: #{net_forward.1} parent=11 // pred_check_branch
        %223 = sbr.rel (%p221) target = $region36
      $region35: #{net_forward.1} parent=11 // pred_region
        _
      $region36: #{net_forward.1} parent=11 // pred_fallthru
        _
    $region12: #{net_forward.1} parent=5 // pred_fallthru
      _
    %p224 = scmp.lt.s32.totalorder %s13, 4
    // Predicated region
    $region37: #{net_forward.1} parent=5 // pred_check
      %p225 = pneg %p224
    $region38: #{net_forward.1} parent=5 // pred_check_branch
      %227 = sbr.rel (%p225) target = $region40
    $region39: #{net_forward.1} parent=5 // pred_region
      // Predicated region
      $region41: #{net_forward.1} parent=39 // pred_check
        %p228 = pneg %p33
      $region42: #{net_forward.1} parent=39 // pred_check_branch
        %230 = sbr.rel (%p228) target = $region44
      $region43: #{net_forward.1} parent=39 // pred_region
        %p231 = scmp.lt.s32.totalorder %s13, 3
        %s232 = scalar_select %p231, %s13, 3
        %s233 = smul.addr %s232, 28
        %s234 = smul.addr %s233, 4
        %s235 = scalar_lea.vmem %s0, %s234
      $region44: #{net_forward.1} parent=39 // pred_fallthru
        _
    $region40: #{net_forward.1} parent=5 // pred_fallthru
      _
    %p236 = scmp.le.s32.totalorder 1, %s13
    %p237 = scmp.lt.s32.totalorder %s13, 5
    %p238 = pnand %p236, %p237
    %p239 = pneg %p238
    // Predicated region
    $region45: #{net_forward.1} parent=5 // pred_check
      _
    $region46: #{net_forward.1} parent=5 // pred_check_branch
      %241 = sbr.rel (%p238) target = $region48
    $region47: #{net_forward.1} parent=5 // pred_region
      %s242 = ssub.s32 %s13, 1
      %p243 = scmp.lt.s32.totalorder %s18, 3
      %s244 = scalar_select %p243, %s18, 3
      %s245 = smul.addr %s244, 28
      %s246 = smul.addr %s245, 4
      %s247 = scalar_lea.vmem %s0, %s246
      %p248 = pneg %p39
      %p249 = pneg %p36
      %p250 = pneg %p60
      %p251 = pneg %p57
      %p252 = pneg %p81
      %p253 = pneg %p78
      %p254 = pneg %p102
      %p255 = pneg %p99
      %p256 = pneg %p123
      %p257 = pneg %p120
      %p258 = pneg %p144
      %p259 = pneg %p141
      %p260 = pneg %p165
      %p261 = pneg %p162
      %p262 = pneg %p191
      %p263 = pneg %p188
      %p264 = scmp.lt.s32.totalorder %s18, 3
      %s265 = scalar_select %p264, %s18, 3
      %s266 = smul.addr %s265, 8
      %s267 = scalar_lea.vmem %s7, %s266
      %p268 = scmp.lt.s32.totalorder %s18, 3
      %s269 = scalar_select %p268, %s18, 3
      %s270 = smul.addr %s269, 28
      %s271 = smul.addr %s270, 4
      %s272 = scalar_lea.vmem %s0, %s271
      %p273 = scmp.lt.s32.totalorder %s18, 3
      %s274 = scalar_select %p273, %s18, 3
      %s275 = smul.addr %s274, 8
      %s276 = scalar_lea.vmem %s7, %s275
      %v278 = vld [vmem:[%s272] sm:$0xf]
      %v279 = vld [vmem:[%s272 + $0x4] sm:$0xf]
      %v280 = vld [vmem:[%s272 + $0x8] sm:$0xf]
      %v281 = vld [vmem:[%s272 + $0xc] sm:$0xf]
      %v282 = vld [vmem:[%s272 + $0x10] sm:$0xf]
      %v283 = vld [vmem:[%s272 + $0x14] sm:$0xf]
      %v284 = vld [vmem:[%s272 + $0x18] sm:$0xf]
      %v285 = vld [vmem:[%s272 + $0x1c] sm:$0xf]
      %v286 = vld [vmem:[%s272 + $0x20] sm:$0xf]
      %v287 = vld [vmem:[%s272 + $0x24] sm:$0xf]
      %v288 = vld [vmem:[%s272 + $0x28] sm:$0xf]
      %v289 = vld [vmem:[%s272 + $0x2c] sm:$0xf]
      %v290 = vld [vmem:[%s272 + $0x30] sm:$0xf]
      %v291 = vld [vmem:[%s272 + $0x34] sm:$0xf]
      %v292 = vld [vmem:[%s272 + $0x38] sm:$0xf]
      %v293 = vld [vmem:[%s272 + $0x3c] sm:$0xf]
      %v294 = vld [vmem:[%s272 + $0x40] sm:$0xf]
      %v295 = vld [vmem:[%s272 + $0x44] sm:$0xf]
      %v296 = vld [vmem:[%s272 + $0x48] sm:$0xf]
      %v297 = vld [vmem:[%s272 + $0x4c] sm:$0xf]
      %v298 = vld [vmem:[%s272 + $0x50] sm:$0xf]
      %v299 = vld [vmem:[%s272 + $0x54] sm:$0xf]
      %v300 = vld [vmem:[%s272 + $0x58] sm:$0xf]
      %v301 = vld [vmem:[%s272 + $0x5c] sm:$0xf]
      %v302 = vld [vmem:[%s272 + $0x60] sm:$0xf]
      %v303 = vld [vmem:[%s272 + $0x64] sm:$0xf]
      %v304 = vld [vmem:[%s272 + $0x68] sm:$0xf]
      %v305 = vld [vmem:[%s272 + $0x6c] sm:$0xf]
      %v330 = vunpack.c.l.b16 %v279
      %v331 = vunpack.c.l.b16 %v280
      %v332 = vunpack.c.l.b16 %v281
      %v333 = vunpack.c.l.b16 %v282
      %v334 = vunpack.c.l.b16 %v283
      %v335 = vunpack.c.l.b16 %v284
      %v336 = vunpack.c.l.b16 %v285
      %v337 = vunpack.c.l.b16 %v286
      %v338 = vunpack.c.l.b16 %v287
      %v339 = vunpack.c.l.b16 %v288
      %v340 = vunpack.c.l.b16 %v289
      %v341 = vunpack.c.l.b16 %v290
      %v342 = vunpack.c.l.b16 %v291
      %v343 = vunpack.c.l.b16 %v292
      %v344 = vunpack.c.l.b16 %v293
      %v345 = vunpack.c.l.b16 %v294
      %v346 = vunpack.c.l.b16 %v295
      %v347 = vunpack.c.l.b16 %v296
      %v348 = vunpack.c.l.b16 %v297
      %v349 = vunpack.c.l.b16 %v298
      %v350 = vunpack.c.l.b16 %v299
      %v351 = vunpack.c.l.b16 %v300
      %v352 = vunpack.c.l.b16 %v301
      %v353 = vunpack.c.l.b16 %v302
      %v354 = vpack.c.b16 %v330, %v330
      %v355 = vpack.c.b16 %v331, %v331
      %v356 = vpack.c.b16 %v332, %v332
      %v357 = vpack.c.b16 %v333, %v333
      %v358 = vpack.c.b16 %v334, %v334
      %v359 = vpack.c.b16 %v335, %v335
      %v360 = vpack.c.b16 %v336, %v336
      %v361 = vpack.c.b16 %v337, %v337
      %v362 = vpack.c.b16 %v338, %v338
      %v363 = vpack.c.b16 %v339, %v339
      %v364 = vpack.c.b16 %v340, %v340
      %v365 = vpack.c.b16 %v341, %v341
      %v366 = vpack.c.b16 %v342, %v342
      %v367 = vpack.c.b16 %v343, %v343
      %v368 = vpack.c.b16 %v344, %v344
      %v369 = vpack.c.b16 %v345, %v345
      %v370 = vpack.c.b16 %v346, %v346
      %v371 = vpack.c.b16 %v347, %v347
      %v372 = vpack.c.b16 %v348, %v348
      %v373 = vpack.c.b16 %v349, %v349
      %v374 = vpack.c.b16 %v350, %v350
      %v375 = vpack.c.b16 %v351, %v351
      %v376 = vpack.c.b16 %v352, %v352
      %v377 = vpack.c.b16 %v353, %v353
      %378 = vrot.lane.b32.xlu0 %v354, 28
      %v379 = vpop.permute.xlu0 %378
      %380 = vrot.lane.b32.xlu0 %v355, 28
      %v381 = vpop.permute.xlu0 %380
      %382 = vrot.lane.b32.xlu0 %v356, 28
      %v383 = vpop.permute.xlu0 %382
      %384 = vrot.lane.b32.xlu0 %v357, 28
      %v385 = vpop.permute.xlu0 %384
      %386 = vrot.lane.b32.xlu0 %v358, 28
      %v387 = vpop.permute.xlu0 %386
      %388 = vrot.lane.b32.xlu0 %v359, 28
      %v389 = vpop.permute.xlu0 %388
      %390 = vrot.lane.b32.xlu0 %v360, 28
      %v391 = vpop.permute.xlu0 %390
      %392 = vrot.lane.b32.xlu0 %v361, 28
      %v393 = vpop.permute.xlu0 %392
      %394 = vrot.lane.b32.xlu0 %v362, 28
      %v395 = vpop.permute.xlu0 %394
      %396 = vrot.lane.b32.xlu0 %v363, 28
      %v397 = vpop.permute.xlu0 %396
      %398 = vrot.lane.b32.xlu0 %v364, 28
      %v399 = vpop.permute.xlu0 %398
      %400 = vrot.lane.b32.xlu0 %v365, 28
      %v401 = vpop.permute.xlu0 %400
      %402 = vrot.lane.b32.xlu0 %v366, 28
      %v403 = vpop.permute.xlu0 %402
      %404 = vrot.lane.b32.xlu0 %v367, 28
      %v405 = vpop.permute.xlu0 %404
      %406 = vrot.lane.b32.xlu0 %v368, 28
      %v407 = vpop.permute.xlu0 %406
      %408 = vrot.lane.b32.xlu0 %v369, 28
      %v409 = vpop.permute.xlu0 %408
      %410 = vrot.lane.b32.xlu0 %v370, 28
      %v411 = vpop.permute.xlu0 %410
      %412 = vrot.lane.b32.xlu0 %v371, 28
      %v413 = vpop.permute.xlu0 %412
      %414 = vrot.lane.b32.xlu0 %v372, 28
      %v415 = vpop.permute.xlu0 %414
      %416 = vrot.lane.b32.xlu0 %v373, 28
      %v417 = vpop.permute.xlu0 %416
      %418 = vrot.lane.b32.xlu0 %v374, 28
      %v419 = vpop.permute.xlu0 %418
      %420 = vrot.lane.b32.xlu0 %v375, 28
      %v421 = vpop.permute.xlu0 %420
      %422 = vrot.lane.b32.xlu0 %v376, 28
      %v423 = vpop.permute.xlu0 %422
      %424 = vrot.lane.b32.xlu0 %v377, 28
      %v425 = vpop.permute.xlu0 %424
      %v427 = vunpack.c.l.b16 %v303
      %v428 = vpack.c.b16 %v427, %v427
      %429 = vrot.lane.b32.xlu0 %v355, 56
      %v430 = vpop.permute.xlu0 %429
      %431 = vrot.lane.b32.xlu0 %v356, 56
      %v432 = vpop.permute.xlu0 %431
      %433 = vrot.lane.b32.xlu0 %v357, 56
      %v434 = vpop.permute.xlu0 %433
      %435 = vrot.lane.b32.xlu0 %v358, 56
      %v436 = vpop.permute.xlu0 %435
      %437 = vrot.lane.b32.xlu0 %v359, 56
      %v438 = vpop.permute.xlu0 %437
      %439 = vrot.lane.b32.xlu0 %v360, 56
      %v440 = vpop.permute.xlu0 %439
      %441 = vrot.lane.b32.xlu0 %v361, 56
      %v442 = vpop.permute.xlu0 %441
      %443 = vrot.lane.b32.xlu0 %v362, 56
      %v444 = vpop.permute.xlu0 %443
      %445 = vrot.lane.b32.xlu0 %v363, 56
      %v446 = vpop.permute.xlu0 %445
      %447 = vrot.lane.b32.xlu0 %v364, 56
      %v448 = vpop.permute.xlu0 %447
      %449 = vrot.lane.b32.xlu0 %v365, 56
      %v450 = vpop.permute.xlu0 %449
      %451 = vrot.lane.b32.xlu0 %v366, 56
      %v452 = vpop.permute.xlu0 %451
      %453 = vrot.lane.b32.xlu0 %v367, 56
      %v454 = vpop.permute.xlu0 %453
      %455 = vrot.lane.b32.xlu0 %v368, 56
      %v456 = vpop.permute.xlu0 %455
      %457 = vrot.lane.b32.xlu0 %v369, 56
      %v458 = vpop.permute.xlu0 %457
      %459 = vrot.lane.b32.xlu0 %v370, 56
      %v460 = vpop.permute.xlu0 %459
      %461 = vrot.lane.b32.xlu0 %v371, 56
      %v462 = vpop.permute.xlu0 %461
      %463 = vrot.lane.b32.xlu0 %v372, 56
      %v464 = vpop.permute.xlu0 %463
      %465 = vrot.lane.b32.xlu0 %v373, 56
      %v466 = vpop.permute.xlu0 %465
      %467 = vrot.lane.b32.xlu0 %v374, 56
      %v468 = vpop.permute.xlu0 %467
      %469 = vrot.lane.b32.xlu0 %v375, 56
      %v470 = vpop.permute.xlu0 %469
      %471 = vrot.lane.b32.xlu0 %v376, 56
      %v472 = vpop.permute.xlu0 %471
      %473 = vrot.lane.b32.xlu0 %v377, 56
      %v474 = vpop.permute.xlu0 %473
      %475 = vrot.lane.b32.xlu0 %v428, 56
      %v476 = vpop.permute.xlu0 %475
      %v478 = vunpack.c.l.b16 %v304
      %v479 = vpack.c.b16 %v478, %v478
      %480 = vrot.lane.b32.xlu0 %v356, 84
      %v481 = vpop.permute.xlu0 %480
      %482 = vrot.lane.b32.xlu0 %v357, 84
      %v483 = vpop.permute.xlu0 %482
      %484 = vrot.lane.b32.xlu0 %v358, 84
      %v485 = vpop.permute.xlu0 %484
      %486 = vrot.lane.b32.xlu0 %v359, 84
      %v487 = vpop.permute.xlu0 %486
      %488 = vrot.lane.b32.xlu0 %v360, 84
      %v489 = vpop.permute.xlu0 %488
      %490 = vrot.lane.b32.xlu0 %v361, 84
      %v491 = vpop.permute.xlu0 %490
      %492 = vrot.lane.b32.xlu0 %v362, 84
      %v493 = vpop.permute.xlu0 %492
      %494 = vrot.lane.b32.xlu0 %v363, 84
      %v495 = vpop.permute.xlu0 %494
      %496 = vrot.lane.b32.xlu0 %v364, 84
      %v497 = vpop.permute.xlu0 %496
      %498 = vrot.lane.b32.xlu0 %v365, 84
      %v499 = vpop.permute.xlu0 %498
      %500 = vrot.lane.b32.xlu0 %v366, 84
      %v501 = vpop.permute.xlu0 %500
      %502 = vrot.lane.b32.xlu0 %v367, 84
      %v503 = vpop.permute.xlu0 %502
      %504 = vrot.lane.b32.xlu0 %v368, 84
      %v505 = vpop.permute.xlu0 %504
      %506 = vrot.lane.b32.xlu0 %v369, 84
      %v507 = vpop.permute.xlu0 %506
      %508 = vrot.lane.b32.xlu0 %v370, 84
      %v509 = vpop.permute.xlu0 %508
      %510 = vrot.lane.b32.xlu0 %v371, 84
      %v511 = vpop.permute.xlu0 %510
      %512 = vrot.lane.b32.xlu0 %v372, 84
      %v513 = vpop.permute.xlu0 %512
      %514 = vrot.lane.b32.xlu0 %v373, 84
      %v515 = vpop.permute.xlu0 %514
      %516 = vrot.lane.b32.xlu0 %v374, 84
      %v517 = vpop.permute.xlu0 %516
      %518 = vrot.lane.b32.xlu0 %v375, 84
      %v519 = vpop.permute.xlu0 %518
      %520 = vrot.lane.b32.xlu0 %v376, 84
      %v521 = vpop.permute.xlu0 %520
      %522 = vrot.lane.b32.xlu0 %v377, 84
      %v523 = vpop.permute.xlu0 %522
      %524 = vrot.lane.b32.xlu0 %v428, 84
      %v525 = vpop.permute.xlu0 %524
      %526 = vrot.lane.b32.xlu0 %v479, 84
      %v527 = vpop.permute.xlu0 %526
      %v529 = vunpack.c.l.b16 %v305
      %v530 = vpack.c.b16 %v529, %v529
      %531 = vrot.lane.b32.xlu0 %v357, 112
      %v532 = vpop.permute.xlu0 %531
      %533 = vrot.lane.b32.xlu0 %v358, 112
      %v534 = vpop.permute.xlu0 %533
      %535 = vrot.lane.b32.xlu0 %v359, 112
      %v536 = vpop.permute.xlu0 %535
      %537 = vrot.lane.b32.xlu0 %v360, 112
      %v538 = vpop.permute.xlu0 %537
      %539 = vrot.lane.b32.xlu0 %v361, 112
      %v540 = vpop.permute.xlu0 %539
      %541 = vrot.lane.b32.xlu0 %v362, 112
      %v542 = vpop.permute.xlu0 %541
      %543 = vrot.lane.b32.xlu0 %v363, 112
      %v544 = vpop.permute.xlu0 %543
      %545 = vrot.lane.b32.xlu0 %v364, 112
      %v546 = vpop.permute.xlu0 %545
      %547 = vrot.lane.b32.xlu0 %v365, 112
      %v548 = vpop.permute.xlu0 %547
      %549 = vrot.lane.b32.xlu0 %v366, 112
      %v550 = vpop.permute.xlu0 %549
      %551 = vrot.lane.b32.xlu0 %v367, 112
      %v552 = vpop.permute.xlu0 %551
      %553 = vrot.lane.b32.xlu0 %v368, 112
      %v554 = vpop.permute.xlu0 %553
      %555 = vrot.lane.b32.xlu0 %v369, 112
      %v556 = vpop.permute.xlu0 %555
      %557 = vrot.lane.b32.xlu0 %v370, 112
      %v558 = vpop.permute.xlu0 %557
      %559 = vrot.lane.b32.xlu0 %v371, 112
      %v560 = vpop.permute.xlu0 %559
      %561 = vrot.lane.b32.xlu0 %v372, 112
      %v562 = vpop.permute.xlu0 %561
      %563 = vrot.lane.b32.xlu0 %v373, 112
      %v564 = vpop.permute.xlu0 %563
      %565 = vrot.lane.b32.xlu0 %v374, 112
      %v566 = vpop.permute.xlu0 %565
      %567 = vrot.lane.b32.xlu0 %v375, 112
      %v568 = vpop.permute.xlu0 %567
      %569 = vrot.lane.b32.xlu0 %v376, 112
      %v570 = vpop.permute.xlu0 %569
      %571 = vrot.lane.b32.xlu0 %v377, 112
      %v572 = vpop.permute.xlu0 %571
      %573 = vrot.lane.b32.xlu0 %v428, 112
      %v574 = vpop.permute.xlu0 %573
      %575 = vrot.lane.b32.xlu0 %v479, 112
      %v576 = vpop.permute.xlu0 %575
      %577 = vrot.lane.b32.xlu0 %v530, 112
      %v578 = vpop.permute.xlu0 %577
      %vm579 = vcmask 228352
      %v582 = vsel %vm579, %v278, %v379
      %v585 = vsel %vm579, %v279, %v381
      %v588 = vsel %vm579, %v280, %v383
      %v591 = vsel %vm579, %v281, %v385
      %v594 = vsel %vm579, %v282, %v387
      %v597 = vsel %vm579, %v283, %v389
      %v600 = vsel %vm579, %v284, %v391
      %v603 = vsel %vm579, %v285, %v393
      %v606 = vsel %vm579, %v286, %v395
      %v609 = vsel %vm579, %v287, %v397
      %v612 = vsel %vm579, %v288, %v399
      %v615 = vsel %vm579, %v289, %v401
      %v618 = vsel %vm579, %v290, %v403
      %v621 = vsel %vm579, %v291, %v405
      %v624 = vsel %vm579, %v292, %v407
      %v627 = vsel %vm579, %v293, %v409
      %v630 = vsel %vm579, %v294, %v411
      %v633 = vsel %vm579, %v295, %v413
      %v636 = vsel %vm579, %v296, %v415
      %v639 = vsel %vm579, %v297, %v417
      %v642 = vsel %vm579, %v298, %v419
      %v645 = vsel %vm579, %v299, %v421
      %v648 = vsel %vm579, %v300, %v423
      %v651 = vsel %vm579, %v301, %v425
      %vm652 = vcmask 457728
      %v654 = vsel %vm652, %v582, %v430
      %v656 = vsel %vm652, %v585, %v432
      %v658 = vsel %vm652, %v588, %v434
      %v660 = vsel %vm652, %v591, %v436
      %v662 = vsel %vm652, %v594, %v438
      %v664 = vsel %vm652, %v597, %v440
      %v666 = vsel %vm652, %v600, %v442
      %v668 = vsel %vm652, %v603, %v444
      %v670 = vsel %vm652, %v606, %v446
      %v672 = vsel %vm652, %v609, %v448
      %v674 = vsel %vm652, %v612, %v450
      %v676 = vsel %vm652, %v615, %v452
      %v678 = vsel %vm652, %v618, %v454
      %v680 = vsel %vm652, %v621, %v456
      %v682 = vsel %vm652, %v624, %v458
      %v684 = vsel %vm652, %v627, %v460
      %v686 = vsel %vm652, %v630, %v462
      %v688 = vsel %vm652, %v633, %v464
      %v690 = vsel %vm652, %v636, %v466
      %v692 = vsel %vm652, %v639, %v468
      %v694 = vsel %vm652, %v642, %v470
      %v696 = vsel %vm652, %v645, %v472
      %v698 = vsel %vm652, %v648, %v474
      %v700 = vsel %vm652, %v651, %v476
      %vm701 = vcmask 687104
      %v703 = vsel %vm701, %v654, %v481
      %v705 = vsel %vm701, %v656, %v483
      %v707 = vsel %vm701, %v658, %v485
      %v709 = vsel %vm701, %v660, %v487
      %v711 = vsel %vm701, %v662, %v489
      %v713 = vsel %vm701, %v664, %v491
      %v715 = vsel %vm701, %v666, %v493
      %v717 = vsel %vm701, %v668, %v495
      %v719 = vsel %vm701, %v670, %v497
      %v721 = vsel %vm701, %v672, %v499
      %v723 = vsel %vm701, %v674, %v501
      %v725 = vsel %vm701, %v676, %v503
      %v727 = vsel %vm701, %v678, %v505
      %v729 = vsel %vm701, %v680, %v507
      %v731 = vsel %vm701, %v682, %v509
      %v733 = vsel %vm701, %v684, %v511
      %v735 = vsel %vm701, %v686, %v513
      %v737 = vsel %vm701, %v688, %v515
      %v739 = vsel %vm701, %v690, %v517
      %v741 = vsel %vm701, %v692, %v519
      %v743 = vsel %vm701, %v694, %v521
      %v745 = vsel %vm701, %v696, %v523
      %v747 = vsel %vm701, %v698, %v525
      %v749 = vsel %vm701, %v700, %v527
      %vm750 = vcmask 916480
      %v752 = vsel %vm750, %v703, %v532
      %v754 = vsel %vm750, %v705, %v534
      %v756 = vsel %vm750, %v707, %v536
      %v758 = vsel %vm750, %v709, %v538
      %v760 = vsel %vm750, %v711, %v540
      %v762 = vsel %vm750, %v713, %v542
      %v764 = vsel %vm750, %v715, %v544
      %v766 = vsel %vm750, %v717, %v546
      %v768 = vsel %vm750, %v719, %v548
      %v770 = vsel %vm750, %v721, %v550
      %v772 = vsel %vm750, %v723, %v552
      %v774 = vsel %vm750, %v725, %v554
      %v776 = vsel %vm750, %v727, %v556
      %v778 = vsel %vm750, %v729, %v558
      %v780 = vsel %vm750, %v731, %v560
      %v782 = vsel %vm750, %v733, %v562
      %v784 = vsel %vm750, %v735, %v564
      %v786 = vsel %vm750, %v737, %v566
      %v788 = vsel %vm750, %v739, %v568
      %v790 = vsel %vm750, %v741, %v570
      %v792 = vsel %vm750, %v743, %v572
      %v794 = vsel %vm750, %v745, %v574
      %v796 = vsel %vm750, %v747, %v576
      %v798 = vsel %vm750, %v749, %v578
      %v823 = vunpack.c.l.b16 %v752
      %v824 = vunpack.c.l.b16 %v532
      %v825 = vunpack.c.l.b16 %v754
      %v826 = vunpack.c.l.b16 %v534
      %v827 = vunpack.c.l.b16 %v756
      %v828 = vunpack.c.l.b16 %v536
      %v829 = vunpack.c.l.b16 %v758
      %v830 = vunpack.c.l.b16 %v538
      %v831 = vunpack.c.l.b16 %v760
      %v832 = vunpack.c.l.b16 %v540
      %v833 = vunpack.c.l.b16 %v762
      %v834 = vunpack.c.l.b16 %v542
      %v835 = vunpack.c.l.b16 %v764
      %v836 = vunpack.c.l.b16 %v544
      %v837 = vunpack.c.l.b16 %v766
      %v838 = vunpack.c.l.b16 %v546
      %v839 = vunpack.c.l.b16 %v768
      %v840 = vunpack.c.l.b16 %v548
      %v841 = vunpack.c.l.b16 %v770
      %v842 = vunpack.c.l.b16 %v550
      %v843 = vunpack.c.l.b16 %v772
      %v844 = vunpack.c.l.b16 %v552
      %v845 = vunpack.c.l.b16 %v774
      %v846 = vunpack.c.l.b16 %v554
      %v847 = vunpack.c.l.b16 %v776
      %v848 = vunpack.c.l.b16 %v556
      %v849 = vunpack.c.l.b16 %v778
      %v850 = vunpack.c.l.b16 %v558
      %v851 = vunpack.c.l.b16 %v780
      %v852 = vunpack.c.l.b16 %v560
      %v853 = vunpack.c.l.b16 %v782
      %v854 = vunpack.c.l.b16 %v562
      %v855 = vunpack.c.l.b16 %v784
      %v856 = vunpack.c.l.b16 %v564
      %v857 = vunpack.c.l.b16 %v786
      %v858 = vunpack.c.l.b16 %v566
      %v859 = vunpack.c.l.b16 %v788
      %v860 = vunpack.c.l.b16 %v568
      %v861 = vunpack.c.l.b16 %v790
      %v862 = vunpack.c.l.b16 %v570
      %v863 = vunpack.c.l.b16 %v792
      %v864 = vunpack.c.l.b16 %v572
      %v865 = vunpack.c.l.b16 %v794
      %v866 = vunpack.c.l.b16 %v574
      %v867 = vunpack.c.l.b16 %v796
      %v868 = vunpack.c.l.b16 %v576
      %v869 = vunpack.c.l.b16 %v798
      %v870 = vunpack.c.l.b16 %v578
      %v871 = vld [vmem:[%s1] sm:$0xff]
      %v872 = vld [vmem:[%s1 + $0x8] sm:$0xff]
      %v873 = vld [vmem:[%s1 + $0x10] sm:$0xff]
      %v874 = vld [vmem:[%s1 + $0x18] sm:$0xff]
      %v875 = vld [vmem:[%s1 + $0x20] sm:$0xff]
      %v876 = vld [vmem:[%s1 + $0x28] sm:$0xff]
      %v877 = vld [vmem:[%s1 + $0x30] sm:$0xff]
      %v878 = vld [vmem:[%s1 + $0x38] sm:$0xff]
      %v879 = vld [vmem:[%s1 + $0x40] sm:$0xff]
      %v880 = vld [vmem:[%s1 + $0x48] sm:$0xff]
      %v881 = vld [vmem:[%s1 + $0x50] sm:$0xff]
      %v882 = vld [vmem:[%s1 + $0x58] sm:$0xff]
      %v883 = vld [vmem:[%s1 + $0x60] sm:$0xff]
      %v884 = vld [vmem:[%s1 + $0x68] sm:$0xff]
      %v885 = vld [vmem:[%s1 + $0x70] sm:$0xff]
      %v886 = vld [vmem:[%s1 + $0x78] sm:$0xff]
      %v887 = vld [vmem:[%s1 + $0x80] sm:$0xff]
      %v888 = vld [vmem:[%s1 + $0x88] sm:$0x33]
      %v889 = vld [vmem:[%s2] sm:$0x3]
      %v891 = vperm.slane %v889, 0
      %v892 = vperm.slane %v889, 1
      %v895 = vpack.c.b16 %v825, %v823
      %v896 = vpack.c.b16 %v826, %v824
      %v897 = vpack.c.b16 %v829, %v827
      %v898 = vpack.c.b16 %v830, %v828
      %v899 = vpack.c.b16 %v833, %v831
      %v900 = vpack.c.b16 %v834, %v832
      %v901 = vpack.c.b16 %v837, %v835
      %v902 = vpack.c.b16 %v838, %v836
      %v903 = vpack.c.b16 %v841, %v839
      %v904 = vpack.c.b16 %v842, %v840
      %v905 = vpack.c.b16 %v845, %v843
      %v906 = vpack.c.b16 %v846, %v844
      %v907 = vpack.c.b16 %v849, %v847
      %v908 = vpack.c.b16 %v850, %v848
      %v909 = vpack.c.b16 %v853, %v851
      %v910 = vpack.c.b16 %v854, %v852
      %v911 = vpack.c.b16 %v857, %v855
      %v912 = vpack.c.b16 %v858, %v856
      %v913 = vpack.c.b16 %v861, %v859
      %v914 = vpack.c.b16 %v862, %v860
      %v915 = vpack.c.b16 %v865, %v863
      %v916 = vpack.c.b16 %v866, %v864
      %v917 = vpack.c.b16 %v869, %v867
      %v918 = vpack.c.b16 %v870, %v868
      %v949 = vunpack.c.l.b16 %v871
      %v950 = vunpack.c.h.b16 %v871
      %v951 = vunpack.c.l.b16 %v872
      %v952 = vunpack.c.h.b16 %v872
      %v953 = vunpack.c.l.b16 %v873
      %v954 = vunpack.c.h.b16 %v873
      %v955 = vunpack.c.l.b16 %v874
      %v956 = vunpack.c.h.b16 %v874
      %v957 = vunpack.c.l.b16 %v875
      %v958 = vunpack.c.h.b16 %v875
      %v959 = vunpack.c.l.b16 %v876
      %v960 = vunpack.c.h.b16 %v876
      %v961 = vunpack.c.l.b16 %v877
      %v962 = vunpack.c.h.b16 %v877
      %v963 = vunpack.c.l.b16 %v878
      %v964 = vunpack.c.h.b16 %v878
      %v965 = vunpack.c.l.b16 %v879
      %v966 = vunpack.c.h.b16 %v879
      %v967 = vunpack.c.l.b16 %v880
      %v968 = vunpack.c.h.b16 %v880
      %v969 = vunpack.c.l.b16 %v881
      %v970 = vunpack.c.h.b16 %v881
      %v971 = vunpack.c.l.b16 %v882
      %v972 = vunpack.c.h.b16 %v882
      %v973 = vunpack.c.l.b16 %v883
      %v974 = vunpack.c.h.b16 %v883
      %v975 = vunpack.c.l.b16 %v884
      %v976 = vunpack.c.h.b16 %v884
      %v977 = vunpack.c.l.b16 %v885
      %v978 = vunpack.c.h.b16 %v885
      %v979 = vunpack.c.l.b16 %v886
      %v980 = vunpack.c.h.b16 %v886
      %v981 = vunpack.c.l.b16 %v887
      %v982 = vunpack.c.h.b16 %v887
      %v983 = vunpack.c.l.b16 %v888
      %v984 = vunpack.c.h.b16 %v888
      %v985 = vpack.c.b16 %v951, %v949
      %v986 = vpack.c.b16 %v952, %v950
      %v987 = vpack.c.b16 %v955, %v953
      %v988 = vpack.c.b16 %v956, %v954
      %v989 = vpack.c.b16 %v959, %v957
      %v990 = vpack.c.b16 %v960, %v958
      %v991 = vpack.c.b16 %v963, %v961
      %v992 = vpack.c.b16 %v964, %v962
      %v993 = vpack.c.b16 %v967, %v965
      %v994 = vpack.c.b16 %v968, %v966
      %v995 = vpack.c.b16 %v971, %v969
      %v996 = vpack.c.b16 %v972, %v970
      %v997 = vpack.c.b16 %v975, %v973
      %v998 = vpack.c.b16 %v976, %v974
      %v999 = vpack.c.b16 %v979, %v977
      %v1000 = vpack.c.b16 %v980, %v978
      %v1001 = vpack.c.b16 %v983, %v981
      %v1002 = vpack.c.b16 %v984, %v982
      %vm1019 = vcmask 97280
      %v1021 = vsel %vm1019, %v896, 0
      %v1024 = vsel %vm1019, %v898, 0
      %v1027 = vsel %vm1019, %v900, 0
      %v1030 = vsel %vm1019, %v902, 0
      %v1033 = vsel %vm1019, %v904, 0
      %v1036 = vsel %vm1019, %v906, 0
      %v1039 = vsel %vm1019, %v908, 0
      %v1042 = vsel %vm1019, %v910, 0
      %v1045 = vsel %vm1019, %v912, 0
      %v1048 = vsel %vm1019, %v914, 0
      %v1051 = vsel %vm1019, %v916, 0
      %v1054 = vsel %vm1019, %v918, 0
      %vm1056 = vcmask 1045504
      %v1058 = vsel %vm1056, %v1001, 0
      %v1061 = vsel %vm1056, %v1002, 0
      %1063 = vmatpush.bf16.msra.mxu0 %v999
      %1064 = vmatpush.bf16.msra.mxu0 %v997
      %1065 = vmatpush.bf16.msra.mxu0 %v995
      %1066 = vmatpush.bf16.msra.mxu0 %v993
      %1067 = vmatpush.bf16.msra.mxu0 %v991
      %1068 = vmatpush.bf16.msra.mxu0 %v989
      %1069 = vmatpush.bf16.msra.mxu0 %v987
      %1070 = vmatpush.bf16.msra.mxu0 %v985
      %1071 = vmatmul.bf16.gmra.mxu0 %v895
      %v1072 = vpop.f32.mrf.mxu0
      %v1073 = vadd.f32 %v891, %v1072
      %v1074 = vpop.f32.mrf.mxu0
      %v1075 = vadd.f32 %v891, %v1074
      %1076 = vmatmul.bf16.gmra.mxu0 %v897
      %v1077 = vpop.f32.mrf.mxu0
      %v1078 = vadd.f32 %v891, %v1077
      %v1079 = vpop.f32.mrf.mxu0
      %v1080 = vadd.f32 %v891, %v1079
      %1081 = vmatmul.bf16.gmra.mxu0 %v899
      %v1082 = vpop.f32.mrf.mxu0
      %v1083 = vadd.f32 %v891, %v1082
      %v1084 = vpop.f32.mrf.mxu0
      %v1085 = vadd.f32 %v891, %v1084
      %1086 = vmatmul.bf16.gmra.mxu0 %v901
      %v1087 = vpop.f32.mrf.mxu0
      %v1088 = vadd.f32 %v891, %v1087
      %v1089 = vpop.f32.mrf.mxu0
      %v1090 = vadd.f32 %v891, %v1089
      %1091 = vmatmul.bf16.gmra.mxu0 %v903
      %v1092 = vpop.f32.mrf.mxu0
      %v1093 = vadd.f32 %v891, %v1092
      %v1094 = vpop.f32.mrf.mxu0
      %v1095 = vadd.f32 %v891, %v1094
      %1096 = vmatmul.bf16.gmra.mxu0 %v905
      %v1097 = vpop.f32.mrf.mxu0
      %v1098 = vadd.f32 %v891, %v1097
      %v1099 = vpop.f32.mrf.mxu0
      %v1100 = vadd.f32 %v891, %v1099
      %1101 = vmatmul.bf16.gmra.mxu0 %v907
      %v1102 = vpop.f32.mrf.mxu0
      %v1103 = vadd.f32 %v891, %v1102
      %v1104 = vpop.f32.mrf.mxu0
      %v1105 = vadd.f32 %v891, %v1104
      %1106 = vmatmul.bf16.gmra.mxu0 %v909
      %v1107 = vpop.f32.mrf.mxu0
      %v1108 = vadd.f32 %v891, %v1107
      %v1109 = vpop.f32.mrf.mxu0
      %v1110 = vadd.f32 %v891, %v1109
      %1111 = vmatmul.bf16.gmra.mxu0 %v911
      %v1112 = vpop.f32.mrf.mxu0
      %v1113 = vadd.f32 %v891, %v1112
      %v1114 = vpop.f32.mrf.mxu0
      %v1115 = vadd.f32 %v891, %v1114
      %1116 = vmatmul.bf16.gmra.mxu0 %v913
      %v1117 = vpop.f32.mrf.mxu0
      %v1118 = vadd.f32 %v891, %v1117
      %v1119 = vpop.f32.mrf.mxu0
      %v1120 = vadd.f32 %v891, %v1119
      %1121 = vmatmul.bf16.gmra.mxu0 %v915
      %v1122 = vpop.f32.mrf.mxu0
      %v1123 = vadd.f32 %v891, %v1122
      %v1124 = vpop.f32.mrf.mxu0
      %v1125 = vadd.f32 %v891, %v1124
      %1126 = vmatmul.bf16.gmra.mxu0 %v917
      %v1127 = vpop.f32.mrf.mxu0
      %v1128 = vadd.f32 %v891, %v1127
      %v1129 = vpop.f32.mrf.mxu0
      %v1130 = vadd.f32 %v891, %v1129
      %1131 = vdwg.mxu0
      %1132 = vmatpush.bf16.msra.mxu0 0
      %1133 = vmatpush.bf16.msra.mxu0 0
      %1134 = vmatpush.bf16.msra.mxu0 0
      %1135 = vmatpush.bf16.msra.mxu0 0
      %1136 = vmatpush.bf16.msra.mxu0 0
      %1137 = vmatpush.bf16.msra.mxu0 0
      %1138 = vmatpush.bf16.msra.mxu0 0
      %1139 = vmatpush.bf16.msra.mxu0 %v1058
      %1140 = vmatmul.bf16.gmra.mxu0 %v1021
      %v1141 = vpop.f32.mrf.mxu0
      %v1142 = vadd.f32 %v1073, %v1141
      %v1143 = vpop.f32.mrf.mxu0
      %v1144 = vadd.f32 %v1075, %v1143
      %1145 = vmatmul.bf16.gmra.mxu0 %v1024
      %v1146 = vpop.f32.mrf.mxu0
      %v1147 = vadd.f32 %v1078, %v1146
      %v1148 = vpop.f32.mrf.mxu0
      %v1149 = vadd.f32 %v1080, %v1148
      %1150 = vmatmul.bf16.gmra.mxu0 %v1027
      %v1151 = vpop.f32.mrf.mxu0
      %v1152 = vadd.f32 %v1083, %v1151
      %v1153 = vpop.f32.mrf.mxu0
      %v1154 = vadd.f32 %v1085, %v1153
      %1155 = vmatmul.bf16.gmra.mxu0 %v1030
      %v1156 = vpop.f32.mrf.mxu0
      %v1157 = vadd.f32 %v1088, %v1156
      %v1158 = vpop.f32.mrf.mxu0
      %v1159 = vadd.f32 %v1090, %v1158
      %1160 = vmatmul.bf16.gmra.mxu0 %v1033
      %v1161 = vpop.f32.mrf.mxu0
      %v1162 = vadd.f32 %v1093, %v1161
      %v1163 = vpop.f32.mrf.mxu0
      %v1164 = vadd.f32 %v1095, %v1163
      %1165 = vmatmul.bf16.gmra.mxu0 %v1036
      %v1166 = vpop.f32.mrf.mxu0
      %v1167 = vadd.f32 %v1098, %v1166
      %v1168 = vpop.f32.mrf.mxu0
      %v1169 = vadd.f32 %v1100, %v1168
      %1170 = vmatmul.bf16.gmra.mxu0 %v1039
      %v1171 = vpop.f32.mrf.mxu0
      %v1172 = vadd.f32 %v1103, %v1171
      %v1173 = vpop.f32.mrf.mxu0
      %v1174 = vadd.f32 %v1105, %v1173
      %1175 = vmatmul.bf16.gmra.mxu0 %v1042
      %v1176 = vpop.f32.mrf.mxu0
      %v1177 = vadd.f32 %v1108, %v1176
      %v1178 = vpop.f32.mrf.mxu0
      %v1179 = vadd.f32 %v1110, %v1178
      %1180 = vmatmul.bf16.gmra.mxu0 %v1045
      %v1181 = vpop.f32.mrf.mxu0
      %v1182 = vadd.f32 %v1113, %v1181
      %v1183 = vpop.f32.mrf.mxu0
      %v1184 = vadd.f32 %v1115, %v1183
      %1185 = vmatmul.bf16.gmra.mxu0 %v1048
      %v1186 = vpop.f32.mrf.mxu0
      %v1187 = vadd.f32 %v1118, %v1186
      %v1188 = vpop.f32.mrf.mxu0
      %v1189 = vadd.f32 %v1120, %v1188
      %1190 = vmatmul.bf16.gmra.mxu0 %v1051
      %v1191 = vpop.f32.mrf.mxu0
      %v1192 = vadd.f32 %v1123, %v1191
      %v1193 = vpop.f32.mrf.mxu0
      %v1194 = vadd.f32 %v1125, %v1193
      %1195 = vmatmul.bf16.gmra.mxu0 %v1054
      %v1196 = vpop.f32.mrf.mxu0
      %v1197 = vadd.f32 %v1128, %v1196
      %v1198 = vpop.f32.mrf.mxu0
      %v1199 = vadd.f32 %v1130, %v1198
      %1200 = vdwg.mxu0
      %1201 = vmatpush.bf16.msra.mxu0 %v1000
      %1202 = vmatpush.bf16.msra.mxu0 %v998
      %1203 = vmatpush.bf16.msra.mxu0 %v996
      %1204 = vmatpush.bf16.msra.mxu0 %v994
      %1205 = vmatpush.bf16.msra.mxu0 %v992
      %1206 = vmatpush.bf16.msra.mxu0 %v990
      %1207 = vmatpush.bf16.msra.mxu0 %v988
      %1208 = vmatpush.bf16.msra.mxu0 %v986
      %1209 = vmatmul.bf16.gmra.mxu0 %v895
      %v1210 = vpop.f32.mrf.mxu0
      %v1211 = vadd.f32 %v892, %v1210
      %v1212 = vpop.f32.mrf.mxu0
      %v1213 = vadd.f32 %v892, %v1212
      %1214 = vmatmul.bf16.gmra.mxu0 %v897
      %v1215 = vpop.f32.mrf.mxu0
      %v1216 = vadd.f32 %v892, %v1215
      %v1217 = vpop.f32.mrf.mxu0
      %v1218 = vadd.f32 %v892, %v1217
      %1219 = vmatmul.bf16.gmra.mxu0 %v899
      %v1220 = vpop.f32.mrf.mxu0
      %v1221 = vadd.f32 %v892, %v1220
      %v1222 = vpop.f32.mrf.mxu0
      %v1223 = vadd.f32 %v892, %v1222
      %1224 = vmatmul.bf16.gmra.mxu0 %v901
      %v1225 = vpop.f32.mrf.mxu0
      %v1226 = vadd.f32 %v892, %v1225
      %v1227 = vpop.f32.mrf.mxu0
      %v1228 = vadd.f32 %v892, %v1227
      %1229 = vmatmul.bf16.gmra.mxu0 %v903
      %v1230 = vpop.f32.mrf.mxu0
      %v1231 = vadd.f32 %v892, %v1230
      %v1232 = vpop.f32.mrf.mxu0
      %v1233 = vadd.f32 %v892, %v1232
      %1234 = vmatmul.bf16.gmra.mxu0 %v905
      %v1235 = vpop.f32.mrf.mxu0
      %v1236 = vadd.f32 %v892, %v1235
      %v1237 = vpop.f32.mrf.mxu0
      %v1238 = vadd.f32 %v892, %v1237
      %1239 = vmatmul.bf16.gmra.mxu0 %v907
      %v1240 = vpop.f32.mrf.mxu0
      %v1241 = vadd.f32 %v892, %v1240
      %v1242 = vpop.f32.mrf.mxu0
      %v1243 = vadd.f32 %v892, %v1242
      %1244 = vmatmul.bf16.gmra.mxu0 %v909
      %v1245 = vpop.f32.mrf.mxu0
      %v1246 = vadd.f32 %v892, %v1245
      %v1247 = vpop.f32.mrf.mxu0
      %v1248 = vadd.f32 %v892, %v1247
      %1249 = vmatmul.bf16.gmra.mxu0 %v911
      %v1250 = vpop.f32.mrf.mxu0
      %v1251 = vadd.f32 %v892, %v1250
      %v1252 = vpop.f32.mrf.mxu0
      %v1253 = vadd.f32 %v892, %v1252
      %1254 = vmatmul.bf16.gmra.mxu0 %v913
      %v1255 = vpop.f32.mrf.mxu0
      %v1256 = vadd.f32 %v892, %v1255
      %v1257 = vpop.f32.mrf.mxu0
      %v1258 = vadd.f32 %v892, %v1257
      %1259 = vmatmul.bf16.gmra.mxu0 %v915
      %v1260 = vpop.f32.mrf.mxu0
      %v1261 = vadd.f32 %v892, %v1260
      %v1262 = vpop.f32.mrf.mxu0
      %v1263 = vadd.f32 %v892, %v1262
      %1264 = vmatmul.bf16.gmra.mxu0 %v917
      %v1265 = vpop.f32.mrf.mxu0
      %v1266 = vadd.f32 %v892, %v1265
      %v1267 = vpop.f32.mrf.mxu0
      %v1268 = vadd.f32 %v892, %v1267
      %1269 = vdwg.mxu0
      %1270 = vmatpush.bf16.msra.mxu0 0
      %1271 = vmatpush.bf16.msra.mxu0 0
      %1272 = vmatpush.bf16.msra.mxu0 0
      %1273 = vmatpush.bf16.msra.mxu0 0
      %1274 = vmatpush.bf16.msra.mxu0 0
      %1275 = vmatpush.bf16.msra.mxu0 0
      %1276 = vmatpush.bf16.msra.mxu0 0
      %1277 = vmatpush.bf16.msra.mxu0 %v1061
      %1278 = vmatmul.bf16.gmra.mxu0 %v1021
      %v1279 = vpop.f32.mrf.mxu0
      %v1280 = vadd.f32 %v1211, %v1279
      %v1281 = vpop.f32.mrf.mxu0
      %v1282 = vadd.f32 %v1213, %v1281
      %1283 = vmatmul.bf16.gmra.mxu0 %v1024
      %v1284 = vpop.f32.mrf.mxu0
      %v1285 = vadd.f32 %v1216, %v1284
      %v1286 = vpop.f32.mrf.mxu0
      %v1287 = vadd.f32 %v1218, %v1286
      %1288 = vmatmul.bf16.gmra.mxu0 %v1027
      %v1289 = vpop.f32.mrf.mxu0
      %v1290 = vadd.f32 %v1221, %v1289
      %v1291 = vpop.f32.mrf.mxu0
      %v1292 = vadd.f32 %v1223, %v1291
      %1293 = vmatmul.bf16.gmra.mxu0 %v1030
      %v1294 = vpop.f32.mrf.mxu0
      %v1295 = vadd.f32 %v1226, %v1294
      %v1296 = vpop.f32.mrf.mxu0
      %v1297 = vadd.f32 %v1228, %v1296
      %1298 = vmatmul.bf16.gmra.mxu0 %v1033
      %v1299 = vpop.f32.mrf.mxu0
      %v1300 = vadd.f32 %v1231, %v1299
      %v1301 = vpop.f32.mrf.mxu0
      %v1302 = vadd.f32 %v1233, %v1301
      %1303 = vmatmul.bf16.gmra.mxu0 %v1036
      %v1304 = vpop.f32.mrf.mxu0
      %v1305 = vadd.f32 %v1236, %v1304
      %v1306 = vpop.f32.mrf.mxu0
      %v1307 = vadd.f32 %v1238, %v1306
      %1308 = vmatmul.bf16.gmra.mxu0 %v1039
      %v1309 = vpop.f32.mrf.mxu0
      %v1310 = vadd.f32 %v1241, %v1309
      %v1311 = vpop.f32.mrf.mxu0
      %v1312 = vadd.f32 %v1243, %v1311
      %1313 = vmatmul.bf16.gmra.mxu0 %v1042
      %v1314 = vpop.f32.mrf.mxu0
      %v1315 = vadd.f32 %v1246, %v1314
      %v1316 = vpop.f32.mrf.mxu0
      %v1317 = vadd.f32 %v1248, %v1316
      %1318 = vmatmul.bf16.gmra.mxu0 %v1045
      %v1319 = vpop.f32.mrf.mxu0
      %v1320 = vadd.f32 %v1251, %v1319
      %v1321 = vpop.f32.mrf.mxu0
      %v1322 = vadd.f32 %v1253, %v1321
      %1323 = vmatmul.bf16.gmra.mxu0 %v1048
      %v1324 = vpop.f32.mrf.mxu0
      %v1325 = vadd.f32 %v1256, %v1324
      %v1326 = vpop.f32.mrf.mxu0
      %v1327 = vadd.f32 %v1258, %v1326
      %1328 = vmatmul.bf16.gmra.mxu0 %v1051
      %v1329 = vpop.f32.mrf.mxu0
      %v1330 = vadd.f32 %v1261, %v1329
      %v1331 = vpop.f32.mrf.mxu0
      %v1332 = vadd.f32 %v1263, %v1331
      %1333 = vmatmul.bf16.gmra.mxu0 %v1054
      %v1334 = vpop.f32.mrf.mxu0
      %v1335 = vadd.f32 %v1266, %v1334
      %v1336 = vpop.f32.mrf.mxu0
      %v1337 = vadd.f32 %v1268, %v1336
      %1338 = vdwg.mxu0
      %v1339 = vmax.f32 %v1142, %v1144
      %v1340 = vmax.f32 %v1280, %v1282
      %v1341 = vmax.f32 %v1147, %v1149
      %v1342 = vmax.f32 %v1285, %v1287
      %v1343 = vmax.f32 %v1152, %v1154
      %v1344 = vmax.f32 %v1290, %v1292
      %v1345 = vmax.f32 %v1157, %v1159
      %v1346 = vmax.f32 %v1295, %v1297
      %v1347 = vmax.f32 %v1162, %v1164
      %v1348 = vmax.f32 %v1300, %v1302
      %v1349 = vmax.f32 %v1167, %v1169
      %v1350 = vmax.f32 %v1305, %v1307
      %v1351 = vmax.f32 %v1172, %v1174
      %v1352 = vmax.f32 %v1310, %v1312
      %v1353 = vmax.f32 %v1177, %v1179
      %v1354 = vmax.f32 %v1315, %v1317
      %v1355 = vmax.f32 %v1182, %v1184
      %v1356 = vmax.f32 %v1320, %v1322
      %v1357 = vmax.f32 %v1187, %v1189
      %v1358 = vmax.f32 %v1325, %v1327
      %v1359 = vmax.f32 %v1192, %v1194
      %v1360 = vmax.f32 %v1330, %v1332
      %v1361 = vmax.f32 %v1197, %v1199
      %v1362 = vmax.f32 %v1335, %v1337
      %1387 = vrot.lane.b32.xlu0 %v1339, 127
      %v1388 = vpop.permute.xlu0 %1387
      %1389 = vrot.lane.b32.xlu0 %v1340, 127
      %v1390 = vpop.permute.xlu0 %1389
      %1391 = vrot.lane.b32.xlu0 %v1341, 127
      %v1392 = vpop.permute.xlu0 %1391
      %1393 = vrot.lane.b32.xlu0 %v1342, 127
      %v1394 = vpop.permute.xlu0 %1393
      %1395 = vrot.lane.b32.xlu0 %v1343, 127
      %v1396 = vpop.permute.xlu0 %1395
      %1397 = vrot.lane.b32.xlu0 %v1344, 127
      %v1398 = vpop.permute.xlu0 %1397
      %1399 = vrot.lane.b32.xlu0 %v1345, 127
      %v1400 = vpop.permute.xlu0 %1399
      %1401 = vrot.lane.b32.xlu0 %v1346, 127
      %v1402 = vpop.permute.xlu0 %1401
      %1403 = vrot.lane.b32.xlu0 %v1347, 127
      %v1404 = vpop.permute.xlu0 %1403
      %1405 = vrot.lane.b32.xlu0 %v1348, 127
      %v1406 = vpop.permute.xlu0 %1405
      %1407 = vrot.lane.b32.xlu0 %v1349, 127
      %v1408 = vpop.permute.xlu0 %1407
      %1409 = vrot.lane.b32.xlu0 %v1350, 127
      %v1410 = vpop.permute.xlu0 %1409
      %1411 = vrot.lane.b32.xlu0 %v1351, 127
      %v1412 = vpop.permute.xlu0 %1411
      %1413 = vrot.lane.b32.xlu0 %v1352, 127
      %v1414 = vpop.permute.xlu0 %1413
      %1415 = vrot.lane.b32.xlu0 %v1353, 127
      %v1416 = vpop.permute.xlu0 %1415
      %1417 = vrot.lane.b32.xlu0 %v1354, 127
      %v1418 = vpop.permute.xlu0 %1417
      %1419 = vrot.lane.b32.xlu0 %v1355, 127
      %v1420 = vpop.permute.xlu0 %1419
      %1421 = vrot.lane.b32.xlu0 %v1356, 127
      %v1422 = vpop.permute.xlu0 %1421
      %1423 = vrot.lane.b32.xlu0 %v1357, 127
      %v1424 = vpop.permute.xlu0 %1423
      %1425 = vrot.lane.b32.xlu0 %v1358, 127
      %v1426 = vpop.permute.xlu0 %1425
      %1427 = vrot.lane.b32.xlu0 %v1359, 127
      %v1428 = vpop.permute.xlu0 %1427
      %1429 = vrot.lane.b32.xlu0 %v1360, 127
      %v1430 = vpop.permute.xlu0 %1429
      %1431 = vrot.lane.b32.xlu0 %v1361, 127
      %v1432 = vpop.permute.xlu0 %1431
      %1433 = vrot.lane.b32.xlu0 %v1362, 127
      %v1434 = vpop.permute.xlu0 %1433
      %vm1435 = vcmask 1039360
      %v1436 = vsel %vm1435, %v1388, %v1390
      %v1437 = vsel %vm1435, %v1392, %v1394
      %v1438 = vsel %vm1435, %v1396, %v1398
      %v1439 = vsel %vm1435, %v1400, %v1402
      %v1440 = vsel %vm1435, %v1404, %v1406
      %v1441 = vsel %vm1435, %v1408, %v1410
      %v1442 = vsel %vm1435, %v1412, %v1414
      %v1443 = vsel %vm1435, %v1416, %v1418
      %v1444 = vsel %vm1435, %v1420, %v1422
      %v1445 = vsel %vm1435, %v1424, %v1426
      %v1446 = vsel %vm1435, %v1428, %v1430
      %v1447 = vsel %vm1435, %v1432, %v1434
      %vm1472 = vcmask 908288
      %v1473 = vsel %vm1472, %v1390, %v1340
      %v1474 = vsel %vm1472, %v1394, %v1342
      %v1475 = vsel %vm1472, %v1398, %v1344
      %v1476 = vsel %vm1472, %v1402, %v1346
      %v1477 = vsel %vm1472, %v1406, %v1348
      %v1478 = vsel %vm1472, %v1410, %v1350
      %v1479 = vsel %vm1472, %v1414, %v1352
      %v1480 = vsel %vm1472, %v1418, %v1354
      %v1481 = vsel %vm1472, %v1422, %v1356
      %v1482 = vsel %vm1472, %v1426, %v1358
      %v1483 = vsel %vm1472, %v1430, %v1360
      %v1484 = vsel %vm1472, %v1434, %v1362
      %v1485 = vmax.f32 %v1339, %v1436
      %v1486 = vmax.f32 %v1340, %v1473
      %v1487 = vmax.f32 %v1341, %v1437
      %v1488 = vmax.f32 %v1342, %v1474
      %v1489 = vmax.f32 %v1343, %v1438
      %v1490 = vmax.f32 %v1344, %v1475
      %v1491 = vmax.f32 %v1345, %v1439
      %v1492 = vmax.f32 %v1346, %v1476
      %v1493 = vmax.f32 %v1347, %v1440
      %v1494 = vmax.f32 %v1348, %v1477
      %v1495 = vmax.f32 %v1349, %v1441
      %v1496 = vmax.f32 %v1350, %v1478
      %v1497 = vmax.f32 %v1351, %v1442
      %v1498 = vmax.f32 %v1352, %v1479
      %v1499 = vmax.f32 %v1353, %v1443
      %v1500 = vmax.f32 %v1354, %v1480
      %v1501 = vmax.f32 %v1355, %v1444
      %v1502 = vmax.f32 %v1356, %v1481
      %v1503 = vmax.f32 %v1357, %v1445
      %v1504 = vmax.f32 %v1358, %v1482
      %v1505 = vmax.f32 %v1359, %v1446
      %v1506 = vmax.f32 %v1360, %v1483
      %v1507 = vmax.f32 %v1361, %v1447
      %v1508 = vmax.f32 %v1362, %v1484
      %v1509 = vmax.f32 %v1485, 0.0
      %v1510 = vmax.f32 %v1486, 0.0
      %v1511 = vmax.f32 %v1487, 0.0
      %v1512 = vmax.f32 %v1488, 0.0
      %v1513 = vmax.f32 %v1489, 0.0
      %v1514 = vmax.f32 %v1490, 0.0
      %v1515 = vmax.f32 %v1491, 0.0
      %v1516 = vmax.f32 %v1492, 0.0
      %v1517 = vmax.f32 %v1493, 0.0
      %v1518 = vmax.f32 %v1494, 0.0
      %v1519 = vmax.f32 %v1495, 0.0
      %v1520 = vmax.f32 %v1496, 0.0
      %v1521 = vmax.f32 %v1497, 0.0
      %v1522 = vmax.f32 %v1498, 0.0
      %v1523 = vmax.f32 %v1499, 0.0
      %v1524 = vmax.f32 %v1500, 0.0
      %v1525 = vmax.f32 %v1501, 0.0
      %v1526 = vmax.f32 %v1502, 0.0
      %v1527 = vmax.f32 %v1503, 0.0
      %v1528 = vmax.f32 %v1504, 0.0
      %v1529 = vmax.f32 %v1505, 0.0
      %v1530 = vmax.f32 %v1506, 0.0
      %v1531 = vmax.f32 %v1507, 0.0
      %v1532 = vmax.f32 %v1508, 0.0
      %1549 = vrot.lane.b32.xlu0 %v1511, 112
      %v1550 = vpop.permute.xlu0 %1549
      %1551 = vrot.lane.b32.xlu0 %v1512, 112
      %v1552 = vpop.permute.xlu0 %1551
      %1553 = vrot.lane.b32.xlu0 %v1513, 112
      %v1554 = vpop.permute.xlu0 %1553
      %1555 = vrot.lane.b32.xlu0 %v1514, 112
      %v1556 = vpop.permute.xlu0 %1555
      %1557 = vrot.lane.b32.xlu0 %v1515, 112
      %v1558 = vpop.permute.xlu0 %1557
      %1559 = vrot.lane.b32.xlu0 %v1516, 112
      %v1560 = vpop.permute.xlu0 %1559
      %1561 = vrot.lane.b32.xlu0 %v1517, 112
      %v1562 = vpop.permute.xlu0 %1561
      %1563 = vrot.lane.b32.xlu0 %v1518, 112
      %v1564 = vpop.permute.xlu0 %1563
      %1565 = vrot.lane.b32.xlu0 %v1519, 112
      %v1566 = vpop.permute.xlu0 %1565
      %1567 = vrot.lane.b32.xlu0 %v1520, 112
      %v1568 = vpop.permute.xlu0 %1567
      %1569 = vrot.lane.b32.xlu0 %v1521, 112
      %v1570 = vpop.permute.xlu0 %1569
      %1571 = vrot.lane.b32.xlu0 %v1522, 112
      %v1572 = vpop.permute.xlu0 %1571
      %1573 = vrot.lane.b32.xlu0 %v1523, 112
      %v1574 = vpop.permute.xlu0 %1573
      %1575 = vrot.lane.b32.xlu0 %v1524, 112
      %v1576 = vpop.permute.xlu0 %1575
      %1577 = vrot.lane.b32.xlu0 %v1525, 112
      %v1578 = vpop.permute.xlu0 %1577
      %1579 = vrot.lane.b32.xlu0 %v1526, 112
      %v1580 = vpop.permute.xlu0 %1579
      %v1581 = vsel %vm750, %v1550, %v1552
      %v1582 = vsel %vm750, %v1554, %v1556
      %v1583 = vsel %vm750, %v1558, %v1560
      %v1584 = vsel %vm750, %v1562, %v1564
      %v1585 = vsel %vm750, %v1566, %v1568
      %v1586 = vsel %vm750, %v1570, %v1572
      %v1587 = vsel %vm750, %v1574, %v1576
      %v1588 = vsel %vm750, %v1578, %v1580
      %1615 = vrot.lane.b32.xlu0 %v1513, 96
      %v1616 = vpop.permute.xlu0 %1615
      %1617 = vrot.lane.b32.xlu0 %v1514, 96
      %v1618 = vpop.permute.xlu0 %1617
      %1619 = vrot.lane.b32.xlu0 %v1515, 96
      %v1620 = vpop.permute.xlu0 %1619
      %1621 = vrot.lane.b32.xlu0 %v1516, 96
      %v1622 = vpop.permute.xlu0 %1621
      %1623 = vrot.lane.b32.xlu0 %v1517, 96
      %v1624 = vpop.permute.xlu0 %1623
      %1625 = vrot.lane.b32.xlu0 %v1518, 96
      %v1626 = vpop.permute.xlu0 %1625
      %1627 = vrot.lane.b32.xlu0 %v1519, 96
      %v1628 = vpop.permute.xlu0 %1627
      %1629 = vrot.lane.b32.xlu0 %v1520, 96
      %v1630 = vpop.permute.xlu0 %1629
      %1631 = vrot.lane.b32.xlu0 %v1521, 96
      %v1632 = vpop.permute.xlu0 %1631
      %1633 = vrot.lane.b32.xlu0 %v1522, 96
      %v1634 = vpop.permute.xlu0 %1633
      %1635 = vrot.lane.b32.xlu0 %v1523, 96
      %v1636 = vpop.permute.xlu0 %1635
      %1637 = vrot.lane.b32.xlu0 %v1524, 96
      %v1638 = vpop.permute.xlu0 %1637
      %1639 = vrot.lane.b32.xlu0 %v1525, 96
      %v1640 = vpop.permute.xlu0 %1639
      %1641 = vrot.lane.b32.xlu0 %v1526, 96
      %v1642 = vpop.permute.xlu0 %1641
      %1643 = vrot.lane.b32.xlu0 %v1527, 96
      %v1644 = vpop.permute.xlu0 %1643
      %1645 = vrot.lane.b32.xlu0 %v1528, 96
      %v1646 = vpop.permute.xlu0 %1645
      %vm1647 = vcmask 785408
      %v1648 = vsel %vm1647, %v1616, %v1618
      %v1649 = vsel %vm1647, %v1620, %v1622
      %v1650 = vsel %vm1647, %v1624, %v1626
      %v1651 = vsel %vm1647, %v1628, %v1630
      %v1652 = vsel %vm1647, %v1632, %v1634
      %v1653 = vsel %vm1647, %v1636, %v1638
      %v1654 = vsel %vm1647, %v1640, %v1642
      %v1655 = vsel %vm1647, %v1644, %v1646
      %1682 = vrot.lane.b32.xlu0 %v1515, 80
      %v1683 = vpop.permute.xlu0 %1682
      %1684 = vrot.lane.b32.xlu0 %v1516, 80
      %v1685 = vpop.permute.xlu0 %1684
      %1686 = vrot.lane.b32.xlu0 %v1517, 80
      %v1687 = vpop.permute.xlu0 %1686
      %1688 = vrot.lane.b32.xlu0 %v1518, 80
      %v1689 = vpop.permute.xlu0 %1688
      %1690 = vrot.lane.b32.xlu0 %v1519, 80
      %v1691 = vpop.permute.xlu0 %1690
      %1692 = vrot.lane.b32.xlu0 %v1520, 80
      %v1693 = vpop.permute.xlu0 %1692
      %1694 = vrot.lane.b32.xlu0 %v1521, 80
      %v1695 = vpop.permute.xlu0 %1694
      %1696 = vrot.lane.b32.xlu0 %v1522, 80
      %v1697 = vpop.permute.xlu0 %1696
      %1698 = vrot.lane.b32.xlu0 %v1523, 80
      %v1699 = vpop.permute.xlu0 %1698
      %1700 = vrot.lane.b32.xlu0 %v1524, 80
      %v1701 = vpop.permute.xlu0 %1700
      %1702 = vrot.lane.b32.xlu0 %v1525, 80
      %v1703 = vpop.permute.xlu0 %1702
      %1704 = vrot.lane.b32.xlu0 %v1526, 80
      %v1705 = vpop.permute.xlu0 %1704
      %1706 = vrot.lane.b32.xlu0 %v1527, 80
      %v1707 = vpop.permute.xlu0 %1706
      %1708 = vrot.lane.b32.xlu0 %v1528, 80
      %v1709 = vpop.permute.xlu0 %1708
      %1710 = vrot.lane.b32.xlu0 %v1529, 80
      %v1711 = vpop.permute.xlu0 %1710
      %1712 = vrot.lane.b32.xlu0 %v1530, 80
      %v1713 = vpop.permute.xlu0 %1712
      %vm1714 = vcmask 654336
      %v1715 = vsel %vm1714, %v1683, %v1685
      %v1716 = vsel %vm1714, %v1687, %v1689
      %v1717 = vsel %vm1714, %v1691, %v1693
      %v1718 = vsel %vm1714, %v1695, %v1697
      %v1719 = vsel %vm1714, %v1699, %v1701
      %v1720 = vsel %vm1714, %v1703, %v1705
      %v1721 = vsel %vm1714, %v1707, %v1709
      %v1722 = vsel %vm1714, %v1711, %v1713
      %1749 = vrot.lane.b32.xlu0 %v1517, 64
      %v1750 = vpop.permute.xlu0 %1749
      %1751 = vrot.lane.b32.xlu0 %v1518, 64
      %v1752 = vpop.permute.xlu0 %1751
      %1753 = vrot.lane.b32.xlu0 %v1519, 64
      %v1754 = vpop.permute.xlu0 %1753
      %1755 = vrot.lane.b32.xlu0 %v1520, 64
      %v1756 = vpop.permute.xlu0 %1755
      %1757 = vrot.lane.b32.xlu0 %v1521, 64
      %v1758 = vpop.permute.xlu0 %1757
      %1759 = vrot.lane.b32.xlu0 %v1522, 64
      %v1760 = vpop.permute.xlu0 %1759
      %1761 = vrot.lane.b32.xlu0 %v1523, 64
      %v1762 = vpop.permute.xlu0 %1761
      %1763 = vrot.lane.b32.xlu0 %v1524, 64
      %v1764 = vpop.permute.xlu0 %1763
      %1765 = vrot.lane.b32.xlu0 %v1525, 64
      %v1766 = vpop.permute.xlu0 %1765
      %1767 = vrot.lane.b32.xlu0 %v1526, 64
      %v1768 = vpop.permute.xlu0 %1767
      %1769 = vrot.lane.b32.xlu0 %v1527, 64
      %v1770 = vpop.permute.xlu0 %1769
      %1771 = vrot.lane.b32.xlu0 %v1528, 64
      %v1772 = vpop.permute.xlu0 %1771
      %1773 = vrot.lane.b32.xlu0 %v1529, 64
      %v1774 = vpop.permute.xlu0 %1773
      %1775 = vrot.lane.b32.xlu0 %v1530, 64
      %v1776 = vpop.permute.xlu0 %1775
      %1777 = vrot.lane.b32.xlu0 %v1531, 64
      %v1778 = vpop.permute.xlu0 %1777
      %1779 = vrot.lane.b32.xlu0 %v1532, 64
      %v1780 = vpop.permute.xlu0 %1779
      %vm1781 = vcmask 523264
      %v1782 = vsel %vm1781, %v1750, %v1752
      %v1783 = vsel %vm1781, %v1754, %v1756
      %v1784 = vsel %vm1781, %v1758, %v1760
      %v1785 = vsel %vm1781, %v1762, %v1764
      %v1786 = vsel %vm1781, %v1766, %v1768
      %v1787 = vsel %vm1781, %v1770, %v1772
      %v1788 = vsel %vm1781, %v1774, %v1776
      %v1789 = vsel %vm1781, %v1778, %v1780
      %v1814 = vsel %vm750, %v1510, %v1550
      %v1815 = vsel %vm750, %v1512, %v1554
      %v1816 = vsel %vm750, %v1514, %v1558
      %v1817 = vsel %vm750, %v1516, %v1562
      %v1818 = vsel %vm750, %v1518, %v1566
      %v1819 = vsel %vm750, %v1520, %v1570
      %v1820 = vsel %vm750, %v1522, %v1574
      %v1821 = vsel %vm750, %v1524, %v1578
      %v1822 = vsel %vm1647, %v1552, %v1616
      %v1823 = vsel %vm1647, %v1556, %v1620
      %v1824 = vsel %vm1647, %v1560, %v1624
      %v1825 = vsel %vm1647, %v1564, %v1628
      %v1826 = vsel %vm1647, %v1568, %v1632
      %v1827 = vsel %vm1647, %v1572, %v1636
      %v1828 = vsel %vm1647, %v1576, %v1640
      %v1829 = vsel %vm1647, %v1580, %v1644
      %v1830 = vsel %vm1714, %v1618, %v1683
      %v1831 = vsel %vm1714, %v1622, %v1687
      %v1832 = vsel %vm1714, %v1626, %v1691
      %v1833 = vsel %vm1714, %v1630, %v1695
      %v1834 = vsel %vm1714, %v1634, %v1699
      %v1835 = vsel %vm1714, %v1638, %v1703
      %v1836 = vsel %vm1714, %v1642, %v1707
      %v1837 = vsel %vm1714, %v1646, %v1711
      %v1838 = vsel %vm1781, %v1685, %v1750
      %v1839 = vsel %vm1781, %v1689, %v1754
      %v1840 = vsel %vm1781, %v1693, %v1758
      %v1841 = vsel %vm1781, %v1697, %v1762
      %v1842 = vsel %vm1781, %v1701, %v1766
      %v1843 = vsel %vm1781, %v1705, %v1770
      %v1844 = vsel %vm1781, %v1709, %v1774
      %v1845 = vsel %vm1781, %v1713, %v1778
      %v1846 = vpack.c.bf16 %v1511, %v1509
      %v1847 = vpack.c.bf16 %v1815, %v1814
      %v1848 = vpack.c.bf16 %v1582, %v1581
      %v1849 = vpack.c.bf16 %v1823, %v1822
      %v1850 = vpack.c.bf16 %v1649, %v1648
      %v1851 = vpack.c.bf16 %v1831, %v1830
      %v1852 = vpack.c.bf16 %v1716, %v1715
      %v1853 = vpack.c.bf16 %v1839, %v1838
      %v1854 = vpack.c.bf16 %v1783, %v1782
      %v1855 = vpack.c.bf16 %v1756, %v1752
      %v1856 = vpack.c.bf16 %v1515, %v1513
      %v1857 = vpack.c.bf16 %v1817, %v1816
      %v1858 = vpack.c.bf16 %v1584, %v1583
      %v1859 = vpack.c.bf16 %v1825, %v1824
      %v1860 = vpack.c.bf16 %v1651, %v1650
      %v1861 = vpack.c.bf16 %v1833, %v1832
      %v1862 = vpack.c.bf16 %v1718, %v1717
      %v1863 = vpack.c.bf16 %v1841, %v1840
      %v1864 = vpack.c.bf16 %v1785, %v1784
      %v1865 = vpack.c.bf16 %v1764, %v1760
      %v1866 = vpack.c.bf16 %v1519, %v1517
      %v1867 = vpack.c.bf16 %v1819, %v1818
      %v1868 = vpack.c.bf16 %v1586, %v1585
      %v1869 = vpack.c.bf16 %v1827, %v1826
      %v1870 = vpack.c.bf16 %v1653, %v1652
      %v1871 = vpack.c.bf16 %v1835, %v1834
      %v1872 = vpack.c.bf16 %v1720, %v1719
      %v1873 = vpack.c.bf16 %v1843, %v1842
      %v1874 = vpack.c.bf16 %v1787, %v1786
      %v1875 = vpack.c.bf16 %v1772, %v1768
      %v1876 = vpack.c.bf16 %v1523, %v1521
      %v1877 = vpack.c.bf16 %v1821, %v1820
      %v1878 = vpack.c.bf16 %v1588, %v1587
      %v1879 = vpack.c.bf16 %v1829, %v1828
      %v1880 = vpack.c.bf16 %v1655, %v1654
      %v1881 = vpack.c.bf16 %v1837, %v1836
      %v1882 = vpack.c.bf16 %v1722, %v1721
      %v1883 = vpack.c.bf16 %v1845, %v1844
      %v1884 = vpack.c.bf16 %v1789, %v1788
      %v1885 = vpack.c.bf16 %v1780, %v1776
      %v1886 = vld [vmem:[%s3] sm:$0xff]
      %v1887 = vld [vmem:[%s3 + $0x8] sm:$0xff]
      %v1888 = vld [vmem:[%s3 + $0x10] sm:$0xff]
      %v1889 = vld [vmem:[%s3 + $0x18] sm:$0xff]
      %v1890 = vld [vmem:[%s3 + $0x20] sm:$0xff]
      %v1891 = vld [vmem:[%s3 + $0x28] sm:$0xff]
      %v1892 = vld [vmem:[%s3 + $0x30] sm:$0xff]
      %v1893 = vld [vmem:[%s3 + $0x38] sm:$0xff]
      %v1894 = vld [vmem:[%s3 + $0x40] sm:$0xff]
      %v1895 = vld [vmem:[%s3 + $0x48] sm:$0xff]
      %v1896 = vld [vmem:[%s3 + $0x50] sm:$0xff]
      %v1897 = vld [vmem:[%s3 + $0x58] sm:$0xff]
      %v1898 = vld [vmem:[%s3 + $0x60] sm:$0xff]
      %v1899 = vld [vmem:[%s3 + $0x68] sm:$0xff]
      %v1900 = vld [vmem:[%s3 + $0x70] sm:$0xff]
      %v1901 = vld [vmem:[%s3 + $0x78] sm:$0xff]
      %v1902 = vld [vmem:[%s3 + $0x80] sm:$0xff]
      %v1903 = vld [vmem:[%s3 + $0x88] sm:$0xff]
      %v1904 = vld [vmem:[%s3 + $0x90] sm:$0xff]
      %v1905 = vld [vmem:[%s3 + $0x98] sm:$0xff]
      %v1906 = vld [vmem:[%s3 + $0xa0] sm:$0xff]
      %v1907 = vld [vmem:[%s3 + $0xa8] sm:$0xff]
      %v1908 = vld [vmem:[%s3 + $0xb0] sm:$0xff]
      %v1909 = vld [vmem:[%s3 + $0xb8] sm:$0xff]
      %v1910 = vld [vmem:[%s3 + $0xc0] sm:$0xff]
      %v1911 = vld [vmem:[%s3 + $0xc8] sm:$0xff]
      %v1912 = vld [vmem:[%s3 + $0xd0] sm:$0xff]
      %v1913 = vld [vmem:[%s3 + $0xd8] sm:$0xff]
      %v1914 = vld [vmem:[%s3 + $0xe0] sm:$0xff]
      %v1915 = vld [vmem:[%s3 + $0xe8] sm:$0xff]
      %v1916 = vld [vmem:[%s3 + $0xf0] sm:$0xff]
      %v1917 = vld [vmem:[%s3 + $0xf8] sm:$0xff]
      %v1918 = vld [vmem:[%s3 + $0x100] sm:$0xff]
      %v1919 = vld [vmem:[%s3 + $0x108] sm:$0xff]
      %v1920 = vld [vmem:[%s3 + $0x110] sm:$0xff]
      %v1921 = vld [vmem:[%s3 + $0x118] sm:$0xff]
      %v1922 = vld [vmem:[%s3 + $0x120] sm:$0xff]
      %v1923 = vld [vmem:[%s3 + $0x128] sm:$0xff]
      %v1924 = vld [vmem:[%s3 + $0x130] sm:$0xff]
      %v1925 = vld [vmem:[%s3 + $0x138] sm:$0xff]
      %v1926 = vld [vmem:[%s3 + $0x140] sm:$0xff]
      %v1927 = vld [vmem:[%s3 + $0x148] sm:$0xff]
      %v1928 = vld [vmem:[%s3 + $0x150] sm:$0xff]
      %v1929 = vld [vmem:[%s3 + $0x158] sm:$0xff]
      %v1930 = vld [vmem:[%s3 + $0x160] sm:$0xff]
      %v1931 = vld [vmem:[%s3 + $0x168] sm:$0xff]
      %v1932 = vld [vmem:[%s3 + $0x170] sm:$0xff]
      %v1933 = vld [vmem:[%s3 + $0x178] sm:$0xff]
      %v1934 = vld [vmem:[%s3 + $0x180] sm:$0xff]
      %v1935 = vld [vmem:[%s3 + $0x188] sm:$0xff]
      %v1936 = vld [vmem:[%s3 + $0x190] sm:$0xff]
      %v1937 = vld [vmem:[%s3 + $0x198] sm:$0xff]
      %v1938 = vld [vmem:[%s3 + $0x1a0] sm:$0xff]
      %v1939 = vld [vmem:[%s3 + $0x1a8] sm:$0xff]
      %v1940 = vld [vmem:[%s3 + $0x1b0] sm:$0xff]
      %v1941 = vld [vmem:[%s3 + $0x1b8] sm:$0xff]
      %v1942 = vld [vmem:[%s3 + $0x1c0] sm:$0xff]
      %v1943 = vld [vmem:[%s3 + $0x1c8] sm:$0xff]
      %v1944 = vld [vmem:[%s3 + $0x1d0] sm:$0xff]
      %v1945 = vld [vmem:[%s3 + $0x1d8] sm:$0xff]
      %v1946 = vld [vmem:[%s3 + $0x1e0] sm:$0xff]
      %v1947 = vld [vmem:[%s3 + $0x1e8] sm:$0xff]
      %v1948 = vld [vmem:[%s3 + $0x1f0] sm:$0xff]
      %v1949 = vld [vmem:[%s3 + $0x1f8] sm:$0xff]
      %v1950 = vld [vmem:[%s3 + $0x200] sm:$0xff]
      %v1951 = vld [vmem:[%s3 + $0x208] sm:$0xff]
      %v1952 = vld [vmem:[%s3 + $0x210] sm:$0xff]
      %v1953 = vld [vmem:[%s3 + $0x218] sm:$0xff]
      %v1954 = vld [vmem:[%s3 + $0x220] sm:$0xff]
      %v1955 = vld [vmem:[%s3 + $0x228] sm:$0xff]
      %v1956 = vld [vmem:[%s3 + $0x230] sm:$0xff]
      %v1957 = vld [vmem:[%s3 + $0x238] sm:$0xff]
      %v1958 = vld [vmem:[%s3 + $0x240] sm:$0xff]
      %v1959 = vld [vmem:[%s3 + $0x248] sm:$0xff]
      %v1960 = vld [vmem:[%s3 + $0x250] sm:$0xff]
      %v1961 = vld [vmem:[%s3 + $0x258] sm:$0xff]
      %v1962 = vld [vmem:[%s3 + $0x260] sm:$0xff]
      %v1963 = vld [vmem:[%s3 + $0x268] sm:$0xff]
      %v1964 = vld [vmem:[%s3 + $0x270] sm:$0xff]
      %v1965 = vld [vmem:[%s3 + $0x278] sm:$0xff]
      %v1966 = vld [vmem:[%s3 + $0x280] sm:$0xff]
      %v1967 = vld [vmem:[%s3 + $0x288] sm:$0xff]
      %v1968 = vld [vmem:[%s3 + $0x290] sm:$0xff]
      %v1969 = vld [vmem:[%s3 + $0x298] sm:$0xff]
      %v1970 = vld [vmem:[%s3 + $0x2a0] sm:$0xff]
      %v1971 = vld [vmem:[%s3 + $0x2a8] sm:$0xff]
      %v1972 = vld [vmem:[%s3 + $0x2b0] sm:$0xff]
      %v1973 = vld [vmem:[%s3 + $0x2b8] sm:$0xff]
      %v1974 = vld [vmem:[%s3 + $0x2c0] sm:$0xff]
      %v1975 = vld [vmem:[%s3 + $0x2c8] sm:$0xff]
      %v1976 = vld [vmem:[%s3 + $0x2d0] sm:$0xff]
      %v1977 = vld [vmem:[%s3 + $0x2d8] sm:$0xff]
      %v1978 = vld [vmem:[%s3 + $0x2e0] sm:$0xff]
      %v1979 = vld [vmem:[%s3 + $0x2e8] sm:$0xff]
      %v1980 = vld [vmem:[%s3 + $0x2f0] sm:$0xff]
      %v1981 = vld [vmem:[%s3 + $0x2f8] sm:$0xff]
      %v1982 = vld [vmem:[%s3 + $0x300] sm:$0xff]
      %v1983 = vld [vmem:[%s3 + $0x308] sm:$0xff]
      %v1984 = vld [vmem:[%s3 + $0x310] sm:$0xff]
      %v1985 = vld [vmem:[%s3 + $0x318] sm:$0xff]
      %v1986 = vld [vmem:[%s3 + $0x320] sm:$0xff]
      %v1987 = vld [vmem:[%s3 + $0x328] sm:$0xff]
      %v1988 = vld [vmem:[%s3 + $0x330] sm:$0xff]
      %v1989 = vld [vmem:[%s3 + $0x338] sm:$0xff]
      %v1990 = vld [vmem:[%s3 + $0x340] sm:$0xff]
      %v1991 = vld [vmem:[%s3 + $0x348] sm:$0xff]
      %v1992 = vld [vmem:[%s3 + $0x350] sm:$0xff]
      %v1993 = vld [vmem:[%s3 + $0x358] sm:$0xff]
      %v1994 = vld [vmem:[%s3 + $0x360] sm:$0xff]
      %v1995 = vld [vmem:[%s3 + $0x368] sm:$0xff]
      %v1996 = vld [vmem:[%s3 + $0x370] sm:$0xff]
      %v1997 = vld [vmem:[%s3 + $0x378] sm:$0xff]
      %v1998 = vld [vmem:[%s3 + $0x380] sm:$0xff]
      %v1999 = vld [vmem:[%s3 + $0x388] sm:$0xff]
      %v2000 = vld [vmem:[%s3 + $0x390] sm:$0xff]
      %v2001 = vld [vmem:[%s3 + $0x398] sm:$0xff]
      %v2002 = vld [vmem:[%s3 + $0x3a0] sm:$0xff]
      %v2003 = vld [vmem:[%s3 + $0x3a8] sm:$0xff]
      %v2004 = vld [vmem:[%s3 + $0x3b0] sm:$0xff]
      %v2005 = vld [vmem:[%s3 + $0x3b8] sm:$0xff]
      %v2006 = vld [vmem:[%s3 + $0x3c0] sm:$0xff]
      %v2007 = vld [vmem:[%s3 + $0x3c8] sm:$0xff]
      %v2008 = vld [vmem:[%s3 + $0x3d0] sm:$0xff]
      %v2009 = vld [vmem:[%s3 + $0x3d8] sm:$0xff]
      %v2010 = vld [vmem:[%s3 + $0x3e0] sm:$0xff]
      %v2011 = vld [vmem:[%s3 + $0x3e8] sm:$0xff]
      %v2012 = vld [vmem:[%s3 + $0x3f0] sm:$0xff]
      %v2013 = vld [vmem:[%s3 + $0x3f8] sm:$0xff]
      %v2014 = vld [vmem:[%s3 + $0x400] sm:$0xff]
      %v2015 = vld [vmem:[%s3 + $0x408] sm:$0xff]
      %v2016 = vld [vmem:[%s3 + $0x410] sm:$0xff]
      %v2017 = vld [vmem:[%s3 + $0x418] sm:$0xff]
      %v2018 = vld [vmem:[%s3 + $0x420] sm:$0xff]
      %v2019 = vld [vmem:[%s3 + $0x428] sm:$0xff]
      %v2020 = vld [vmem:[%s3 + $0x430] sm:$0xff]
      %v2021 = vld [vmem:[%s3 + $0x438] sm:$0xff]
      %v2022 = vld [vmem:[%s3 + $0x440] sm:$0xff]
      %v2023 = vld [vmem:[%s3 + $0x448] sm:$0xff]
      %v2024 = vld [vmem:[%s3 + $0x450] sm:$0xff]
      %v2025 = vld [vmem:[%s3 + $0x458] sm:$0xff]
      %v2026 = vld [vmem:[%s3 + $0x460] sm:$0xff]
      %v2027 = vld [vmem:[%s3 + $0x468] sm:$0xff]
      %v2028 = vld [vmem:[%s3 + $0x470] sm:$0xff]
      %v2029 = vld [vmem:[%s3 + $0x478] sm:$0xff]
      %v2030 = vld [vmem:[%s3 + $0x480] sm:$0xff]
      %v2031 = vld [vmem:[%s3 + $0x488] sm:$0xff]
      %v2032 = vld [vmem:[%s3 + $0x490] sm:$0xff]
      %v2033 = vld [vmem:[%s3 + $0x498] sm:$0xff]
      %v2034 = vld [vmem:[%s3 + $0x4a0] sm:$0xff]
      %v2035 = vld [vmem:[%s3 + $0x4a8] sm:$0xff]
      %v2036 = vld [vmem:[%s4] sm:$0x3]
      %v2038 = vperm.slane %v2036, 0
      %v2039 = vperm.slane %v2036, 1
      %v2192 = vunpack.c.l.b16 %v1886
      %v2193 = vunpack.c.h.b16 %v1886
      %v2194 = vunpack.c.l.b16 %v1887
      %v2195 = vunpack.c.h.b16 %v1887
      %v2196 = vunpack.c.l.b16 %v1888
      %v2197 = vunpack.c.h.b16 %v1888
      %v2198 = vunpack.c.l.b16 %v1889
      %v2199 = vunpack.c.h.b16 %v1889
      %v2200 = vunpack.c.l.b16 %v1890
      %v2201 = vunpack.c.h.b16 %v1890
      %v2202 = vunpack.c.l.b16 %v1891
      %v2203 = vunpack.c.h.b16 %v1891
      %v2204 = vunpack.c.l.b16 %v1892
      %v2205 = vunpack.c.h.b16 %v1892
      %v2206 = vunpack.c.l.b16 %v1893
      %v2207 = vunpack.c.h.b16 %v1893
      %v2208 = vunpack.c.l.b16 %v1894
      %v2209 = vunpack.c.h.b16 %v1894
      %v2210 = vunpack.c.l.b16 %v1895
      %v2211 = vunpack.c.h.b16 %v1895
      %v2212 = vunpack.c.l.b16 %v1896
      %v2213 = vunpack.c.h.b16 %v1896
      %v2214 = vunpack.c.l.b16 %v1897
      %v2215 = vunpack.c.h.b16 %v1897
      %v2216 = vunpack.c.l.b16 %v1898
      %v2217 = vunpack.c.h.b16 %v1898
      %v2218 = vunpack.c.l.b16 %v1899
      %v2219 = vunpack.c.h.b16 %v1899
      %v2220 = vunpack.c.l.b16 %v1900
      %v2221 = vunpack.c.h.b16 %v1900
      %v2222 = vunpack.c.l.b16 %v1901
      %v2223 = vunpack.c.h.b16 %v1901
      %v2224 = vunpack.c.l.b16 %v1902
      %v2225 = vunpack.c.h.b16 %v1902
      %v2226 = vunpack.c.l.b16 %v1903
      %v2227 = vunpack.c.h.b16 %v1903
      %v2228 = vunpack.c.l.b16 %v1904
      %v2229 = vunpack.c.h.b16 %v1904
      %v2230 = vunpack.c.l.b16 %v1905
      %v2231 = vunpack.c.h.b16 %v1905
      %v2232 = vunpack.c.l.b16 %v1906
      %v2233 = vunpack.c.h.b16 %v1906
      %v2234 = vunpack.c.l.b16 %v1907
      %v2235 = vunpack.c.h.b16 %v1907
      %v2236 = vunpack.c.l.b16 %v1908
      %v2237 = vunpack.c.h.b16 %v1908
      %v2238 = vunpack.c.l.b16 %v1909
      %v2239 = vunpack.c.h.b16 %v1909
      %v2240 = vunpack.c.l.b16 %v1910
      %v2241 = vunpack.c.h.b16 %v1910
      %v2242 = vunpack.c.l.b16 %v1911
      %v2243 = vunpack.c.h.b16 %v1911
      %v2244 = vunpack.c.l.b16 %v1912
      %v2245 = vunpack.c.h.b16 %v1912
      %v2246 = vunpack.c.l.b16 %v1913
      %v2247 = vunpack.c.h.b16 %v1913
      %v2248 = vunpack.c.l.b16 %v1914
      %v2249 = vunpack.c.h.b16 %v1914
      %v2250 = vunpack.c.l.b16 %v1915
      %v2251 = vunpack.c.h.b16 %v1915
      %v2252 = vunpack.c.l.b16 %v1916
      %v2253 = vunpack.c.h.b16 %v1916
      %v2254 = vunpack.c.l.b16 %v1917
      %v2255 = vunpack.c.h.b16 %v1917
      %v2256 = vunpack.c.l.b16 %v1918
      %v2257 = vunpack.c.h.b16 %v1918
      %v2258 = vunpack.c.l.b16 %v1919
      %v2259 = vunpack.c.h.b16 %v1919
      %v2260 = vunpack.c.l.b16 %v1920
      %v2261 = vunpack.c.h.b16 %v1920
      %v2262 = vunpack.c.l.b16 %v1921
      %v2263 = vunpack.c.h.b16 %v1921
      %v2264 = vunpack.c.l.b16 %v1922
      %v2265 = vunpack.c.h.b16 %v1922
      %v2266 = vunpack.c.l.b16 %v1923
      %v2267 = vunpack.c.h.b16 %v1923
      %v2268 = vunpack.c.l.b16 %v1924
      %v2269 = vunpack.c.h.b16 %v1924
      %v2270 = vunpack.c.l.b16 %v1925
      %v2271 = vunpack.c.h.b16 %v1925
      %v2272 = vunpack.c.l.b16 %v1926
      %v2273 = vunpack.c.h.b16 %v1926
      %v2274 = vunpack.c.l.b16 %v1927
      %v2275 = vunpack.c.h.b16 %v1927
      %v2276 = vunpack.c.l.b16 %v1928
      %v2277 = vunpack.c.h.b16 %v1928
      %v2278 = vunpack.c.l.b16 %v1929
      %v2279 = vunpack.c.h.b16 %v1929
      %v2280 = vunpack.c.l.b16 %v1930
      %v2281 = vunpack.c.h.b16 %v1930
      %v2282 = vunpack.c.l.b16 %v1931
      %v2283 = vunpack.c.h.b16 %v1931
      %v2284 = vunpack.c.l.b16 %v1932
      %v2285 = vunpack.c.h.b16 %v1932
      %v2286 = vunpack.c.l.b16 %v1933
      %v2287 = vunpack.c.h.b16 %v1933
      %v2288 = vunpack.c.l.b16 %v1934
      %v2289 = vunpack.c.h.b16 %v1934
      %v2290 = vunpack.c.l.b16 %v1935
      %v2291 = vunpack.c.h.b16 %v1935
      %v2292 = vunpack.c.l.b16 %v1936
      %v2293 = vunpack.c.h.b16 %v1936
      %v2294 = vunpack.c.l.b16 %v1937
      %v2295 = vunpack.c.h.b16 %v1937
      %v2296 = vunpack.c.l.b16 %v1938
      %v2297 = vunpack.c.h.b16 %v1938
      %v2298 = vunpack.c.l.b16 %v1939
      %v2299 = vunpack.c.h.b16 %v1939
      %v2300 = vunpack.c.l.b16 %v1940
      %v2301 = vunpack.c.h.b16 %v1940
      %v2302 = vunpack.c.l.b16 %v1941
      %v2303 = vunpack.c.h.b16 %v1941
      %v2304 = vunpack.c.l.b16 %v1942
      %v2305 = vunpack.c.h.b16 %v1942
      %v2306 = vunpack.c.l.b16 %v1943
      %v2307 = vunpack.c.h.b16 %v1943
      %v2308 = vunpack.c.l.b16 %v1944
      %v2309 = vunpack.c.h.b16 %v1944
      %v2310 = vunpack.c.l.b16 %v1945
      %v2311 = vunpack.c.h.b16 %v1945
      %v2312 = vunpack.c.l.b16 %v1946
      %v2313 = vunpack.c.h.b16 %v1946
      %v2314 = vunpack.c.l.b16 %v1947
      %v2315 = vunpack.c.h.b16 %v1947
      %v2316 = vunpack.c.l.b16 %v1948
      %v2317 = vunpack.c.h.b16 %v1948
      %v2318 = vunpack.c.l.b16 %v1949
      %v2319 = vunpack.c.h.b16 %v1949
      %v2320 = vunpack.c.l.b16 %v1950
      %v2321 = vunpack.c.h.b16 %v1950
      %v2322 = vunpack.c.l.b16 %v1951
      %v2323 = vunpack.c.h.b16 %v1951
      %v2324 = vunpack.c.l.b16 %v1952
      %v2325 = vunpack.c.h.b16 %v1952
      %v2326 = vunpack.c.l.b16 %v1953
      %v2327 = vunpack.c.h.b16 %v1953
      %v2328 = vunpack.c.l.b16 %v1954
      %v2329 = vunpack.c.h.b16 %v1954
      %v2330 = vunpack.c.l.b16 %v1955
      %v2331 = vunpack.c.h.b16 %v1955
      %v2332 = vunpack.c.l.b16 %v1956
      %v2333 = vunpack.c.h.b16 %v1956
      %v2334 = vunpack.c.l.b16 %v1957
      %v2335 = vunpack.c.h.b16 %v1957
      %v2336 = vunpack.c.l.b16 %v1958
      %v2337 = vunpack.c.h.b16 %v1958
      %v2338 = vunpack.c.l.b16 %v1959
      %v2339 = vunpack.c.h.b16 %v1959
      %v2340 = vunpack.c.l.b16 %v1960
      %v2341 = vunpack.c.h.b16 %v1960
      %v2342 = vunpack.c.l.b16 %v1961
      %v2343 = vunpack.c.h.b16 %v1961
      %v2344 = vunpack.c.l.b16 %v1962
      %v2345 = vunpack.c.h.b16 %v1962
      %v2346 = vunpack.c.l.b16 %v1963
      %v2347 = vunpack.c.h.b16 %v1963
      %v2348 = vunpack.c.l.b16 %v1964
      %v2349 = vunpack.c.h.b16 %v1964
      %v2350 = vunpack.c.l.b16 %v1965
      %v2351 = vunpack.c.h.b16 %v1965
      %v2352 = vunpack.c.l.b16 %v1966
      %v2353 = vunpack.c.h.b16 %v1966
      %v2354 = vunpack.c.l.b16 %v1967
      %v2355 = vunpack.c.h.b16 %v1967
      %v2356 = vunpack.c.l.b16 %v1968
      %v2357 = vunpack.c.h.b16 %v1968
      %v2358 = vunpack.c.l.b16 %v1969
      %v2359 = vunpack.c.h.b16 %v1969
      %v2360 = vunpack.c.l.b16 %v1970
      %v2361 = vunpack.c.h.b16 %v1970
      %v2362 = vunpack.c.l.b16 %v1971
      %v2363 = vunpack.c.h.b16 %v1971
      %v2364 = vunpack.c.l.b16 %v1972
      %v2365 = vunpack.c.h.b16 %v1972
      %v2366 = vunpack.c.l.b16 %v1973
      %v2367 = vunpack.c.h.b16 %v1973
      %v2368 = vunpack.c.l.b16 %v1974
      %v2369 = vunpack.c.h.b16 %v1974
      %v2370 = vunpack.c.l.b16 %v1975
      %v2371 = vunpack.c.h.b16 %v1975
      %v2372 = vunpack.c.l.b16 %v1976
      %v2373 = vunpack.c.h.b16 %v1976
      %v2374 = vunpack.c.l.b16 %v1977
      %v2375 = vunpack.c.h.b16 %v1977
      %v2376 = vunpack.c.l.b16 %v1978
      %v2377 = vunpack.c.h.b16 %v1978
      %v2378 = vunpack.c.l.b16 %v1979
      %v2379 = vunpack.c.h.b16 %v1979
      %v2380 = vunpack.c.l.b16 %v1980
      %v2381 = vunpack.c.h.b16 %v1980
      %v2382 = vunpack.c.l.b16 %v1981
      %v2383 = vunpack.c.h.b16 %v1981
      %v2384 = vunpack.c.l.b16 %v1982
      %v2385 = vunpack.c.h.b16 %v1982
      %v2386 = vunpack.c.l.b16 %v1983
      %v2387 = vunpack.c.h.b16 %v1983
      %v2388 = vunpack.c.l.b16 %v1984
      %v2389 = vunpack.c.h.b16 %v1984
      %v2390 = vunpack.c.l.b16 %v1985
      %v2391 = vunpack.c.h.b16 %v1985
      %v2392 = vunpack.c.l.b16 %v1986
      %v2393 = vunpack.c.h.b16 %v1986
      %v2394 = vunpack.c.l.b16 %v1987
      %v2395 = vunpack.c.h.b16 %v1987
      %v2396 = vunpack.c.l.b16 %v1988
      %v2397 = vunpack.c.h.b16 %v1988
      %v2398 = vunpack.c.l.b16 %v1989
      %v2399 = vunpack.c.h.b16 %v1989
      %v2400 = vunpack.c.l.b16 %v1990
      %v2401 = vunpack.c.h.b16 %v1990
      %v2402 = vunpack.c.l.b16 %v1991
      %v2403 = vunpack.c.h.b16 %v1991
      %v2404 = vunpack.c.l.b16 %v1992
      %v2405 = vunpack.c.h.b16 %v1992
      %v2406 = vunpack.c.l.b16 %v1993
      %v2407 = vunpack.c.h.b16 %v1993
      %v2408 = vunpack.c.l.b16 %v1994
      %v2409 = vunpack.c.h.b16 %v1994
      %v2410 = vunpack.c.l.b16 %v1995
      %v2411 = vunpack.c.h.b16 %v1995
      %v2412 = vunpack.c.l.b16 %v1996
      %v2413 = vunpack.c.h.b16 %v1996
      %v2414 = vunpack.c.l.b16 %v1997
      %v2415 = vunpack.c.h.b16 %v1997
      %v2416 = vunpack.c.l.b16 %v1998
      %v2417 = vunpack.c.h.b16 %v1998
      %v2418 = vunpack.c.l.b16 %v1999
      %v2419 = vunpack.c.h.b16 %v1999
      %v2420 = vunpack.c.l.b16 %v2000
      %v2421 = vunpack.c.h.b16 %v2000
      %v2422 = vunpack.c.l.b16 %v2001
      %v2423 = vunpack.c.h.b16 %v2001
      %v2424 = vunpack.c.l.b16 %v2002
      %v2425 = vunpack.c.h.b16 %v2002
      %v2426 = vunpack.c.l.b16 %v2003
      %v2427 = vunpack.c.h.b16 %v2003
      %v2428 = vunpack.c.l.b16 %v2004
      %v2429 = vunpack.c.h.b16 %v2004
      %v2430 = vunpack.c.l.b16 %v2005
      %v2431 = vunpack.c.h.b16 %v2005
      %v2432 = vunpack.c.l.b16 %v2006
      %v2433 = vunpack.c.h.b16 %v2006
      %v2434 = vunpack.c.l.b16 %v2007
      %v2435 = vunpack.c.h.b16 %v2007
      %v2436 = vunpack.c.l.b16 %v2008
      %v2437 = vunpack.c.h.b16 %v2008
      %v2438 = vunpack.c.l.b16 %v2009
      %v2439 = vunpack.c.h.b16 %v2009
      %v2440 = vunpack.c.l.b16 %v2010
      %v2441 = vunpack.c.h.b16 %v2010
      %v2442 = vunpack.c.l.b16 %v2011
      %v2443 = vunpack.c.h.b16 %v2011
      %v2444 = vunpack.c.l.b16 %v2012
      %v2445 = vunpack.c.h.b16 %v2012
      %v2446 = vunpack.c.l.b16 %v2013
      %v2447 = vunpack.c.h.b16 %v2013
      %v2448 = vunpack.c.l.b16 %v2014
      %v2449 = vunpack.c.h.b16 %v2014
      %v2450 = vunpack.c.l.b16 %v2015
      %v2451 = vunpack.c.h.b16 %v2015
      %v2452 = vunpack.c.l.b16 %v2016
      %v2453 = vunpack.c.h.b16 %v2016
      %v2454 = vunpack.c.l.b16 %v2017
      %v2455 = vunpack.c.h.b16 %v2017
      %v2456 = vunpack.c.l.b16 %v2018
      %v2457 = vunpack.c.h.b16 %v2018
      %v2458 = vunpack.c.l.b16 %v2019
      %v2459 = vunpack.c.h.b16 %v2019
      %v2460 = vunpack.c.l.b16 %v2020
      %v2461 = vunpack.c.h.b16 %v2020
      %v2462 = vunpack.c.l.b16 %v2021
      %v2463 = vunpack.c.h.b16 %v2021
      %v2464 = vunpack.c.l.b16 %v2022
      %v2465 = vunpack.c.h.b16 %v2022
      %v2466 = vunpack.c.l.b16 %v2023
      %v2467 = vunpack.c.h.b16 %v2023
      %v2468 = vunpack.c.l.b16 %v2024
      %v2469 = vunpack.c.h.b16 %v2024
      %v2470 = vunpack.c.l.b16 %v2025
      %v2471 = vunpack.c.h.b16 %v2025
      %v2472 = vunpack.c.l.b16 %v2026
      %v2473 = vunpack.c.h.b16 %v2026
      %v2474 = vunpack.c.l.b16 %v2027
      %v2475 = vunpack.c.h.b16 %v2027
      %v2476 = vunpack.c.l.b16 %v2028
      %v2477 = vunpack.c.h.b16 %v2028
      %v2478 = vunpack.c.l.b16 %v2029
      %v2479 = vunpack.c.h.b16 %v2029
      %v2480 = vunpack.c.l.b16 %v2030
      %v2481 = vunpack.c.h.b16 %v2030
      %v2482 = vunpack.c.l.b16 %v2031
      %v2483 = vunpack.c.h.b16 %v2031
      %v2484 = vunpack.c.l.b16 %v2032
      %v2485 = vunpack.c.h.b16 %v2032
      %v2486 = vunpack.c.l.b16 %v2033
      %v2487 = vunpack.c.h.b16 %v2033
      %v2488 = vunpack.c.l.b16 %v2034
      %v2489 = vunpack.c.h.b16 %v2034
      %v2490 = vunpack.c.l.b16 %v2035
      %v2491 = vunpack.c.h.b16 %v2035
      %v2492 = vpack.c.b16 %v2194, %v2192
      %v2493 = vpack.c.b16 %v2195, %v2193
      %v2494 = vpack.c.b16 %v2198, %v2196
      %v2495 = vpack.c.b16 %v2199, %v2197
      %v2496 = vpack.c.b16 %v2202, %v2200
      %v2497 = vpack.c.b16 %v2203, %v2201
      %v2498 = vpack.c.b16 %v2206, %v2204
      %v2499 = vpack.c.b16 %v2207, %v2205
      %v2500 = vpack.c.b16 %v2210, %v2208
      %v2501 = vpack.c.b16 %v2211, %v2209
      %v2502 = vpack.c.b16 %v2214, %v2212
      %v2503 = vpack.c.b16 %v2215, %v2213
      %v2504 = vpack.c.b16 %v2218, %v2216
      %v2505 = vpack.c.b16 %v2219, %v2217
      %v2506 = vpack.c.b16 %v2222, %v2220
      %v2507 = vpack.c.b16 %v2223, %v2221
      %v2508 = vpack.c.b16 %v2226, %v2224
      %v2509 = vpack.c.b16 %v2227, %v2225
      %v2510 = vpack.c.b16 %v2230, %v2228
      %v2511 = vpack.c.b16 %v2231, %v2229
      %v2512 = vpack.c.b16 %v2234, %v2232
      %v2513 = vpack.c.b16 %v2235, %v2233
      %v2514 = vpack.c.b16 %v2238, %v2236
      %v2515 = vpack.c.b16 %v2239, %v2237
      %v2516 = vpack.c.b16 %v2242, %v2240
      %v2517 = vpack.c.b16 %v2243, %v2241
      %v2518 = vpack.c.b16 %v2246, %v2244
      %v2519 = vpack.c.b16 %v2247, %v2245
      %v2520 = vpack.c.b16 %v2250, %v2248
      %v2521 = vpack.c.b16 %v2251, %v2249
      %v2522 = vpack.c.b16 %v2254, %v2252
      %v2523 = vpack.c.b16 %v2255, %v2253
      %v2524 = vpack.c.b16 %v2258, %v2256
      %v2525 = vpack.c.b16 %v2259, %v2257
      %v2526 = vpack.c.b16 %v2262, %v2260
      %v2527 = vpack.c.b16 %v2263, %v2261
      %v2528 = vpack.c.b16 %v2266, %v2264
      %v2529 = vpack.c.b16 %v2267, %v2265
      %v2530 = vpack.c.b16 %v2270, %v2268
      %v2531 = vpack.c.b16 %v2271, %v2269
      %v2532 = vpack.c.b16 %v2274, %v2272
      %v2533 = vpack.c.b16 %v2275, %v2273
      %v2534 = vpack.c.b16 %v2278, %v2276
      %v2535 = vpack.c.b16 %v2279, %v2277
      %v2536 = vpack.c.b16 %v2282, %v2280
      %v2537 = vpack.c.b16 %v2283, %v2281
      %v2538 = vpack.c.b16 %v2286, %v2284
      %v2539 = vpack.c.b16 %v2287, %v2285
      %v2540 = vpack.c.b16 %v2290, %v2288
      %v2541 = vpack.c.b16 %v2291, %v2289
      %v2542 = vpack.c.b16 %v2294, %v2292
      %v2543 = vpack.c.b16 %v2295, %v2293
      %v2544 = vpack.c.b16 %v2298, %v2296
      %v2545 = vpack.c.b16 %v2299, %v2297
      %v2546 = vpack.c.b16 %v2302, %v2300
      %v2547 = vpack.c.b16 %v2303, %v2301
      %v2548 = vpack.c.b16 %v2306, %v2304
      %v2549 = vpack.c.b16 %v2307, %v2305
      %v2550 = vpack.c.b16 %v2310, %v2308
      %v2551 = vpack.c.b16 %v2311, %v2309
      %v2552 = vpack.c.b16 %v2314, %v2312
      %v2553 = vpack.c.b16 %v2315, %v2313
      %v2554 = vpack.c.b16 %v2318, %v2316
      %v2555 = vpack.c.b16 %v2319, %v2317
      %v2556 = vpack.c.b16 %v2322, %v2320
      %v2557 = vpack.c.b16 %v2323, %v2321
      %v2558 = vpack.c.b16 %v2326, %v2324
      %v2559 = vpack.c.b16 %v2327, %v2325
      %v2560 = vpack.c.b16 %v2330, %v2328
      %v2561 = vpack.c.b16 %v2331, %v2329
      %v2562 = vpack.c.b16 %v2334, %v2332
      %v2563 = vpack.c.b16 %v2335, %v2333
      %v2564 = vpack.c.b16 %v2338, %v2336
      %v2565 = vpack.c.b16 %v2339, %v2337
      %v2566 = vpack.c.b16 %v2342, %v2340
      %v2567 = vpack.c.b16 %v2343, %v2341
      %v2568 = vpack.c.b16 %v2346, %v2344
      %v2569 = vpack.c.b16 %v2347, %v2345
      %v2570 = vpack.c.b16 %v2350, %v2348
      %v2571 = vpack.c.b16 %v2351, %v2349
      %v2572 = vpack.c.b16 %v2354, %v2352
      %v2573 = vpack.c.b16 %v2355, %v2353
      %v2574 = vpack.c.b16 %v2358, %v2356
      %v2575 = vpack.c.b16 %v2359, %v2357
      %v2576 = vpack.c.b16 %v2362, %v2360
      %v2577 = vpack.c.b16 %v2363, %v2361
      %v2578 = vpack.c.b16 %v2366, %v2364
      %v2579 = vpack.c.b16 %v2367, %v2365
      %v2580 = vpack.c.b16 %v2370, %v2368
      %v2581 = vpack.c.b16 %v2371, %v2369
      %v2582 = vpack.c.b16 %v2374, %v2372
      %v2583 = vpack.c.b16 %v2375, %v2373
      %v2584 = vpack.c.b16 %v2378, %v2376
      %v2585 = vpack.c.b16 %v2379, %v2377
      %v2586 = vpack.c.b16 %v2382, %v2380
      %v2587 = vpack.c.b16 %v2383, %v2381
      %v2588 = vpack.c.b16 %v2386, %v2384
      %v2589 = vpack.c.b16 %v2387, %v2385
      %v2590 = vpack.c.b16 %v2390, %v2388
      %v2591 = vpack.c.b16 %v2391, %v2389
      %v2592 = vpack.c.b16 %v2394, %v2392
      %v2593 = vpack.c.b16 %v2395, %v2393
      %v2594 = vpack.c.b16 %v2398, %v2396
      %v2595 = vpack.c.b16 %v2399, %v2397
      %v2596 = vpack.c.b16 %v2402, %v2400
      %v2597 = vpack.c.b16 %v2403, %v2401
      %v2598 = vpack.c.b16 %v2406, %v2404
      %v2599 = vpack.c.b16 %v2407, %v2405
      %v2600 = vpack.c.b16 %v2410, %v2408
      %v2601 = vpack.c.b16 %v2411, %v2409
      %v2602 = vpack.c.b16 %v2414, %v2412
      %v2603 = vpack.c.b16 %v2415, %v2413
      %v2604 = vpack.c.b16 %v2418, %v2416
      %v2605 = vpack.c.b16 %v2419, %v2417
      %v2606 = vpack.c.b16 %v2422, %v2420
      %v2607 = vpack.c.b16 %v2423, %v2421
      %v2608 = vpack.c.b16 %v2426, %v2424
      %v2609 = vpack.c.b16 %v2427, %v2425
      %v2610 = vpack.c.b16 %v2430, %v2428
      %v2611 = vpack.c.b16 %v2431, %v2429
      %v2612 = vpack.c.b16 %v2434, %v2432
      %v2613 = vpack.c.b16 %v2435, %v2433
      %v2614 = vpack.c.b16 %v2438, %v2436
      %v2615 = vpack.c.b16 %v2439, %v2437
      %v2616 = vpack.c.b16 %v2442, %v2440
      %v2617 = vpack.c.b16 %v2443, %v2441
      %v2618 = vpack.c.b16 %v2446, %v2444
      %v2619 = vpack.c.b16 %v2447, %v2445
      %v2620 = vpack.c.b16 %v2450, %v2448
      %v2621 = vpack.c.b16 %v2451, %v2449
      %v2622 = vpack.c.b16 %v2454, %v2452
      %v2623 = vpack.c.b16 %v2455, %v2453
      %v2624 = vpack.c.b16 %v2458, %v2456
      %v2625 = vpack.c.b16 %v2459, %v2457
      %v2626 = vpack.c.b16 %v2462, %v2460
      %v2627 = vpack.c.b16 %v2463, %v2461
      %v2628 = vpack.c.b16 %v2466, %v2464
      %v2629 = vpack.c.b16 %v2467, %v2465
      %v2630 = vpack.c.b16 %v2470, %v2468
      %v2631 = vpack.c.b16 %v2471, %v2469
      %v2632 = vpack.c.b16 %v2474, %v2472
      %v2633 = vpack.c.b16 %v2475, %v2473
      %v2634 = vpack.c.b16 %v2478, %v2476
      %v2635 = vpack.c.b16 %v2479, %v2477
      %v2636 = vpack.c.b16 %v2482, %v2480
      %v2637 = vpack.c.b16 %v2483, %v2481
      %v2638 = vpack.c.b16 %v2486, %v2484
      %v2639 = vpack.c.b16 %v2487, %v2485
      %v2640 = vpack.c.b16 %v2490, %v2488
      %v2641 = vpack.c.b16 %v2491, %v2489
      %vm2792 = vcmask 392192
      %v2794 = vsel %vm2792, %v1855, 0
      %v2797 = vsel %vm2792, %v1865, 0
      %v2800 = vsel %vm2792, %v1875, 0
      %v2803 = vsel %vm2792, %v1885, 0
      %2805 = vmatpush.bf16.msra.mxu0 %v2506
      %2806 = vmatpush.bf16.msra.mxu0 %v2504
      %2807 = vmatpush.bf16.msra.mxu0 %v2502
      %2808 = vmatpush.bf16.msra.mxu0 %v2500
      %2809 = vmatpush.bf16.msra.mxu0 %v2498
      %2810 = vmatpush.bf16.msra.mxu0 %v2496
      %2811 = vmatpush.bf16.msra.mxu0 %v2494
      %2812 = vmatpush.bf16.msra.mxu0 %v2492
      %2813 = vmatmul.bf16.gmra.mxu0 %v1846
      %v2814 = vpop.f32.mrf.mxu0
      %v2815 = vadd.f32 %v2038, %v2814
      %v2816 = vpop.f32.mrf.mxu0
      %v2817 = vadd.f32 %v2038, %v2816
      %2818 = vmatmul.bf16.gmra.mxu0 %v1856
      %v2819 = vpop.f32.mrf.mxu0
      %v2820 = vadd.f32 %v2038, %v2819
      %v2821 = vpop.f32.mrf.mxu0
      %v2822 = vadd.f32 %v2038, %v2821
      %2823 = vmatmul.bf16.gmra.mxu0 %v1866
      %v2824 = vpop.f32.mrf.mxu0
      %v2825 = vadd.f32 %v2038, %v2824
      %v2826 = vpop.f32.mrf.mxu0
      %v2827 = vadd.f32 %v2038, %v2826
      %2828 = vmatmul.bf16.gmra.mxu0 %v1876
      %v2829 = vpop.f32.mrf.mxu0
      %v2830 = vadd.f32 %v2038, %v2829
      %v2831 = vpop.f32.mrf.mxu0
      %v2832 = vadd.f32 %v2038, %v2831
      %2833 = vdwg.mxu0
      %2834 = vmatpush.bf16.msra.mxu0 %v2522
      %2835 = vmatpush.bf16.msra.mxu0 %v2520
      %2836 = vmatpush.bf16.msra.mxu0 %v2518
      %2837 = vmatpush.bf16.msra.mxu0 %v2516
      %2838 = vmatpush.bf16.msra.mxu0 %v2514
      %2839 = vmatpush.bf16.msra.mxu0 %v2512
      %2840 = vmatpush.bf16.msra.mxu0 %v2510
      %2841 = vmatpush.bf16.msra.mxu0 %v2508
      %2842 = vmatmul.bf16.gmra.mxu0 %v1847
      %v2843 = vpop.f32.mrf.mxu0
      %v2844 = vadd.f32 %v2815, %v2843
      %v2845 = vpop.f32.mrf.mxu0
      %v2846 = vadd.f32 %v2817, %v2845
      %2847 = vmatmul.bf16.gmra.mxu0 %v1857
      %v2848 = vpop.f32.mrf.mxu0
      %v2849 = vadd.f32 %v2820, %v2848
      %v2850 = vpop.f32.mrf.mxu0
      %v2851 = vadd.f32 %v2822, %v2850
      %2852 = vmatmul.bf16.gmra.mxu0 %v1867
      %v2853 = vpop.f32.mrf.mxu0
      %v2854 = vadd.f32 %v2825, %v2853
      %v2855 = vpop.f32.mrf.mxu0
      %v2856 = vadd.f32 %v2827, %v2855
      %2857 = vmatmul.bf16.gmra.mxu0 %v1877
      %v2858 = vpop.f32.mrf.mxu0
      %v2859 = vadd.f32 %v2830, %v2858
      %v2860 = vpop.f32.mrf.mxu0
      %v2861 = vadd.f32 %v2832, %v2860
      %2862 = vdwg.mxu0
      %2863 = vmatpush.bf16.msra.mxu0 %v2538
      %2864 = vmatpush.bf16.msra.mxu0 %v2536
      %2865 = vmatpush.bf16.msra.mxu0 %v2534
      %2866 = vmatpush.bf16.msra.mxu0 %v2532
      %2867 = vmatpush.bf16.msra.mxu0 %v2530
      %2868 = vmatpush.bf16.msra.mxu0 %v2528
      %2869 = vmatpush.bf16.msra.mxu0 %v2526
      %2870 = vmatpush.bf16.msra.mxu0 %v2524
      %2871 = vmatmul.bf16.gmra.mxu0 %v1848
      %v2872 = vpop.f32.mrf.mxu0
      %v2873 = vadd.f32 %v2844, %v2872
      %v2874 = vpop.f32.mrf.mxu0
      %v2875 = vadd.f32 %v2846, %v2874
      %2876 = vmatmul.bf16.gmra.mxu0 %v1858
      %v2877 = vpop.f32.mrf.mxu0
      %v2878 = vadd.f32 %v2849, %v2877
      %v2879 = vpop.f32.mrf.mxu0
      %v2880 = vadd.f32 %v2851, %v2879
      %2881 = vmatmul.bf16.gmra.mxu0 %v1868
      %v2882 = vpop.f32.mrf.mxu0
      %v2883 = vadd.f32 %v2854, %v2882
      %v2884 = vpop.f32.mrf.mxu0
      %v2885 = vadd.f32 %v2856, %v2884
      %2886 = vmatmul.bf16.gmra.mxu0 %v1878
      %v2887 = vpop.f32.mrf.mxu0
      %v2888 = vadd.f32 %v2859, %v2887
      %v2889 = vpop.f32.mrf.mxu0
      %v2890 = vadd.f32 %v2861, %v2889
      %2891 = vdwg.mxu0
      %2892 = vmatpush.bf16.msra.mxu0 %v2554
      %2893 = vmatpush.bf16.msra.mxu0 %v2552
      %2894 = vmatpush.bf16.msra.mxu0 %v2550
      %2895 = vmatpush.bf16.msra.mxu0 %v2548
      %2896 = vmatpush.bf16.msra.mxu0 %v2546
      %2897 = vmatpush.bf16.msra.mxu0 %v2544
      %2898 = vmatpush.bf16.msra.mxu0 %v2542
      %2899 = vmatpush.bf16.msra.mxu0 %v2540
      %2900 = vmatmul.bf16.gmra.mxu0 %v1849
      %v2901 = vpop.f32.mrf.mxu0
      %v2902 = vadd.f32 %v2873, %v2901
      %v2903 = vpop.f32.mrf.mxu0
      %v2904 = vadd.f32 %v2875, %v2903
      %2905 = vmatmul.bf16.gmra.mxu0 %v1859
      %v2906 = vpop.f32.mrf.mxu0
      %v2907 = vadd.f32 %v2878, %v2906
      %v2908 = vpop.f32.mrf.mxu0
      %v2909 = vadd.f32 %v2880, %v2908
      %2910 = vmatmul.bf16.gmra.mxu0 %v1869
      %v2911 = vpop.f32.mrf.mxu0
      %v2912 = vadd.f32 %v2883, %v2911
      %v2913 = vpop.f32.mrf.mxu0
      %v2914 = vadd.f32 %v2885, %v2913
      %2915 = vmatmul.bf16.gmra.mxu0 %v1879
      %v2916 = vpop.f32.mrf.mxu0
      %v2917 = vadd.f32 %v2888, %v2916
      %v2918 = vpop.f32.mrf.mxu0
      %v2919 = vadd.f32 %v2890, %v2918
      %2920 = vdwg.mxu0
      %2921 = vmatpush.bf16.msra.mxu0 %v2570
      %2922 = vmatpush.bf16.msra.mxu0 %v2568
      %2923 = vmatpush.bf16.msra.mxu0 %v2566
      %2924 = vmatpush.bf16.msra.mxu0 %v2564
      %2925 = vmatpush.bf16.msra.mxu0 %v2562
      %2926 = vmatpush.bf16.msra.mxu0 %v2560
      %2927 = vmatpush.bf16.msra.mxu0 %v2558
      %2928 = vmatpush.bf16.msra.mxu0 %v2556
      %2929 = vmatmul.bf16.gmra.mxu0 %v1850
      %v2930 = vpop.f32.mrf.mxu0
      %v2931 = vadd.f32 %v2902, %v2930
      %v2932 = vpop.f32.mrf.mxu0
      %v2933 = vadd.f32 %v2904, %v2932
      %2934 = vmatmul.bf16.gmra.mxu0 %v1860
      %v2935 = vpop.f32.mrf.mxu0
      %v2936 = vadd.f32 %v2907, %v2935
      %v2937 = vpop.f32.mrf.mxu0
      %v2938 = vadd.f32 %v2909, %v2937
      %2939 = vmatmul.bf16.gmra.mxu0 %v1870
      %v2940 = vpop.f32.mrf.mxu0
      %v2941 = vadd.f32 %v2912, %v2940
      %v2942 = vpop.f32.mrf.mxu0
      %v2943 = vadd.f32 %v2914, %v2942
      %2944 = vmatmul.bf16.gmra.mxu0 %v1880
      %v2945 = vpop.f32.mrf.mxu0
      %v2946 = vadd.f32 %v2917, %v2945
      %v2947 = vpop.f32.mrf.mxu0
      %v2948 = vadd.f32 %v2919, %v2947
      %2949 = vdwg.mxu0
      %2950 = vmatpush.bf16.msra.mxu0 %v2586
      %2951 = vmatpush.bf16.msra.mxu0 %v2584
      %2952 = vmatpush.bf16.msra.mxu0 %v2582
      %2953 = vmatpush.bf16.msra.mxu0 %v2580
      %2954 = vmatpush.bf16.msra.mxu0 %v2578
      %2955 = vmatpush.bf16.msra.mxu0 %v2576
      %2956 = vmatpush.bf16.msra.mxu0 %v2574
      %2957 = vmatpush.bf16.msra.mxu0 %v2572
      %2958 = vmatmul.bf16.gmra.mxu0 %v1851
      %v2959 = vpop.f32.mrf.mxu0
      %v2960 = vadd.f32 %v2931, %v2959
      %v2961 = vpop.f32.mrf.mxu0
      %v2962 = vadd.f32 %v2933, %v2961
      %2963 = vmatmul.bf16.gmra.mxu0 %v1861
      %v2964 = vpop.f32.mrf.mxu0
      %v2965 = vadd.f32 %v2936, %v2964
      %v2966 = vpop.f32.mrf.mxu0
      %v2967 = vadd.f32 %v2938, %v2966
      %2968 = vmatmul.bf16.gmra.mxu0 %v1871
      %v2969 = vpop.f32.mrf.mxu0
      %v2970 = vadd.f32 %v2941, %v2969
      %v2971 = vpop.f32.mrf.mxu0
      %v2972 = vadd.f32 %v2943, %v2971
      %2973 = vmatmul.bf16.gmra.mxu0 %v1881
      %v2974 = vpop.f32.mrf.mxu0
      %v2975 = vadd.f32 %v2946, %v2974
      %v2976 = vpop.f32.mrf.mxu0
      %v2977 = vadd.f32 %v2948, %v2976
      %2978 = vdwg.mxu0
      %2979 = vmatpush.bf16.msra.mxu0 %v2602
      %2980 = vmatpush.bf16.msra.mxu0 %v2600
      %2981 = vmatpush.bf16.msra.mxu0 %v2598
      %2982 = vmatpush.bf16.msra.mxu0 %v2596
      %2983 = vmatpush.bf16.msra.mxu0 %v2594
      %2984 = vmatpush.bf16.msra.mxu0 %v2592
      %2985 = vmatpush.bf16.msra.mxu0 %v2590
      %2986 = vmatpush.bf16.msra.mxu0 %v2588
      %2987 = vmatmul.bf16.gmra.mxu0 %v1852
      %v2988 = vpop.f32.mrf.mxu0
      %v2989 = vadd.f32 %v2960, %v2988
      %v2990 = vpop.f32.mrf.mxu0
      %v2991 = vadd.f32 %v2962, %v2990
      %2992 = vmatmul.bf16.gmra.mxu0 %v1862
      %v2993 = vpop.f32.mrf.mxu0
      %v2994 = vadd.f32 %v2965, %v2993
      %v2995 = vpop.f32.mrf.mxu0
      %v2996 = vadd.f32 %v2967, %v2995
      %2997 = vmatmul.bf16.gmra.mxu0 %v1872
      %v2998 = vpop.f32.mrf.mxu0
      %v2999 = vadd.f32 %v2970, %v2998
      %v3000 = vpop.f32.mrf.mxu0
      %v3001 = vadd.f32 %v2972, %v3000
      %3002 = vmatmul.bf16.gmra.mxu0 %v1882
      %v3003 = vpop.f32.mrf.mxu0
      %v3004 = vadd.f32 %v2975, %v3003
      %v3005 = vpop.f32.mrf.mxu0
      %v3006 = vadd.f32 %v2977, %v3005
      %3007 = vdwg.mxu0
      %3008 = vmatpush.bf16.msra.mxu0 %v2618
      %3009 = vmatpush.bf16.msra.mxu0 %v2616
      %3010 = vmatpush.bf16.msra.mxu0 %v2614
      %3011 = vmatpush.bf16.msra.mxu0 %v2612
      %3012 = vmatpush.bf16.msra.mxu0 %v2610
      %3013 = vmatpush.bf16.msra.mxu0 %v2608
      %3014 = vmatpush.bf16.msra.mxu0 %v2606
      %3015 = vmatpush.bf16.msra.mxu0 %v2604
      %3016 = vmatmul.bf16.gmra.mxu0 %v1853
      %v3017 = vpop.f32.mrf.mxu0
      %v3018 = vadd.f32 %v2989, %v3017
      %v3019 = vpop.f32.mrf.mxu0
      %v3020 = vadd.f32 %v2991, %v3019
      %3021 = vmatmul.bf16.gmra.mxu0 %v1863
      %v3022 = vpop.f32.mrf.mxu0
      %v3023 = vadd.f32 %v2994, %v3022
      %v3024 = vpop.f32.mrf.mxu0
      %v3025 = vadd.f32 %v2996, %v3024
      %3026 = vmatmul.bf16.gmra.mxu0 %v1873
      %v3027 = vpop.f32.mrf.mxu0
      %v3028 = vadd.f32 %v2999, %v3027
      %v3029 = vpop.f32.mrf.mxu0
      %v3030 = vadd.f32 %v3001, %v3029
      %3031 = vmatmul.bf16.gmra.mxu0 %v1883
      %v3032 = vpop.f32.mrf.mxu0
      %v3033 = vadd.f32 %v3004, %v3032
      %v3034 = vpop.f32.mrf.mxu0
      %v3035 = vadd.f32 %v3006, %v3034
      %3036 = vdwg.mxu0
      %3037 = vmatpush.bf16.msra.mxu0 %v2634
      %3038 = vmatpush.bf16.msra.mxu0 %v2632
      %3039 = vmatpush.bf16.msra.mxu0 %v2630
      %3040 = vmatpush.bf16.msra.mxu0 %v2628
      %3041 = vmatpush.bf16.msra.mxu0 %v2626
      %3042 = vmatpush.bf16.msra.mxu0 %v2624
      %3043 = vmatpush.bf16.msra.mxu0 %v2622
      %3044 = vmatpush.bf16.msra.mxu0 %v2620
      %3045 = vmatmul.bf16.gmra.mxu0 %v1854
      %v3046 = vpop.f32.mrf.mxu0
      %v3047 = vadd.f32 %v3018, %v3046
      %v3048 = vpop.f32.mrf.mxu0
      %v3049 = vadd.f32 %v3020, %v3048
      %3050 = vmatmul.bf16.gmra.mxu0 %v1864
      %v3051 = vpop.f32.mrf.mxu0
      %v3052 = vadd.f32 %v3023, %v3051
      %v3053 = vpop.f32.mrf.mxu0
      %v3054 = vadd.f32 %v3025, %v3053
      %3055 = vmatmul.bf16.gmra.mxu0 %v1874
      %v3056 = vpop.f32.mrf.mxu0
      %v3057 = vadd.f32 %v3028, %v3056
      %v3058 = vpop.f32.mrf.mxu0
      %v3059 = vadd.f32 %v3030, %v3058
      %3060 = vmatmul.bf16.gmra.mxu0 %v1884
      %v3061 = vpop.f32.mrf.mxu0
      %v3062 = vadd.f32 %v3033, %v3061
      %v3063 = vpop.f32.mrf.mxu0
      %v3064 = vadd.f32 %v3035, %v3063
      %3065 = vdwg.mxu0
      %3066 = vmatpush.bf16.msra.mxu0 0
      %3067 = vmatpush.bf16.msra.mxu0 0
      %3068 = vmatpush.bf16.msra.mxu0 0
      %3069 = vmatpush.bf16.msra.mxu0 0
      %3070 = vmatpush.bf16.msra.mxu0 0
      %3071 = vmatpush.bf16.msra.mxu0 %v2640
      %3072 = vmatpush.bf16.msra.mxu0 %v2638
      %3073 = vmatpush.bf16.msra.mxu0 %v2636
      %3074 = vmatmul.bf16.gmra.mxu0 %v2794
      %v3075 = vpop.f32.mrf.mxu0
      %v3076 = vadd.f32 %v3047, %v3075
      %v3077 = vpop.f32.mrf.mxu0
      %v3078 = vadd.f32 %v3049, %v3077
      %3079 = vmatmul.bf16.gmra.mxu0 %v2797
      %v3080 = vpop.f32.mrf.mxu0
      %v3081 = vadd.f32 %v3052, %v3080
      %v3082 = vpop.f32.mrf.mxu0
      %v3083 = vadd.f32 %v3054, %v3082
      %3084 = vmatmul.bf16.gmra.mxu0 %v2800
      %v3085 = vpop.f32.mrf.mxu0
      %v3086 = vadd.f32 %v3057, %v3085
      %v3087 = vpop.f32.mrf.mxu0
      %v3088 = vadd.f32 %v3059, %v3087
      %3089 = vmatmul.bf16.gmra.mxu0 %v2803
      %v3090 = vpop.f32.mrf.mxu0
      %v3091 = vadd.f32 %v3062, %v3090
      %v3092 = vpop.f32.mrf.mxu0
      %v3093 = vadd.f32 %v3064, %v3092
      %3094 = vdwg.mxu0
      %3095 = vmatpush.bf16.msra.mxu0 %v2507
      %3096 = vmatpush.bf16.msra.mxu0 %v2505
      %3097 = vmatpush.bf16.msra.mxu0 %v2503
      %3098 = vmatpush.bf16.msra.mxu0 %v2501
      %3099 = vmatpush.bf16.msra.mxu0 %v2499
      %3100 = vmatpush.bf16.msra.mxu0 %v2497
      %3101 = vmatpush.bf16.msra.mxu0 %v2495
      %3102 = vmatpush.bf16.msra.mxu0 %v2493
      %3103 = vmatmul.bf16.gmra.mxu0 %v1846
      %v3104 = vpop.f32.mrf.mxu0
      %v3105 = vadd.f32 %v2039, %v3104
      %v3106 = vpop.f32.mrf.mxu0
      %v3107 = vadd.f32 %v2039, %v3106
      %3108 = vmatmul.bf16.gmra.mxu0 %v1856
      %v3109 = vpop.f32.mrf.mxu0
      %v3110 = vadd.f32 %v2039, %v3109
      %v3111 = vpop.f32.mrf.mxu0
      %v3112 = vadd.f32 %v2039, %v3111
      %3113 = vmatmul.bf16.gmra.mxu0 %v1866
      %v3114 = vpop.f32.mrf.mxu0
      %v3115 = vadd.f32 %v2039, %v3114
      %v3116 = vpop.f32.mrf.mxu0
      %v3117 = vadd.f32 %v2039, %v3116
      %3118 = vmatmul.bf16.gmra.mxu0 %v1876
      %v3119 = vpop.f32.mrf.mxu0
      %v3120 = vadd.f32 %v2039, %v3119
      %v3121 = vpop.f32.mrf.mxu0
      %v3122 = vadd.f32 %v2039, %v3121
      %3123 = vdwg.mxu0
      %3124 = vmatpush.bf16.msra.mxu0 %v2523
      %3125 = vmatpush.bf16.msra.mxu0 %v2521
      %3126 = vmatpush.bf16.msra.mxu0 %v2519
      %3127 = vmatpush.bf16.msra.mxu0 %v2517
      %3128 = vmatpush.bf16.msra.mxu0 %v2515
      %3129 = vmatpush.bf16.msra.mxu0 %v2513
      %3130 = vmatpush.bf16.msra.mxu0 %v2511
      %3131 = vmatpush.bf16.msra.mxu0 %v2509
      %3132 = vmatmul.bf16.gmra.mxu0 %v1847
      %v3133 = vpop.f32.mrf.mxu0
      %v3134 = vadd.f32 %v3105, %v3133
      %v3135 = vpop.f32.mrf.mxu0
      %v3136 = vadd.f32 %v3107, %v3135
      %3137 = vmatmul.bf16.gmra.mxu0 %v1857
      %v3138 = vpop.f32.mrf.mxu0
      %v3139 = vadd.f32 %v3110, %v3138
      %v3140 = vpop.f32.mrf.mxu0
      %v3141 = vadd.f32 %v3112, %v3140
      %3142 = vmatmul.bf16.gmra.mxu0 %v1867
      %v3143 = vpop.f32.mrf.mxu0
      %v3144 = vadd.f32 %v3115, %v3143
      %v3145 = vpop.f32.mrf.mxu0
      %v3146 = vadd.f32 %v3117, %v3145
      %3147 = vmatmul.bf16.gmra.mxu0 %v1877
      %v3148 = vpop.f32.mrf.mxu0
      %v3149 = vadd.f32 %v3120, %v3148
      %v3150 = vpop.f32.mrf.mxu0
      %v3151 = vadd.f32 %v3122, %v3150
      %3152 = vdwg.mxu0
      %3153 = vmatpush.bf16.msra.mxu0 %v2539
      %3154 = vmatpush.bf16.msra.mxu0 %v2537
      %3155 = vmatpush.bf16.msra.mxu0 %v2535
      %3156 = vmatpush.bf16.msra.mxu0 %v2533
      %3157 = vmatpush.bf16.msra.mxu0 %v2531
      %3158 = vmatpush.bf16.msra.mxu0 %v2529
      %3159 = vmatpush.bf16.msra.mxu0 %v2527
      %3160 = vmatpush.bf16.msra.mxu0 %v2525
      %3161 = vmatmul.bf16.gmra.mxu0 %v1848
      %v3162 = vpop.f32.mrf.mxu0
      %v3163 = vadd.f32 %v3134, %v3162
      %v3164 = vpop.f32.mrf.mxu0
      %v3165 = vadd.f32 %v3136, %v3164
      %3166 = vmatmul.bf16.gmra.mxu0 %v1858
      %v3167 = vpop.f32.mrf.mxu0
      %v3168 = vadd.f32 %v3139, %v3167
      %v3169 = vpop.f32.mrf.mxu0
      %v3170 = vadd.f32 %v3141, %v3169
      %3171 = vmatmul.bf16.gmra.mxu0 %v1868
      %v3172 = vpop.f32.mrf.mxu0
      %v3173 = vadd.f32 %v3144, %v3172
      %v3174 = vpop.f32.mrf.mxu0
      %v3175 = vadd.f32 %v3146, %v3174
      %3176 = vmatmul.bf16.gmra.mxu0 %v1878
      %v3177 = vpop.f32.mrf.mxu0
      %v3178 = vadd.f32 %v3149, %v3177
      %v3179 = vpop.f32.mrf.mxu0
      %v3180 = vadd.f32 %v3151, %v3179
      %3181 = vdwg.mxu0
      %3182 = vmatpush.bf16.msra.mxu0 %v2555
      %3183 = vmatpush.bf16.msra.mxu0 %v2553
      %3184 = vmatpush.bf16.msra.mxu0 %v2551
      %3185 = vmatpush.bf16.msra.mxu0 %v2549
      %3186 = vmatpush.bf16.msra.mxu0 %v2547
      %3187 = vmatpush.bf16.msra.mxu0 %v2545
      %3188 = vmatpush.bf16.msra.mxu0 %v2543
      %3189 = vmatpush.bf16.msra.mxu0 %v2541
      %3190 = vmatmul.bf16.gmra.mxu0 %v1849
      %v3191 = vpop.f32.mrf.mxu0
      %v3192 = vadd.f32 %v3163, %v3191
      %v3193 = vpop.f32.mrf.mxu0
      %v3194 = vadd.f32 %v3165, %v3193
      %3195 = vmatmul.bf16.gmra.mxu0 %v1859
      %v3196 = vpop.f32.mrf.mxu0
      %v3197 = vadd.f32 %v3168, %v3196
      %v3198 = vpop.f32.mrf.mxu0
      %v3199 = vadd.f32 %v3170, %v3198
      %3200 = vmatmul.bf16.gmra.mxu0 %v1869
      %v3201 = vpop.f32.mrf.mxu0
      %v3202 = vadd.f32 %v3173, %v3201
      %v3203 = vpop.f32.mrf.mxu0
      %v3204 = vadd.f32 %v3175, %v3203
      %3205 = vmatmul.bf16.gmra.mxu0 %v1879
      %v3206 = vpop.f32.mrf.mxu0
      %v3207 = vadd.f32 %v3178, %v3206
      %v3208 = vpop.f32.mrf.mxu0
      %v3209 = vadd.f32 %v3180, %v3208
      %3210 = vdwg.mxu0
      %3211 = vmatpush.bf16.msra.mxu0 %v2571
      %3212 = vmatpush.bf16.msra.mxu0 %v2569
      %3213 = vmatpush.bf16.msra.mxu0 %v2567
      %3214 = vmatpush.bf16.msra.mxu0 %v2565
      %3215 = vmatpush.bf16.msra.mxu0 %v2563
      %3216 = vmatpush.bf16.msra.mxu0 %v2561
      %3217 = vmatpush.bf16.msra.mxu0 %v2559
      %3218 = vmatpush.bf16.msra.mxu0 %v2557
      %3219 = vmatmul.bf16.gmra.mxu0 %v1850
      %v3220 = vpop.f32.mrf.mxu0
      %v3221 = vadd.f32 %v3192, %v3220
      %v3222 = vpop.f32.mrf.mxu0
      %v3223 = vadd.f32 %v3194, %v3222
      %3224 = vmatmul.bf16.gmra.mxu0 %v1860
      %v3225 = vpop.f32.mrf.mxu0
      %v3226 = vadd.f32 %v3197, %v3225
      %v3227 = vpop.f32.mrf.mxu0
      %v3228 = vadd.f32 %v3199, %v3227
      %3229 = vmatmul.bf16.gmra.mxu0 %v1870
      %v3230 = vpop.f32.mrf.mxu0
      %v3231 = vadd.f32 %v3202, %v3230
      %v3232 = vpop.f32.mrf.mxu0
      %v3233 = vadd.f32 %v3204, %v3232
      %3234 = vmatmul.bf16.gmra.mxu0 %v1880
      %v3235 = vpop.f32.mrf.mxu0
      %v3236 = vadd.f32 %v3207, %v3235
      %v3237 = vpop.f32.mrf.mxu0
      %v3238 = vadd.f32 %v3209, %v3237
      %3239 = vdwg.mxu0
      %3240 = vmatpush.bf16.msra.mxu0 %v2587
      %3241 = vmatpush.bf16.msra.mxu0 %v2585
      %3242 = vmatpush.bf16.msra.mxu0 %v2583
      %3243 = vmatpush.bf16.msra.mxu0 %v2581
      %3244 = vmatpush.bf16.msra.mxu0 %v2579
      %3245 = vmatpush.bf16.msra.mxu0 %v2577
      %3246 = vmatpush.bf16.msra.mxu0 %v2575
      %3247 = vmatpush.bf16.msra.mxu0 %v2573
      %3248 = vmatmul.bf16.gmra.mxu0 %v1851
      %v3249 = vpop.f32.mrf.mxu0
      %v3250 = vadd.f32 %v3221, %v3249
      %v3251 = vpop.f32.mrf.mxu0
      %v3252 = vadd.f32 %v3223, %v3251
      %3253 = vmatmul.bf16.gmra.mxu0 %v1861
      %v3254 = vpop.f32.mrf.mxu0
      %v3255 = vadd.f32 %v3226, %v3254
      %v3256 = vpop.f32.mrf.mxu0
      %v3257 = vadd.f32 %v3228, %v3256
      %3258 = vmatmul.bf16.gmra.mxu0 %v1871
      %v3259 = vpop.f32.mrf.mxu0
      %v3260 = vadd.f32 %v3231, %v3259
      %v3261 = vpop.f32.mrf.mxu0
      %v3262 = vadd.f32 %v3233, %v3261
      %3263 = vmatmul.bf16.gmra.mxu0 %v1881
      %v3264 = vpop.f32.mrf.mxu0
      %v3265 = vadd.f32 %v3236, %v3264
      %v3266 = vpop.f32.mrf.mxu0
      %v3267 = vadd.f32 %v3238, %v3266
      %3268 = vdwg.mxu0
      %3269 = vmatpush.bf16.msra.mxu0 %v2603
      %3270 = vmatpush.bf16.msra.mxu0 %v2601
      %3271 = vmatpush.bf16.msra.mxu0 %v2599
      %3272 = vmatpush.bf16.msra.mxu0 %v2597
      %3273 = vmatpush.bf16.msra.mxu0 %v2595
      %3274 = vmatpush.bf16.msra.mxu0 %v2593
      %3275 = vmatpush.bf16.msra.mxu0 %v2591
      %3276 = vmatpush.bf16.msra.mxu0 %v2589
      %3277 = vmatmul.bf16.gmra.mxu0 %v1852
      %v3278 = vpop.f32.mrf.mxu0
      %v3279 = vadd.f32 %v3250, %v3278
      %v3280 = vpop.f32.mrf.mxu0
      %v3281 = vadd.f32 %v3252, %v3280
      %3282 = vmatmul.bf16.gmra.mxu0 %v1862
      %v3283 = vpop.f32.mrf.mxu0
      %v3284 = vadd.f32 %v3255, %v3283
      %v3285 = vpop.f32.mrf.mxu0
      %v3286 = vadd.f32 %v3257, %v3285
      %3287 = vmatmul.bf16.gmra.mxu0 %v1872
      %v3288 = vpop.f32.mrf.mxu0
      %v3289 = vadd.f32 %v3260, %v3288
      %v3290 = vpop.f32.mrf.mxu0
      %v3291 = vadd.f32 %v3262, %v3290
      %3292 = vmatmul.bf16.gmra.mxu0 %v1882
      %v3293 = vpop.f32.mrf.mxu0
      %v3294 = vadd.f32 %v3265, %v3293
      %v3295 = vpop.f32.mrf.mxu0
      %v3296 = vadd.f32 %v3267, %v3295
      %3297 = vdwg.mxu0
      %3298 = vmatpush.bf16.msra.mxu0 %v2619
      %3299 = vmatpush.bf16.msra.mxu0 %v2617
      %3300 = vmatpush.bf16.msra.mxu0 %v2615
      %3301 = vmatpush.bf16.msra.mxu0 %v2613
      %3302 = vmatpush.bf16.msra.mxu0 %v2611
      %3303 = vmatpush.bf16.msra.mxu0 %v2609
      %3304 = vmatpush.bf16.msra.mxu0 %v2607
      %3305 = vmatpush.bf16.msra.mxu0 %v2605
      %3306 = vmatmul.bf16.gmra.mxu0 %v1853
      %v3307 = vpop.f32.mrf.mxu0
      %v3308 = vadd.f32 %v3279, %v3307
      %v3309 = vpop.f32.mrf.mxu0
      %v3310 = vadd.f32 %v3281, %v3309
      %3311 = vmatmul.bf16.gmra.mxu0 %v1863
      %v3312 = vpop.f32.mrf.mxu0
      %v3313 = vadd.f32 %v3284, %v3312
      %v3314 = vpop.f32.mrf.mxu0
      %v3315 = vadd.f32 %v3286, %v3314
      %3316 = vmatmul.bf16.gmra.mxu0 %v1873
      %v3317 = vpop.f32.mrf.mxu0
      %v3318 = vadd.f32 %v3289, %v3317
      %v3319 = vpop.f32.mrf.mxu0
      %v3320 = vadd.f32 %v3291, %v3319
      %3321 = vmatmul.bf16.gmra.mxu0 %v1883
      %v3322 = vpop.f32.mrf.mxu0
      %v3323 = vadd.f32 %v3294, %v3322
      %v3324 = vpop.f32.mrf.mxu0
      %v3325 = vadd.f32 %v3296, %v3324
      %3326 = vdwg.mxu0
      %3327 = vmatpush.bf16.msra.mxu0 %v2635
      %3328 = vmatpush.bf16.msra.mxu0 %v2633
      %3329 = vmatpush.bf16.msra.mxu0 %v2631
      %3330 = vmatpush.bf16.msra.mxu0 %v2629
      %3331 = vmatpush.bf16.msra.mxu0 %v2627
      %3332 = vmatpush.bf16.msra.mxu0 %v2625
      %3333 = vmatpush.bf16.msra.mxu0 %v2623
      %3334 = vmatpush.bf16.msra.mxu0 %v2621
      %3335 = vmatmul.bf16.gmra.mxu0 %v1854
      %v3336 = vpop.f32.mrf.mxu0
      %v3337 = vadd.f32 %v3308, %v3336
      %v3338 = vpop.f32.mrf.mxu0
      %v3339 = vadd.f32 %v3310, %v3338
      %3340 = vmatmul.bf16.gmra.mxu0 %v1864
      %v3341 = vpop.f32.mrf.mxu0
      %v3342 = vadd.f32 %v3313, %v3341
      %v3343 = vpop.f32.mrf.mxu0
      %v3344 = vadd.f32 %v3315, %v3343
      %3345 = vmatmul.bf16.gmra.mxu0 %v1874
      %v3346 = vpop.f32.mrf.mxu0
      %v3347 = vadd.f32 %v3318, %v3346
      %v3348 = vpop.f32.mrf.mxu0
      %v3349 = vadd.f32 %v3320, %v3348
      %3350 = vmatmul.bf16.gmra.mxu0 %v1884
      %v3351 = vpop.f32.mrf.mxu0
      %v3352 = vadd.f32 %v3323, %v3351
      %v3353 = vpop.f32.mrf.mxu0
      %v3354 = vadd.f32 %v3325, %v3353
      %3355 = vdwg.mxu0
      %3356 = vmatpush.bf16.msra.mxu0 0
      %3357 = vmatpush.bf16.msra.mxu0 0
      %3358 = vmatpush.bf16.msra.mxu0 0
      %3359 = vmatpush.bf16.msra.mxu0 0
      %3360 = vmatpush.bf16.msra.mxu0 0
      %3361 = vmatpush.bf16.msra.mxu0 %v2641
      %3362 = vmatpush.bf16.msra.mxu0 %v2639
      %3363 = vmatpush.bf16.msra.mxu0 %v2637
      %3364 = vmatmul.bf16.gmra.mxu0 %v2794
      %v3365 = vpop.f32.mrf.mxu0
      %v3366 = vadd.f32 %v3337, %v3365
      %v3367 = vpop.f32.mrf.mxu0
      %v3368 = vadd.f32 %v3339, %v3367
      %3369 = vmatmul.bf16.gmra.mxu0 %v2797
      %v3370 = vpop.f32.mrf.mxu0
      %v3371 = vadd.f32 %v3342, %v3370
      %v3372 = vpop.f32.mrf.mxu0
      %v3373 = vadd.f32 %v3344, %v3372
      %3374 = vmatmul.bf16.gmra.mxu0 %v2800
      %v3375 = vpop.f32.mrf.mxu0
      %v3376 = vadd.f32 %v3347, %v3375
      %v3377 = vpop.f32.mrf.mxu0
      %v3378 = vadd.f32 %v3349, %v3377
      %3379 = vmatmul.bf16.gmra.mxu0 %v2803
      %v3380 = vpop.f32.mrf.mxu0
      %v3381 = vadd.f32 %v3352, %v3380
      %v3382 = vpop.f32.mrf.mxu0
      %v3383 = vadd.f32 %v3354, %v3382
      %3384 = vdwg.mxu0
      %v3385 = vmax.f32 %v3076, %v3078
      %v3386 = vmax.f32 %v3366, %v3368
      %v3387 = vmax.f32 %v3081, %v3083
      %v3388 = vmax.f32 %v3371, %v3373
      %v3389 = vmax.f32 %v3086, %v3088
      %v3390 = vmax.f32 %v3376, %v3378
      %v3391 = vmax.f32 %v3091, %v3093
      %v3392 = vmax.f32 %v3381, %v3383
      %3401 = vrot.lane.b32.xlu0 %v3385, 127
      %v3402 = vpop.permute.xlu0 %3401
      %3403 = vrot.lane.b32.xlu0 %v3386, 127
      %v3404 = vpop.permute.xlu0 %3403
      %3405 = vrot.lane.b32.xlu0 %v3387, 127
      %v3406 = vpop.permute.xlu0 %3405
      %3407 = vrot.lane.b32.xlu0 %v3388, 127
      %v3408 = vpop.permute.xlu0 %3407
      %3409 = vrot.lane.b32.xlu0 %v3389, 127
      %v3410 = vpop.permute.xlu0 %3409
      %3411 = vrot.lane.b32.xlu0 %v3390, 127
      %v3412 = vpop.permute.xlu0 %3411
      %3413 = vrot.lane.b32.xlu0 %v3391, 127
      %v3414 = vpop.permute.xlu0 %3413
      %3415 = vrot.lane.b32.xlu0 %v3392, 127
      %v3416 = vpop.permute.xlu0 %3415
      %v3417 = vsel %vm1435, %v3402, %v3404
      %v3418 = vsel %vm1435, %v3406, %v3408
      %v3419 = vsel %vm1435, %v3410, %v3412
      %v3420 = vsel %vm1435, %v3414, %v3416
      %vm3429 = vcmask 252928
      %v3430 = vsel %vm3429, %v3404, %v3386
      %v3431 = vsel %vm3429, %v3408, %v3388
      %v3432 = vsel %vm3429, %v3412, %v3390
      %v3433 = vsel %vm3429, %v3416, %v3392
      %v3434 = vmax.f32 %v3385, %v3417
      %v3435 = vmax.f32 %v3386, %v3430
      %v3436 = vmax.f32 %v3387, %v3418
      %v3437 = vmax.f32 %v3388, %v3431
      %v3438 = vmax.f32 %v3389, %v3419
      %v3439 = vmax.f32 %v3390, %v3432
      %v3440 = vmax.f32 %v3391, %v3420
      %v3441 = vmax.f32 %v3392, %v3433
      %v3442 = vmax.f32 %v3434, 0.0
      %v3443 = vmax.f32 %v3435, 0.0
      %v3444 = vmax.f32 %v3436, 0.0
      %v3445 = vmax.f32 %v3437, 0.0
      %v3446 = vmax.f32 %v3438, 0.0
      %v3447 = vmax.f32 %v3439, 0.0
      %v3448 = vmax.f32 %v3440, 0.0
      %v3449 = vmax.f32 %v3441, 0.0
      %3452 = vrot.lane.b32.xlu0 %v3444, 32
      %v3453 = vpop.permute.xlu0 %3452
      %3454 = vrot.lane.b32.xlu0 %v3445, 32
      %v3455 = vpop.permute.xlu0 %3454
      %vm3456 = vcmask 261120
      %v3457 = vsel %vm3456, %v3453, %v3455
      %3462 = vrot.lane.b32.xlu0 %v3446, 64
      %v3463 = vpop.permute.xlu0 %3462
      %3464 = vrot.lane.b32.xlu0 %v3447, 64
      %v3465 = vpop.permute.xlu0 %3464
      %v3466 = vsel %vm1781, %v3463, %v3465
      %3471 = vrot.lane.b32.xlu0 %v3448, 96
      %v3472 = vpop.permute.xlu0 %3471
      %3473 = vrot.lane.b32.xlu0 %v3449, 96
      %v3474 = vpop.permute.xlu0 %3473
      %v3475 = vsel %vm1647, %v3472, %v3474
      %v3478 = vsel %vm3456, %v3443, %v3453
      %v3479 = vsel %vm1781, %v3457, %v3463
      %v3480 = vsel %vm1647, %v3466, %v3472
      %v3481 = vpack.c.bf16 %v3442, %v3442
      %v3482 = vpack.c.bf16 %v3478, %v3478
      %v3483 = vpack.c.bf16 %v3479, %v3479
      %v3484 = vpack.c.bf16 %v3480, %v3480
      %v3485 = vpack.c.bf16 %v3475, %v3475
      %v3486 = vld [vmem:[%s5] sm:$0xf]
      %v3487 = vld [vmem:[%s5 + $0x4] sm:$0xf]
      %v3488 = vld [vmem:[%s5 + $0x8] sm:$0xf]
      %v3489 = vld [vmem:[%s5 + $0xc] sm:$0xf]
      %v3490 = vld [vmem:[%s5 + $0x10] sm:$0xf]
      %v3491 = vld [vmem:[%s5 + $0x14] sm:$0xf]
      %v3492 = vld [vmem:[%s5 + $0x18] sm:$0xf]
      %v3493 = vld [vmem:[%s5 + $0x1c] sm:$0xf]
      %v3494 = vld [vmem:[%s5 + $0x20] sm:$0xf]
      %v3495 = vld [vmem:[%s5 + $0x24] sm:$0xf]
      %v3496 = vld [vmem:[%s5 + $0x28] sm:$0xf]
      %v3497 = vld [vmem:[%s5 + $0x2c] sm:$0xf]
      %v3498 = vld [vmem:[%s5 + $0x30] sm:$0xf]
      %v3499 = vld [vmem:[%s5 + $0x34] sm:$0xf]
      %v3500 = vld [vmem:[%s5 + $0x38] sm:$0xf]
      %v3501 = vld [vmem:[%s5 + $0x3c] sm:$0xf]
      %v3502 = vld [vmem:[%s5 + $0x40] sm:$0xf]
      %v3503 = vld [vmem:[%s5 + $0x44] sm:$0xf]
      %v3504 = vld [vmem:[%s5 + $0x48] sm:$0xf]
      %v3505 = vld [vmem:[%s5 + $0x4c] sm:$0xf]
      %v3506 = vld [vmem:[%s5 + $0x50] sm:$0xf]
      %v3507 = vld [vmem:[%s5 + $0x54] sm:$0xf]
      %v3508 = vld [vmem:[%s5 + $0x58] sm:$0xf]
      %v3509 = vld [vmem:[%s5 + $0x5c] sm:$0xf]
      %v3510 = vld [vmem:[%s5 + $0x60] sm:$0xf]
      %v3511 = vld [vmem:[%s5 + $0x64] sm:$0xf]
      %v3512 = vld [vmem:[%s5 + $0x68] sm:$0xf]
      %v3513 = vld [vmem:[%s5 + $0x6c] sm:$0xf]
      %v3514 = vld [vmem:[%s5 + $0x70] sm:$0xf]
      %v3515 = vld [vmem:[%s5 + $0x74] sm:$0xf]
      %v3516 = vld [vmem:[%s5 + $0x78] sm:$0xf]
      %v3517 = vld [vmem:[%s5 + $0x7c] sm:$0xf]
      %v3518 = vld [vmem:[%s5 + $0x80] sm:$0xf]
      %v3519 = vld [vmem:[%s5 + $0x84] sm:$0xf]
      %v3520 = vld [vmem:[%s5 + $0x88] sm:$0xf]
      %v3521 = vld [vmem:[%s5 + $0x8c] sm:$0xf]
      %v3522 = vld [vmem:[%s5 + $0x90] sm:$0xf]
      %v3523 = vld [vmem:[%s5 + $0x94] sm:$0xf]
      %v3524 = vld [vmem:[%s5 + $0x98] sm:$0xf]
      %v3525 = vld [vmem:[%s5 + $0x9c] sm:$0xf]
      %v3526 = vld [vmem:[%s5 + $0xa0] sm:$0xf]
      %v3527 = vld [vmem:[%s5 + $0xa4] sm:$0xf]
      %v3528 = vld [vmem:[%s5 + $0xa8] sm:$0xf]
      %v3529 = vld [vmem:[%s5 + $0xac] sm:$0xf]
      %v3530 = vld [vmem:[%s5 + $0xb0] sm:$0xf]
      %v3531 = vld [vmem:[%s5 + $0xb4] sm:$0xf]
      %v3532 = vld [vmem:[%s5 + $0xb8] sm:$0xf]
      %v3533 = vld [vmem:[%s5 + $0xbc] sm:$0xf]
      %v3534 = vld [vmem:[%s5 + $0xc0] sm:$0xf]
      %v3535 = vld [vmem:[%s5 + $0xc4] sm:$0xf]
      %v3536 = vld [vmem:[%s5 + $0xc8] sm:$0xf]
      %v3537 = vld [vmem:[%s5 + $0xcc] sm:$0xf]
      %v3538 = vld [vmem:[%s5 + $0xd0] sm:$0xf]
      %v3539 = vld [vmem:[%s5 + $0xd4] sm:$0xf]
      %v3540 = vld [vmem:[%s5 + $0xd8] sm:$0xf]
      %v3541 = vld [vmem:[%s5 + $0xdc] sm:$0xf]
      %v3542 = vld [vmem:[%s5 + $0xe0] sm:$0xf]
      %v3543 = vld [vmem:[%s5 + $0xe4] sm:$0xf]
      %v3544 = vld [vmem:[%s5 + $0xe8] sm:$0xf]
      %v3545 = vld [vmem:[%s5 + $0xec] sm:$0xf]
      %v3546 = vld [vmem:[%s5 + $0xf0] sm:$0xf]
      %v3547 = vld [vmem:[%s5 + $0xf4] sm:$0xf]
      %v3548 = vld [vmem:[%s5 + $0xf8] sm:$0xf]
      %v3549 = vld [vmem:[%s5 + $0xfc] sm:$0xf]
      %v3550 = vld [vmem:[%s5 + $0x100] sm:$0xf]
      %v3551 = vld [vmem:[%s5 + $0x104] sm:$0xf]
      %v3552 = vld [vmem:[%s5 + $0x108] sm:$0xf]
      %v3553 = vld [vmem:[%s5 + $0x10c] sm:$0xf]
      %v3554 = vld [vmem:[%s5 + $0x110] sm:$0xf]
      %v3555 = vld [vmem:[%s5 + $0x114] sm:$0xf]
      %v3556 = vld [vmem:[%s5 + $0x118] sm:$0xf]
      %v3557 = vld [vmem:[%s5 + $0x11c] sm:$0xf]
      %v3558 = vld [vmem:[%s5 + $0x120] sm:$0xf]
      %v3559 = vld [vmem:[%s5 + $0x124] sm:$0xf]
      %v3560 = vld [vmem:[%s5 + $0x128] sm:$0xf]
      %v3561 = vld [vmem:[%s5 + $0x12c] sm:$0xf]
      %v3562 = vld [vmem:[%s5 + $0x130] sm:$0xf]
      %v3563 = vld [vmem:[%s5 + $0x134] sm:$0xf]
      %v3564 = vld [vmem:[%s5 + $0x138] sm:$0xf]
      %v3565 = vld [vmem:[%s5 + $0x13c] sm:$0xf]
      %v3566 = vld [vmem:[%s6] sm:$0x1]
      %v3568 = vperm.slane %v3566, 0
      %v3650 = vunpack.c.l.b16 %v3486
      %v3651 = vunpack.c.l.b16 %v3487
      %v3652 = vunpack.c.l.b16 %v3488
      %v3653 = vunpack.c.l.b16 %v3489
      %v3654 = vunpack.c.l.b16 %v3490
      %v3655 = vunpack.c.l.b16 %v3491
      %v3656 = vunpack.c.l.b16 %v3492
      %v3657 = vunpack.c.l.b16 %v3493
      %v3658 = vunpack.c.l.b16 %v3494
      %v3659 = vunpack.c.l.b16 %v3495
      %v3660 = vunpack.c.l.b16 %v3496
      %v3661 = vunpack.c.l.b16 %v3497
      %v3662 = vunpack.c.l.b16 %v3498
      %v3663 = vunpack.c.l.b16 %v3499
      %v3664 = vunpack.c.l.b16 %v3500
      %v3665 = vunpack.c.l.b16 %v3501
      %v3666 = vunpack.c.l.b16 %v3502
      %v3667 = vunpack.c.l.b16 %v3503
      %v3668 = vunpack.c.l.b16 %v3504
      %v3669 = vunpack.c.l.b16 %v3505
      %v3670 = vunpack.c.l.b16 %v3506
      %v3671 = vunpack.c.l.b16 %v3507
      %v3672 = vunpack.c.l.b16 %v3508
      %v3673 = vunpack.c.l.b16 %v3509
      %v3674 = vunpack.c.l.b16 %v3510
      %v3675 = vunpack.c.l.b16 %v3511
      %v3676 = vunpack.c.l.b16 %v3512
      %v3677 = vunpack.c.l.b16 %v3513
      %v3678 = vunpack.c.l.b16 %v3514
      %v3679 = vunpack.c.l.b16 %v3515
      %v3680 = vunpack.c.l.b16 %v3516
      %v3681 = vunpack.c.l.b16 %v3517
      %v3682 = vunpack.c.l.b16 %v3518
      %v3683 = vunpack.c.l.b16 %v3519
      %v3684 = vunpack.c.l.b16 %v3520
      %v3685 = vunpack.c.l.b16 %v3521
      %v3686 = vunpack.c.l.b16 %v3522
      %v3687 = vunpack.c.l.b16 %v3523
      %v3688 = vunpack.c.l.b16 %v3524
      %v3689 = vunpack.c.l.b16 %v3525
      %v3690 = vunpack.c.l.b16 %v3526
      %v3691 = vunpack.c.l.b16 %v3527
      %v3692 = vunpack.c.l.b16 %v3528
      %v3693 = vunpack.c.l.b16 %v3529
      %v3694 = vunpack.c.l.b16 %v3530
      %v3695 = vunpack.c.l.b16 %v3531
      %v3696 = vunpack.c.l.b16 %v3532
      %v3697 = vunpack.c.l.b16 %v3533
      %v3698 = vunpack.c.l.b16 %v3534
      %v3699 = vunpack.c.l.b16 %v3535
      %v3700 = vunpack.c.l.b16 %v3536
      %v3701 = vunpack.c.l.b16 %v3537
      %v3702 = vunpack.c.l.b16 %v3538
      %v3703 = vunpack.c.l.b16 %v3539
      %v3704 = vunpack.c.l.b16 %v3540
      %v3705 = vunpack.c.l.b16 %v3541
      %v3706 = vunpack.c.l.b16 %v3542
      %v3707 = vunpack.c.l.b16 %v3543
      %v3708 = vunpack.c.l.b16 %v3544
      %v3709 = vunpack.c.l.b16 %v3545
      %v3710 = vunpack.c.l.b16 %v3546
      %v3711 = vunpack.c.l.b16 %v3547
      %v3712 = vunpack.c.l.b16 %v3548
      %v3713 = vunpack.c.l.b16 %v3549
      %v3714 = vunpack.c.l.b16 %v3550
      %v3715 = vunpack.c.l.b16 %v3551
      %v3716 = vunpack.c.l.b16 %v3552
      %v3717 = vunpack.c.l.b16 %v3553
      %v3718 = vunpack.c.l.b16 %v3554
      %v3719 = vunpack.c.l.b16 %v3555
      %v3720 = vunpack.c.l.b16 %v3556
      %v3721 = vunpack.c.l.b16 %v3557
      %v3722 = vunpack.c.l.b16 %v3558
      %v3723 = vunpack.c.l.b16 %v3559
      %v3724 = vunpack.c.l.b16 %v3560
      %v3725 = vunpack.c.l.b16 %v3561
      %v3726 = vunpack.c.l.b16 %v3562
      %v3727 = vunpack.c.l.b16 %v3563
      %v3728 = vunpack.c.l.b16 %v3564
      %v3729 = vunpack.c.l.b16 %v3565
      %v3730 = vpack.c.b16 %v3651, %v3650
      %v3731 = vpack.c.b16 %v3653, %v3652
      %v3732 = vpack.c.b16 %v3655, %v3654
      %v3733 = vpack.c.b16 %v3657, %v3656
      %v3734 = vpack.c.b16 %v3659, %v3658
      %v3735 = vpack.c.b16 %v3661, %v3660
      %v3736 = vpack.c.b16 %v3663, %v3662
      %v3737 = vpack.c.b16 %v3665, %v3664
      %v3738 = vpack.c.b16 %v3667, %v3666
      %v3739 = vpack.c.b16 %v3669, %v3668
      %v3740 = vpack.c.b16 %v3671, %v3670
      %v3741 = vpack.c.b16 %v3673, %v3672
      %v3742 = vpack.c.b16 %v3675, %v3674
      %v3743 = vpack.c.b16 %v3677, %v3676
      %v3744 = vpack.c.b16 %v3679, %v3678
      %v3745 = vpack.c.b16 %v3681, %v3680
      %v3746 = vpack.c.b16 %v3683, %v3682
      %v3747 = vpack.c.b16 %v3685, %v3684
      %v3748 = vpack.c.b16 %v3687, %v3686
      %v3749 = vpack.c.b16 %v3689, %v3688
      %v3750 = vpack.c.b16 %v3691, %v3690
      %v3751 = vpack.c.b16 %v3693, %v3692
      %v3752 = vpack.c.b16 %v3695, %v3694
      %v3753 = vpack.c.b16 %v3697, %v3696
      %v3754 = vpack.c.b16 %v3699, %v3698
      %v3755 = vpack.c.b16 %v3701, %v3700
      %v3756 = vpack.c.b16 %v3703, %v3702
      %v3757 = vpack.c.b16 %v3705, %v3704
      %v3758 = vpack.c.b16 %v3707, %v3706
      %v3759 = vpack.c.b16 %v3709, %v3708
      %v3760 = vpack.c.b16 %v3711, %v3710
      %v3761 = vpack.c.b16 %v3713, %v3712
      %v3762 = vpack.c.b16 %v3715, %v3714
      %v3763 = vpack.c.b16 %v3717, %v3716
      %v3764 = vpack.c.b16 %v3719, %v3718
      %v3765 = vpack.c.b16 %v3721, %v3720
      %v3766 = vpack.c.b16 %v3723, %v3722
      %v3767 = vpack.c.b16 %v3725, %v3724
      %v3768 = vpack.c.b16 %v3727, %v3726
      %v3769 = vpack.c.b16 %v3729, %v3728
      %3810 = vmatpush.bf16.msra.mxu0 %v3737
      %3811 = vmatpush.bf16.msra.mxu0 %v3736
      %3812 = vmatpush.bf16.msra.mxu0 %v3735
      %3813 = vmatpush.bf16.msra.mxu0 %v3734
      %3814 = vmatpush.bf16.msra.mxu0 %v3733
      %3815 = vmatpush.bf16.msra.mxu0 %v3732
      %3816 = vmatpush.bf16.msra.mxu0 %v3731
      %3817 = vmatpush.bf16.msra.mxu0 %v3730
      %3818 = vmatmul.bf16.gmra.mxu0 %v3481
      %v3819 = vpop.f32.mrf.mxu0
      %v3820 = vadd.f32 %v3568, %v3819
      %v3821 = vpop.f32.mrf.mxu0
      %3822 = vdwg.mxu0
      %3823 = vmatpush.bf16.msra.mxu0 %v3745
      %3824 = vmatpush.bf16.msra.mxu0 %v3744
      %3825 = vmatpush.bf16.msra.mxu0 %v3743
      %3826 = vmatpush.bf16.msra.mxu0 %v3742
      %3827 = vmatpush.bf16.msra.mxu0 %v3741
      %3828 = vmatpush.bf16.msra.mxu0 %v3740
      %3829 = vmatpush.bf16.msra.mxu0 %v3739
      %3830 = vmatpush.bf16.msra.mxu0 %v3738
      %3831 = vmatmul.bf16.gmra.mxu0 %v3482
      %v3832 = vpop.f32.mrf.mxu0
      %v3833 = vadd.f32 %v3820, %v3832
      %v3834 = vpop.f32.mrf.mxu0
      %3835 = vdwg.mxu0
      %3836 = vmatpush.bf16.msra.mxu0 %v3753
      %3837 = vmatpush.bf16.msra.mxu0 %v3752
      %3838 = vmatpush.bf16.msra.mxu0 %v3751
      %3839 = vmatpush.bf16.msra.mxu0 %v3750
      %3840 = vmatpush.bf16.msra.mxu0 %v3749
      %3841 = vmatpush.bf16.msra.mxu0 %v3748
      %3842 = vmatpush.bf16.msra.mxu0 %v3747
      %3843 = vmatpush.bf16.msra.mxu0 %v3746
      %3844 = vmatmul.bf16.gmra.mxu0 %v3483
      %v3845 = vpop.f32.mrf.mxu0
      %v3846 = vadd.f32 %v3833, %v3845
      %v3847 = vpop.f32.mrf.mxu0
      %3848 = vdwg.mxu0
      %3849 = vmatpush.bf16.msra.mxu0 %v3761
      %3850 = vmatpush.bf16.msra.mxu0 %v3760
      %3851 = vmatpush.bf16.msra.mxu0 %v3759
      %3852 = vmatpush.bf16.msra.mxu0 %v3758
      %3853 = vmatpush.bf16.msra.mxu0 %v3757
      %3854 = vmatpush.bf16.msra.mxu0 %v3756
      %3855 = vmatpush.bf16.msra.mxu0 %v3755
      %3856 = vmatpush.bf16.msra.mxu0 %v3754
      %3857 = vmatmul.bf16.gmra.mxu0 %v3484
      %v3858 = vpop.f32.mrf.mxu0
      %v3859 = vadd.f32 %v3846, %v3858
      %v3860 = vpop.f32.mrf.mxu0
      %3861 = vdwg.mxu0
      %3862 = vmatpush.bf16.msra.mxu0 %v3769
      %3863 = vmatpush.bf16.msra.mxu0 %v3768
      %3864 = vmatpush.bf16.msra.mxu0 %v3767
      %3865 = vmatpush.bf16.msra.mxu0 %v3766
      %3866 = vmatpush.bf16.msra.mxu0 %v3765
      %3867 = vmatpush.bf16.msra.mxu0 %v3764
      %3868 = vmatpush.bf16.msra.mxu0 %v3763
      %3869 = vmatpush.bf16.msra.mxu0 %v3762
      %3870 = vmatmul.bf16.gmra.mxu0 %v3485
      %v3871 = vpop.f32.mrf.mxu0
      %v3872 = vadd.f32 %v3859, %v3871
      %v3873 = vpop.f32.mrf.mxu0
      %3874 = vdwg.mxu0
      %3875 = vmax.xlane.f32.xlu0 %v3872
      %v3876 = vpop.xlane.xlu0 %3875
      %v3877 = vsub.f32 %v3872, %v3876
      %v3878 = vmul.f32 %v3877, 1.442695
      %v3879 = vpow.pop %v3878
      %3880 = vadd.xlane.f32.xlu0 %v3879
      %v3881 = vpop.xlane.xlu0 %3880
      %v3882 = vlog2.pop %v3881
      %v3883 = vmul.f32 %v3882, 0.6931472
      %v3884 = vsub.f32 %v3877, %v3883
      %3885 = vst [vmem:[%s276] sm:$0xff] %v3884
      %p3886 = scmp.lt.s32.totalorder %s18, 3
      %s3887 = scalar_select %p3886, %s18, 3
      %s3888 = smul.addr %s3887, 8
      %s3889 = scalar_lea.vmem %s7, %s3888
      // Predicated region
      $region49: #{net_forward.1} parent=47 // pred_check
        %p3890 = pneg %p188
      $region50: #{net_forward.1} parent=47 // pred_check_branch
        %3892 = sbr.rel (%p3890) target = $region52
      $region51: #{net_forward.1} parent=47 // pred_region
        _
      $region52: #{net_forward.1} parent=47 // pred_fallthru
        _
    $region48: #{net_forward.1} parent=5 // pred_fallthru
      _
    %p3893 = scmp.le.s32.totalorder 2, %s13
    // Predicated region
    $region53: #{net_forward.1} parent=5 // pred_check
      %p3894 = pneg %p3893
    $region54: #{net_forward.1} parent=5 // pred_check_branch
      %3896 = sbr.rel (%p3894) target = $region56
    $region55: #{net_forward.1} parent=5 // pred_region
      %s3897 = ssub.s32 %s13, 2
      // Predicated region
      $region57: #{net_forward.1} parent=55 // pred_check
        %p3898 = pneg %p194
      $region58: #{net_forward.1} parent=55 // pred_check_branch
        %3900 = sbr.rel (%p3898) target = $region60
      $region59: #{net_forward.1} parent=55 // pred_region
        %p3901 = scmp.lt.s32.totalorder %s19, 3
        %s3902 = scalar_select %p3901, %s19, 3
        %s3903 = smul.addr %s3902, 8
        %s3904 = scalar_lea.vmem %s7, %s3903
      $region60: #{net_forward.1} parent=55 // pred_fallthru
        _
    $region56: #{net_forward.1} parent=5 // pred_fallthru
      _
  $region6: #{net_forward.1} parent=0 // loop_footer
    %s17 = sadd.s32 1, %s13
  $region7: #{net_forward.1} parent=0 // loop_footer_branch
    %12 = sbr.rel target = $region3
  $region8: #{net_forward.1} parent=0 // loop_exit
    _

</llo_original>
